<compile_context>
chip_gen: v7x
topology: tpu7x:2x2x1
jax: 0.10.0
libtpu: 0.0.40
codegen_flags: <defaults>
</compile_context>

<pallas_src>
import functools

import jax
import jax.numpy as jnp
from jax.experimental import pallas as pl
from jax.experimental.pallas import tpu as pltpu

_EPS = 1e-5
_SUBLANE = 16                  # bf16 sublane pack (also a multiple of f32's 8)
_REG_ACC_BYTES = 64 * 1024     # keep the 9-tap accumulator in vregs below this


def _round_up(x, m):
    return (x + m - 1) // m * m


def _fold_bn(gamma, beta, mean, var):
    """Inference BN -> per-channel (scale, bias), f32."""
    scale = (gamma / jnp.sqrt(var + _EPS)).astype(jnp.float32)
    bias = (beta - mean * scale).astype(jnp.float32)
    return scale, bias


# ----------------------------------------------------------------------------
# Fused Bottleneck kernel: one image (grid step) per invocation.
# ----------------------------------------------------------------------------
def _fused_bottleneck_kernel(
    x_ref,     # (1, M, Cin)   compute dtype  (NHWC, row pitch Wp, M = H*Wp)
    w1_ref,    # (Cin, P)      compute dtype  (1x1 conv1 weights * bn1 scale)
    b1_ref,    # (1, P)        f32            (folded bn1 bias)
    w2_ref,    # (9, P, P)     compute dtype  (3x3 conv2 taps  * bn2 scale)
    b2_ref,    # (1, P)        f32
    w3_ref,    # (P, Cout)     compute dtype  (1x1 conv3 weights * bn3 scale)
    b3_ref,    # (1, Cout)     f32
    o_ref,     # (1, M, Cout)  out dtype
    t1c_ref,   # (L, P)        cdt  VMEM: stage-1 output, zero halos (center)
    t1l_ref,   # (L, P)        cdt  VMEM: left-neighbour copy, masked once
    t1r_ref,   # (L, P)        cdt  VMEM: right-neighbour copy, masked once
    *maybe_acc,                # optional (M, P) f32 VMEM acc (large-M fallback)
    H, W, Wp,
):
    M = H * Wp
    P = w1_ref.shape[1]
    L = t1c_ref.shape[0]
    pad = Wp                      # top/bottom halo rows (sublane-aligned)
    cdt = t1c_ref.dtype

    # ---- stage 1: 1x1 conv + folded BN1 + ReLU ------------------------------
    t1 = jnp.dot(x_ref[0], w1_ref[...], preferred_element_type=jnp.float32)
    t1 = jnp.maximum(t1 + b1_ref[...], 0.0).astype(cdt)

    # Zero halos every step (NOT guarded by program_id==0: with a "parallel"
    # batch axis on a multi-TC chip each core owns a private scratch and only
    # one core ever executes program_id(0)==0).  Cheap: 2*Wp rows per buffer.
    zhalo = jnp.zeros((pad, P), cdt)
    for buf in (t1c_ref, t1l_ref, t1r_ref):
        buf[0:pad, :] = zhalo
        buf[pad + M:L, :] = zhalo

    # Center copy.
    t1c_ref[pad:pad + M, :] = t1

    # Column-shifted copies: t1l[r] = t1[r-1] (left neighbour), t1r[r] =
    # t1[r+1] (right neighbour), each masked ONCE so image-row wrap-around
    # (and the Wp>W pad columns) contribute zero.  These are the only two
    # sublane-unaligned reads in the kernel; every tap read below is aligned.
    col = jax.lax.broadcasted_iota(jnp.int32, (M, 1), 0) % Wp
    mask_l = (col > 0).astype(cdt)          # left  neighbour valid
    mask_r = (col < (W - 1)).astype(cdt)    # right neighbour valid (use W!)
    t1l_ref[pad:pad + M, :] = t1c_ref[pad - 1:pad - 1 + M, :] * mask_l
    t1r_ref[pad:pad + M, :] = t1c_ref[pad + 1:pad + 1 + M, :] * mask_r

    # ---- stage 2: 3x3 conv (pad=1, stride=1) + folded BN2 + ReLU ------------
    # Tap (dy, dx) for output row r reads buffer[dx] at row
    #   pad + r + (dy-1)*Wp  =  r + dy*Wp        (since pad == Wp),
    # i.e. a STATIC, sublane-aligned slice fed straight to the MXU.  Row
    # under/overflow lands in the zero halos; column wrap is pre-masked above.
    bufs = (t1l_ref, t1c_ref, t1r_ref)          # indexed by dx

    def tap(t):
        dy, dx = divmod(t, 3)
        patch = bufs[dx][dy * Wp:dy * Wp + M, :]
        return jnp.dot(patch, w2_ref[t], preferred_element_type=jnp.float32)

    if maybe_acc:
        # Large-M fallback: (M, P) f32 does not fit comfortably in vregs.
        acc_ref = maybe_acc[0]
        acc_ref[...] = tap(0)
        for t in range(1, 9):
            acc_ref[...] += tap(t)
        acc = acc_ref[...]
    else:
        # Register accumulation: no per-tap VMEM load/store traffic; lets the
        # MXU chain the 9 matmuls (MRB accumulate on v7x, MRF pops on v5e/v6e).
        acc = tap(0)
        for t in range(1, 9):
            acc = acc + tap(t)

    t2 = jnp.maximum(acc + b2_ref[...], 0.0).astype(cdt)

    # ---- stage 3: 1x1 conv + folded BN3 + residual (x is resident) + ReLU ---
    y = jnp.dot(t2, w3_ref[...], preferred_element_type=jnp.float32)
    y = y + b3_ref[...] + x_ref[0].astype(jnp.float32)
    o_ref[0] = jnp.maximum(y, 0.0).astype(o_ref.dtype)


# ----------------------------------------------------------------------------
# Wrapper: NHWC in / NHWC out, whole block in a single pallas_call.
# ----------------------------------------------------------------------------
def bottleneck_forward_nhwc(x_nhwc, params, *, stride=1,
                            compute_dtype=jnp.bfloat16):
    if stride != 1:
        # downsample is None in this configuration -> identity residual only.
        raise NotImplementedError("stride > 1 requires a downsample branch")
    N, H, W, Cin = x_nhwc.shape
    planes = params["w1_oihw"].shape[0]
    Cout = params["w3_oihw"].shape[0]
    if Cin != Cout:
        raise NotImplementedError("identity residual requires Cin == Cout")

    s1, b1 = _fold_bn(*params["bn1"])
    s2, b2 = _fold_bn(*params["bn2"])
    s3, b3 = _fold_bn(*params["bn3"])

    cdt = compute_dtype
    # Fold BN scales into the (tiny) conv weights at trace time.
    w1 = (params["w1_oihw"][:, :, 0, 0].T * s1[None, :]).astype(cdt)   # (Cin, P)
    w2 = (jnp.transpose(params["w2_oihw"], (2, 3, 1, 0))
          * s2[None, None, None, :]).reshape(9, planes, planes).astype(cdt)
    w3 = (params["w3_oihw"][:, :, 0, 0].T * s3[None, :]).astype(cdt)   # (P, Cout)
    b1 = b1[None, :]
    b2 = b2[None, :]
    b3 = b3[None, :]

    # Row pitch padded to the sublane pack so all dy (+/-Wp) tap offsets stay
    # sublane-aligned.  No pad / no extra copy when W is already a multiple.
    Wp = _round_up(W, _SUBLANE)
    M = H * Wp
    L = M + 2 * Wp                       # + zero halos (Wp rows top & bottom)
    use_vmem_acc = (M * planes * 4) > _REG_ACC_BYTES

    x_p = x_nhwc if Wp == W else jnp.pad(
        x_nhwc, ((0, 0), (0, 0), (0, Wp - W), (0, 0)))
    x_flat = x_p.astype(cdt).reshape(N, M, Cin)

    kernel = functools.partial(_fused_bottleneck_kernel, H=H, W=W, Wp=Wp)

    scratch = [
        pltpu.VMEM((L, planes), cdt),     # stage-1 center (padded)
        pltpu.VMEM((L, planes), cdt),     # left-neighbour copy
        pltpu.VMEM((L, planes), cdt),     # right-neighbour copy
    ]
    if use_vmem_acc:
        scratch.append(pltpu.VMEM((M, planes), jnp.float32))

    out = pl.pallas_call(
        kernel,
        out_shape=jax.ShapeDtypeStruct((N, M, Cout), cdt),
        grid_spec=pltpu.PrefetchScalarGridSpec(
            num_scalar_prefetch=0,
            grid=(N,),                                        # one image / step
            in_specs=[
                pl.BlockSpec((1, M, Cin), lambda n: (n, 0, 0)),
                # weights / folded-BN biases stay resident across the grid
                pl.BlockSpec((Cin, planes), lambda n: (0, 0)),
                pl.BlockSpec((1, planes), lambda n: (0, 0)),
                pl.BlockSpec((9, planes, planes), lambda n: (0, 0, 0)),
                pl.BlockSpec((1, planes), lambda n: (0, 0)),
                pl.BlockSpec((planes, Cout), lambda n: (0, 0)),
                pl.BlockSpec((1, Cout), lambda n: (0, 0)),
            ],
            out_specs=pl.BlockSpec((1, M, Cout), lambda n: (n, 0, 0)),
            scratch_shapes=scratch,
        ),
        compiler_params=pltpu.CompilerParams(
            dimension_semantics=("parallel",),   # megacore / dual-TC: split N
            # 32 MiB is within the scoped limit on v5e/v6e/v7x; per-step
            # footprint here is << 10 MiB even at real ResNetFace sizes.
            vmem_limit_bytes=32 * 1024 * 1024,
        ),
    )(x_flat, w1, b1, w2, b2, w3, b3)

    out = out.reshape(N, H, Wp, Cout)
    if Wp != W:
        out = out[:, :, :W, :]               # strip row-pitch pad columns
    return out


# ----------------------------------------------------------------------------
# Pure-JAX reference (independent path via lax.conv, NCHW, unfolded BN).
# ----------------------------------------------------------------------------
def reference_forward(x_nchw, params, *, stride=1):
    def bn(y, p):
        g, b, m, v = p
        inv = 1.0 / jnp.sqrt(v + _EPS)
        return (y - m[None, :, None, None]) * (g * inv)[None, :, None, None] \
            + b[None, :, None, None]

    def conv(x, w, s, pad):
        return jax.lax.conv_general_dilated(
            x, w, (s, s), pad, dimension_numbers=("NCHW", "OIHW", "NCHW"))

    out = jax.nn.relu(bn(conv(x_nchw, params["w1_oihw"], 1, "VALID"), params["bn1"]))
    out = jax.nn.relu(bn(conv(out, params["w2_oihw"], stride, [(1, 1), (1, 1)]),
                         params["bn2"]))
    out = bn(conv(out, params["w3_oihw"], 1, "VALID"), params["bn3"])
    out = out + x_nchw
    return jax.nn.relu(out)


# ----------------------------------------------------------------------------
# main
# ----------------------------------------------------------------------------
if __name__ == "__main__":
    key = jax.random.PRNGKey(0)
    ks = jax.random.split(key, 8)

    N, H, W = 2, 16, 16
    planes, expansion = 32, 4
    inplanes = planes * expansion     # identity residual, downsample = None
    stride = 1                        # Cout = 128 -> lane-dense output

    def bn_params(k, c):
        k1, k2, k3, k4 = jax.random.split(k, 4)
        gamma = jax.random.uniform(k1, (c,), jnp.float32, 0.5, 1.5)
        beta = 0.1 * jax.random.normal(k2, (c,), jnp.float32)
        mean = 0.1 * jax.random.normal(k3, (c,), jnp.float32)
        var = jax.random.uniform(k4, (c,), jnp.float32, 0.5, 1.5)
        return (gamma, beta, mean, var)

    params = {
        "w1_oihw": 0.1 * jax.random.normal(ks[0], (planes, inplanes, 1, 1), jnp.float32),
        "w2_oihw": 0.1 * jax.random.normal(ks[1], (planes, planes, 3, 3), jnp.float32),
        "w3_oihw": 0.1 * jax.random.normal(
            ks[2], (planes * expansion, planes, 1, 1), jnp.float32),
        "bn1": bn_params(ks[3], planes),
        "bn2": bn_params(ks[4], planes),
        "bn3": bn_params(ks[5], planes * expansion),
    }

    x_nchw = jax.random.normal(ks[6], (N, inplanes, H, W), jnp.float32)
    # Single layout change at the model boundary; the block itself is NHWC.
    x_nhwc = jnp.transpose(x_nchw, (0, 2, 3, 1))

    ref_nhwc = jnp.transpose(
        reference_forward(x_nchw, params, stride=stride), (0, 2, 3, 1))

    # f32 compute mode (tolerance accounts for TPU default matmul precision
    # differences between the fused/folded Pallas path and lax.conv).
    out_f32 = jax.block_until_ready(
        bottleneck_forward_nhwc(x_nhwc, params, stride=stride,
                                compute_dtype=jnp.float32))
    assert out_f32.shape == (N, H, W, inplanes), out_f32.shape
    err32 = jnp.max(jnp.abs(out_f32 - ref_nhwc))
    assert jnp.allclose(out_f32, ref_nhwc, atol=2.5e-2, rtol=2e-2), \
        f"f32 max abs err = {err32}"

    # bf16 compute mode (default; f32 accumulation) -> looser tolerance.
    out_bf16 = jax.block_until_ready(
        bottleneck_forward_nhwc(x_nhwc, params, stride=stride))
    out_bf16_f32 = out_bf16.astype(jnp.float32)
    err16 = jnp.max(jnp.abs(out_bf16_f32 - ref_nhwc))
    assert jnp.allclose(out_bf16_f32, ref_nhwc, atol=0.15, rtol=0.05), \
        f"bf16 max abs err = {err16}"

    print("KERNEL_OK")
</pallas_src>

<mosaic_0001>
module attributes {stable_mosaic.version = 11 : i64} {
  func.func @_fused_bottleneck_kernel(%arg0: i32, %arg1: memref<1x256x128xf32, #tpu.memory_space<vmem>>, %arg2: memref<128x32xf32, #tpu.memory_space<vmem>>, %arg3: memref<1x32xf32, #tpu.memory_space<vmem>>, %arg4: memref<9x32x32xf32, #tpu.memory_space<vmem>>, %arg5: memref<1x32xf32, #tpu.memory_space<vmem>>, %arg6: memref<32x128xf32, #tpu.memory_space<vmem>>, %arg7: memref<1x128xf32, #tpu.memory_space<vmem>>, %arg8: memref<1x256x128xf32, #tpu.memory_space<vmem>>, %arg9: memref<288x32xf32, #tpu.memory_space<vmem>>, %arg10: memref<288x32xf32, #tpu.memory_space<vmem>>, %arg11: memref<288x32xf32, #tpu.memory_space<vmem>>) attributes {dimension_semantics = [#tpu.dimension_semantics<parallel>], iteration_bounds = array<i64: 2>, scalar_prefetch = 0 : i64, scratch_operands = 3 : i64, tpu.core_type = #tpu.core_type<tc>, window_params = [{transform_indices = @transform_0, window_bounds = array<i64: 1, 256, 128>}, {pipeline_mode = #tpu.pipeline_mode<synchronous>, transform_indices = @transform_1, window_bounds = array<i64: 128, 32>}, {pipeline_mode = #tpu.pipeline_mode<synchronous>, transform_indices = @transform_2, window_bounds = array<i64: 1, 32>}, {pipeline_mode = #tpu.pipeline_mode<synchronous>, transform_indices = @transform_3, window_bounds = array<i64: 9, 32, 32>}, {pipeline_mode = #tpu.pipeline_mode<synchronous>, transform_indices = @transform_4, window_bounds = array<i64: 1, 32>}, {pipeline_mode = #tpu.pipeline_mode<synchronous>, transform_indices = @transform_5, window_bounds = array<i64: 32, 128>}, {pipeline_mode = #tpu.pipeline_mode<synchronous>, transform_indices = @transform_6, window_bounds = array<i64: 1, 128>}, {transform_indices = @transform_7, window_bounds = array<i64: 1, 256, 128>}]} {
    %c0 = arith.constant 0 : index
    %c0_0 = arith.constant 0 : index
    %c0_1 = arith.constant 0 : index
    %0 = vector.load %arg1[%c0, %c0_0, %c0_1] : memref<1x256x128xf32, #tpu.memory_space<vmem>>, vector<1x256x128xf32>
    %1 = vector.shape_cast %0 : vector<1x256x128xf32> to vector<256x128xf32>
    %c0_2 = arith.constant 0 : index
    %c0_3 = arith.constant 0 : index
    %2 = vector.load %arg2[%c0_2, %c0_3] : memref<128x32xf32, #tpu.memory_space<vmem>>, vector<128x32xf32>
    %cst = arith.constant dense<0.000000e+00> : vector<256x32xf32>
    %3 = tpu.matmul %1, %2, %cst {dimension_numbers = #tpu.dot_dimension_numbers<[1], [0], [0], [1], [0, 0, 1, 1], [], []>} : vector<256x128xf32>, vector<128x32xf32>, vector<256x32xf32> -> vector<256x32xf32>
    %c0_4 = arith.constant 0 : index
    %c0_5 = arith.constant 0 : index
    %4 = vector.load %arg3[%c0_4, %c0_5] : memref<1x32xf32, #tpu.memory_space<vmem>>, vector<1x32xf32>
    %5 = vector.broadcast %4 : vector<1x32xf32> to vector<256x32xf32>
    %6 = arith.addf %3, %5 : vector<256x32xf32>
    %cst_6 = arith.constant 0.000000e+00 : f32
    %7 = vector.broadcast %cst_6 : f32 to vector<256x32xf32>
    %8 = arith.maximumf %6, %7 : vector<256x32xf32>
    %cst_7 = arith.constant 0.000000e+00 : f32
    %9 = vector.broadcast %cst_7 : f32 to vector<16x32xf32>
    %c0_8 = arith.constant 0 : index
    %c0_9 = arith.constant 0 : index
    %10 = vector.load %arg9[%c0_8, %c0_9] : memref<288x32xf32, #tpu.memory_space<vmem>>, vector<16x32xf32>
    tpu.vector_store %arg9[%c0_8, %c0_9], %9 {strides = array<i32>} : memref<288x32xf32, #tpu.memory_space<vmem>>, vector<16x32xf32>,
    %c272 = arith.constant 272 : index
    %c0_10 = arith.constant 0 : index
    %11 = vector.load %arg9[%c272, %c0_10] : memref<288x32xf32, #tpu.memory_space<vmem>>, vector<16x32xf32>
    tpu.vector_store %arg9[%c272, %c0_10], %9 {strides = array<i32>} : memref<288x32xf32, #tpu.memory_space<vmem>>, vector<16x32xf32>,
    %c0_11 = arith.constant 0 : index
    %c0_12 = arith.constant 0 : index
    %12 = vector.load %arg10[%c0_11, %c0_12] : memref<288x32xf32, #tpu.memory_space<vmem>>, vector<16x32xf32>
    tpu.vector_store %arg10[%c0_11, %c0_12], %9 {strides = array<i32>} : memref<288x32xf32, #tpu.memory_space<vmem>>, vector<16x32xf32>,
    %c272_13 = arith.constant 272 : index
    %c0_14 = arith.constant 0 : index
    %13 = vector.load %arg10[%c272_13, %c0_14] : memref<288x32xf32, #tpu.memory_space<vmem>>, vector<16x32xf32>
    tpu.vector_store %arg10[%c272_13, %c0_14], %9 {strides = array<i32>} : memref<288x32xf32, #tpu.memory_space<vmem>>, vector<16x32xf32>,
    %c0_15 = arith.constant 0 : index
    %c0_16 = arith.constant 0 : index
    %14 = vector.load %arg11[%c0_15, %c0_16] : memref<288x32xf32, #tpu.memory_space<vmem>>, vector<16x32xf32>
    tpu.vector_store %arg11[%c0_15, %c0_16], %9 {strides = array<i32>} : memref<288x32xf32, #tpu.memory_space<vmem>>, vector<16x32xf32>,
    %c272_17 = arith.constant 272 : index
    %c0_18 = arith.constant 0 : index
    %15 = vector.load %arg11[%c272_17, %c0_18] : memref<288x32xf32, #tpu.memory_space<vmem>>, vector<16x32xf32>
    tpu.vector_store %arg11[%c272_17, %c0_18], %9 {strides = array<i32>} : memref<288x32xf32, #tpu.memory_space<vmem>>, vector<16x32xf32>,
    %c16 = arith.constant 16 : index
    %c0_19 = arith.constant 0 : index
    %16 = vector.load %arg9[%c16, %c0_19] : memref<288x32xf32, #tpu.memory_space<vmem>>, vector<256x32xf32>
    tpu.vector_store %arg9[%c16, %c0_19], %8 {strides = array<i32>} : memref<288x32xf32, #tpu.memory_space<vmem>>, vector<256x32xf32>,
    %17 = tpu.iota {dimensions = array<i32: 0>} : vector<256x1xi32>
    %c16_i32 = arith.constant 16 : i32
    %c0_i32 = arith.constant 0 : i32
    %18 = arith.cmpi eq, %c16_i32, %c0_i32 : i32
    %c1_i32 = arith.constant 1 : i32
    %19 = arith.select %18, %c1_i32, %c16_i32 : i32
    %20 = vector.broadcast %19 : i32 to vector<256x1xi32>
    %21 = arith.remsi %17, %20 : vector<256x1xi32>
    %c0_i32_20 = arith.constant 0 : i32
    %22 = vector.broadcast %c0_i32_20 : i32 to vector<256x1xi32>
    %23 = arith.cmpi ne, %21, %22 : vector<256x1xi32>
    %c0_i32_21 = arith.constant 0 : i32
    %24 = vector.broadcast %c0_i32_21 : i32 to vector<256x1xi32>
    %25 = arith.cmpi slt, %21, %24 : vector<256x1xi32>
    %c0_i32_22 = arith.constant 0 : i32
    %26 = arith.cmpi slt, %19, %c0_i32_22 : i32
    %27 = vector.broadcast %26 : i1 to vector<256x1xi1>
    %28 = vector.broadcast %27 : vector<256x1xi1> to vector<256x1xi1>
    %29 = arith.xori %25, %28 : vector<256x1xi1>
    %30 = arith.andi %29, %23 : vector<256x1xi1>
    %31 = vector.broadcast %19 : i32 to vector<256x1xi32>
    %32 = arith.addi %21, %31 : vector<256x1xi32>
    %33 = arith.select %30, %32, %21 : vector<256x1xi1>, vector<256x1xi32>
    %c0_i32_23 = arith.constant 0 : i32
    %34 = vector.broadcast %c0_i32_23 : i32 to vector<256x1xi32>
    %35 = arith.cmpi sgt, %33, %34 : vector<256x1xi32>
    %36 = arith.extui %35 : vector<256x1xi1> to vector<256x1xi32>
    %37 = arith.sitofp %36 : vector<256x1xi32> to vector<256x1xf32>
    %c15_i32 = arith.constant 15 : i32
    %38 = vector.broadcast %c15_i32 : i32 to vector<256x1xi32>
    %39 = arith.cmpi slt, %33, %38 : vector<256x1xi32>
    %40 = arith.extui %39 : vector<256x1xi1> to vector<256x1xi32>
    %41 = arith.sitofp %40 : vector<256x1xi32> to vector<256x1xf32>
    %c15 = arith.constant 15 : index
    %c0_24 = arith.constant 0 : index
    %42 = vector.load %arg9[%c15, %c0_24] : memref<288x32xf32, #tpu.memory_space<vmem>>, vector<256x32xf32>
    %43 = vector.broadcast %37 : vector<256x1xf32> to vector<256x32xf32>
    %44 = arith.mulf %42, %43 : vector<256x32xf32>
    %c16_25 = arith.constant 16 : index
    %c0_26 = arith.constant 0 : index
    %45 = vector.load %arg10[%c16_25, %c0_26] : memref<288x32xf32, #tpu.memory_space<vmem>>, vector<256x32xf32>
    tpu.vector_store %arg10[%c16_25, %c0_26], %44 {strides = array<i32>} : memref<288x32xf32, #tpu.memory_space<vmem>>, vector<256x32xf32>,
    %c17 = arith.constant 17 : index
    %c0_27 = arith.constant 0 : index
    %46 = vector.load %arg9[%c17, %c0_27] : memref<288x32xf32, #tpu.memory_space<vmem>>, vector<256x32xf32>
    %47 = vector.broadcast %41 : vector<256x1xf32> to vector<256x32xf32>
    %48 = arith.mulf %46, %47 : vector<256x32xf32>
    %c16_28 = arith.constant 16 : index
    %c0_29 = arith.constant 0 : index
    %49 = vector.load %arg11[%c16_28, %c0_29] : memref<288x32xf32, #tpu.memory_space<vmem>>, vector<256x32xf32>
    tpu.vector_store %arg11[%c16_28, %c0_29], %48 {strides = array<i32>} : memref<288x32xf32, #tpu.memory_space<vmem>>, vector<256x32xf32>,
    %c0_30 = arith.constant 0 : index
    %c0_31 = arith.constant 0 : index
    %50 = vector.load %arg10[%c0_30, %c0_31] : memref<288x32xf32, #tpu.memory_space<vmem>>, vector<256x32xf32>
    %c0_32 = arith.constant 0 : index
    %c0_33 = arith.constant 0 : index
    %c0_34 = arith.constant 0 : index
    %51 = vector.load %arg4[%c0_32, %c0_33, %c0_34] : memref<9x32x32xf32, #tpu.memory_space<vmem>>, vector<1x32x32xf32>
    %52 = vector.shape_cast %51 : vector<1x32x32xf32> to vector<32x32xf32>
    %cst_35 = arith.constant dense<0.000000e+00> : vector<256x32xf32>
    %53 = tpu.matmul %50, %52, %cst_35 {dimension_numbers = #tpu.dot_dimension_numbers<[1], [0], [0], [1], [0, 0, 1, 1], [], []>} : vector<256x32xf32>, vector<32x32xf32>, vector<256x32xf32> -> vector<256x32xf32>
    %c0_36 = arith.constant 0 : index
    %c0_37 = arith.constant 0 : index
    %54 = vector.load %arg9[%c0_36, %c0_37] : memref<288x32xf32, #tpu.memory_space<vmem>>, vector<256x32xf32>
    %c1 = arith.constant 1 : index
    %c0_38 = arith.constant 0 : index
    %c0_39 = arith.constant 0 : index
    %55 = vector.load %arg4[%c1, %c0_38, %c0_39] : memref<9x32x32xf32, #tpu.memory_space<vmem>>, vector<1x32x32xf32>
    %56 = vector.shape_cast %55 : vector<1x32x32xf32> to vector<32x32xf32>
    %cst_40 = arith.constant dense<0.000000e+00> : vector<256x32xf32>
    %57 = tpu.matmul %54, %56, %cst_40 {dimension_numbers = #tpu.dot_dimension_numbers<[1], [0], [0], [1], [0, 0, 1, 1], [], []>} : vector<256x32xf32>, vector<32x32xf32>, vector<256x32xf32> -> vector<256x32xf32>
    %58 = arith.addf %53, %57 : vector<256x32xf32>
    %c0_41 = arith.constant 0 : index
    %c0_42 = arith.constant 0 : index
    %59 = vector.load %arg11[%c0_41, %c0_42] : memref<288x32xf32, #tpu.memory_space<vmem>>, vector<256x32xf32>
    %c2 = arith.constant 2 : index
    %c0_43 = arith.constant 0 : index
    %c0_44 = arith.constant 0 : index
    %60 = vector.load %arg4[%c2, %c0_43, %c0_44] : memref<9x32x32xf32, #tpu.memory_space<vmem>>, vector<1x32x32xf32>
    %61 = vector.shape_cast %60 : vector<1x32x32xf32> to vector<32x32xf32>
    %cst_45 = arith.constant dense<0.000000e+00> : vector<256x32xf32>
    %62 = tpu.matmul %59, %61, %cst_45 {dimension_numbers = #tpu.dot_dimension_numbers<[1], [0], [0], [1], [0, 0, 1, 1], [], []>} : vector<256x32xf32>, vector<32x32xf32>, vector<256x32xf32> -> vector<256x32xf32>
    %63 = arith.addf %58, %62 : vector<256x32xf32>
    %c16_46 = arith.constant 16 : index
    %c0_47 = arith.constant 0 : index
    %64 = vector.load %arg10[%c16_46, %c0_47] : memref<288x32xf32, #tpu.memory_space<vmem>>, vector<256x32xf32>
    %c3 = arith.constant 3 : index
    %c0_48 = arith.constant 0 : index
    %c0_49 = arith.constant 0 : index
    %65 = vector.load %arg4[%c3, %c0_48, %c0_49] : memref<9x32x32xf32, #tpu.memory_space<vmem>>, vector<1x32x32xf32>
    %66 = vector.shape_cast %65 : vector<1x32x32xf32> to vector<32x32xf32>
    %cst_50 = arith.constant dense<0.000000e+00> : vector<256x32xf32>
    %67 = tpu.matmul %64, %66, %cst_50 {dimension_numbers = #tpu.dot_dimension_numbers<[1], [0], [0], [1], [0, 0, 1, 1], [], []>} : vector<256x32xf32>, vector<32x32xf32>, vector<256x32xf32> -> vector<256x32xf32>
    %68 = arith.addf %63, %67 : vector<256x32xf32>
    %c16_51 = arith.constant 16 : index
    %c0_52 = arith.constant 0 : index
    %69 = vector.load %arg9[%c16_51, %c0_52] : memref<288x32xf32, #tpu.memory_space<vmem>>, vector<256x32xf32>
    %c4 = arith.constant 4 : index
    %c0_53 = arith.constant 0 : index
    %c0_54 = arith.constant 0 : index
    %70 = vector.load %arg4[%c4, %c0_53, %c0_54] : memref<9x32x32xf32, #tpu.memory_space<vmem>>, vector<1x32x32xf32>
    %71 = vector.shape_cast %70 : vector<1x32x32xf32> to vector<32x32xf32>
    %cst_55 = arith.constant dense<0.000000e+00> : vector<256x32xf32>
    %72 = tpu.matmul %69, %71, %cst_55 {dimension_numbers = #tpu.dot_dimension_numbers<[1], [0], [0], [1], [0, 0, 1, 1], [], []>} : vector<256x32xf32>, vector<32x32xf32>, vector<256x32xf32> -> vector<256x32xf32>
    %73 = arith.addf %68, %72 : vector<256x32xf32>
    %c16_56 = arith.constant 16 : index
    %c0_57 = arith.constant 0 : index
    %74 = vector.load %arg11[%c16_56, %c0_57] : memref<288x32xf32, #tpu.memory_space<vmem>>, vector<256x32xf32>
    %c5 = arith.constant 5 : index
    %c0_58 = arith.constant 0 : index
    %c0_59 = arith.constant 0 : index
    %75 = vector.load %arg4[%c5, %c0_58, %c0_59] : memref<9x32x32xf32, #tpu.memory_space<vmem>>, vector<1x32x32xf32>
    %76 = vector.shape_cast %75 : vector<1x32x32xf32> to vector<32x32xf32>
    %cst_60 = arith.constant dense<0.000000e+00> : vector<256x32xf32>
    %77 = tpu.matmul %74, %76, %cst_60 {dimension_numbers = #tpu.dot_dimension_numbers<[1], [0], [0], [1], [0, 0, 1, 1], [], []>} : vector<256x32xf32>, vector<32x32xf32>, vector<256x32xf32> -> vector<256x32xf32>
    %78 = arith.addf %73, %77 : vector<256x32xf32>
    %c32 = arith.constant 32 : index
    %c0_61 = arith.constant 0 : index
    %79 = vector.load %arg10[%c32, %c0_61] : memref<288x32xf32, #tpu.memory_space<vmem>>, vector<256x32xf32>
    %c6 = arith.constant 6 : index
    %c0_62 = arith.constant 0 : index
    %c0_63 = arith.constant 0 : index
    %80 = vector.load %arg4[%c6, %c0_62, %c0_63] : memref<9x32x32xf32, #tpu.memory_space<vmem>>, vector<1x32x32xf32>
    %81 = vector.shape_cast %80 : vector<1x32x32xf32> to vector<32x32xf32>
    %cst_64 = arith.constant dense<0.000000e+00> : vector<256x32xf32>
    %82 = tpu.matmul %79, %81, %cst_64 {dimension_numbers = #tpu.dot_dimension_numbers<[1], [0], [0], [1], [0, 0, 1, 1], [], []>} : vector<256x32xf32>, vector<32x32xf32>, vector<256x32xf32> -> vector<256x32xf32>
    %83 = arith.addf %78, %82 : vector<256x32xf32>
    %c32_65 = arith.constant 32 : index
    %c0_66 = arith.constant 0 : index
    %84 = vector.load %arg9[%c32_65, %c0_66] : memref<288x32xf32, #tpu.memory_space<vmem>>, vector<256x32xf32>
    %c7 = arith.constant 7 : index
    %c0_67 = arith.constant 0 : index
    %c0_68 = arith.constant 0 : index
    %85 = vector.load %arg4[%c7, %c0_67, %c0_68] : memref<9x32x32xf32, #tpu.memory_space<vmem>>, vector<1x32x32xf32>
    %86 = vector.shape_cast %85 : vector<1x32x32xf32> to vector<32x32xf32>
    %cst_69 = arith.constant dense<0.000000e+00> : vector<256x32xf32>
    %87 = tpu.matmul %84, %86, %cst_69 {dimension_numbers = #tpu.dot_dimension_numbers<[1], [0], [0], [1], [0, 0, 1, 1], [], []>} : vector<256x32xf32>, vector<32x32xf32>, vector<256x32xf32> -> vector<256x32xf32>
    %88 = arith.addf %83, %87 : vector<256x32xf32>
    %c32_70 = arith.constant 32 : index
    %c0_71 = arith.constant 0 : index
    %89 = vector.load %arg11[%c32_70, %c0_71] : memref<288x32xf32, #tpu.memory_space<vmem>>, vector<256x32xf32>
    %c8 = arith.constant 8 : index
    %c0_72 = arith.constant 0 : index
    %c0_73 = arith.constant 0 : index
    %90 = vector.load %arg4[%c8, %c0_72, %c0_73] : memref<9x32x32xf32, #tpu.memory_space<vmem>>, vector<1x32x32xf32>
    %91 = vector.shape_cast %90 : vector<1x32x32xf32> to vector<32x32xf32>
    %cst_74 = arith.constant dense<0.000000e+00> : vector<256x32xf32>
    %92 = tpu.matmul %89, %91, %cst_74 {dimension_numbers = #tpu.dot_dimension_numbers<[1], [0], [0], [1], [0, 0, 1, 1], [], []>} : vector<256x32xf32>, vector<32x32xf32>, vector<256x32xf32> -> vector<256x32xf32>
    %93 = arith.addf %88, %92 : vector<256x32xf32>
    %c0_75 = arith.constant 0 : index
    %c0_76 = arith.constant 0 : index
    %94 = vector.load %arg5[%c0_75, %c0_76] : memref<1x32xf32, #tpu.memory_space<vmem>>, vector<1x32xf32>
    %95 = vector.broadcast %94 : vector<1x32xf32> to vector<256x32xf32>
    %96 = arith.addf %93, %95 : vector<256x32xf32>
    %cst_77 = arith.constant 0.000000e+00 : f32
    %97 = vector.broadcast %cst_77 : f32 to vector<256x32xf32>
    %98 = arith.maximumf %96, %97 : vector<256x32xf32>
    %c0_78 = arith.constant 0 : index
    %c0_79 = arith.constant 0 : index
    %99 = vector.load %arg6[%c0_78, %c0_79] : memref<32x128xf32, #tpu.memory_space<vmem>>, vector<32x128xf32>
    %cst_80 = arith.constant dense<0.000000e+00> : vector<256x128xf32>
    %100 = tpu.matmul %98, %99, %cst_80 {dimension_numbers = #tpu.dot_dimension_numbers<[1], [0], [0], [1], [0, 0, 1, 1], [], []>} : vector<256x32xf32>, vector<32x128xf32>, vector<256x128xf32> -> vector<256x128xf32>
    %c0_81 = arith.constant 0 : index
    %c0_82 = arith.constant 0 : index
    %101 = vector.load %arg7[%c0_81, %c0_82] : memref<1x128xf32, #tpu.memory_space<vmem>>, vector<1x128xf32>
    %102 = vector.broadcast %101 : vector<1x128xf32> to vector<256x128xf32>
    %103 = arith.addf %100, %102 : vector<256x128xf32>
    %c0_83 = arith.constant 0 : index
    %c0_84 = arith.constant 0 : index
    %c0_85 = arith.constant 0 : index
    %104 = vector.load %arg1[%c0_83, %c0_84, %c0_85] : memref<1x256x128xf32, #tpu.memory_space<vmem>>, vector<1x256x128xf32>
    %105 = vector.shape_cast %104 : vector<1x256x128xf32> to vector<256x128xf32>
    %106 = arith.addf %103, %105 : vector<256x128xf32>
    %cst_86 = arith.constant 0.000000e+00 : f32
    %107 = vector.broadcast %cst_86 : f32 to vector<256x128xf32>
    %108 = arith.maximumf %106, %107 : vector<256x128xf32>
    %c0_87 = arith.constant 0 : index
    %c0_88 = arith.constant 0 : index
    %c0_89 = arith.constant 0 : index
    %109 = vector.load %arg8[%c0_87, %c0_88, %c0_89] : memref<1x256x128xf32, #tpu.memory_space<vmem>>, vector<1x256x128xf32>
    %110 = vector.shape_cast %109 : vector<1x256x128xf32> to vector<256x128xf32>
    %111 = vector.shape_cast %108 : vector<256x128xf32> to vector<1x256x128xf32>
    tpu.vector_store %arg8[%c0_87, %c0_88, %c0_89], %111 {strides = array<i32>} : memref<1x256x128xf32, #tpu.memory_space<vmem>>, vector<1x256x128xf32>,
    return
  }
  func.func @transform_0(%arg0: i32) -> (i32, i32, i32) {
    %c0_i32 = arith.constant 0 : i32
    %c0_i32_0 = arith.constant 0 : i32
    %c0_i32_1 = arith.constant 0 : i32
    return %arg0, %c0_i32, %c0_i32_0 : i32, i32, i32
  }
  func.func @transform_1(%arg0: i32) -> (i32, i32) {
    %c0_i32 = arith.constant 0 : i32
    %c0_i32_0 = arith.constant 0 : i32
    %c0_i32_1 = arith.constant 0 : i32
    return %c0_i32, %c0_i32_0 : i32, i32
  }
  func.func @transform_2(%arg0: i32) -> (i32, i32) {
    %c0_i32 = arith.constant 0 : i32
    %c0_i32_0 = arith.constant 0 : i32
    %c0_i32_1 = arith.constant 0 : i32
    return %c0_i32, %c0_i32_0 : i32, i32
  }
  func.func @transform_3(%arg0: i32) -> (i32, i32, i32) {
    %c0_i32 = arith.constant 0 : i32
    %c0_i32_0 = arith.constant 0 : i32
    %c0_i32_1 = arith.constant 0 : i32
    %c0_i32_2 = arith.constant 0 : i32
    return %c0_i32, %c0_i32_0, %c0_i32_1 : i32, i32, i32
  }
  func.func @transform_4(%arg0: i32) -> (i32, i32) {
    %c0_i32 = arith.constant 0 : i32
    %c0_i32_0 = arith.constant 0 : i32
    %c0_i32_1 = arith.constant 0 : i32
    return %c0_i32, %c0_i32_0 : i32, i32
  }
  func.func @transform_5(%arg0: i32) -> (i32, i32) {
    %c0_i32 = arith.constant 0 : i32
    %c0_i32_0 = arith.constant 0 : i32
    %c0_i32_1 = arith.constant 0 : i32
    return %c0_i32, %c0_i32_0 : i32, i32
  }
  func.func @transform_6(%arg0: i32) -> (i32, i32) {
    %c0_i32 = arith.constant 0 : i32
    %c0_i32_0 = arith.constant 0 : i32
    %c0_i32_1 = arith.constant 0 : i32
    return %c0_i32, %c0_i32_0 : i32, i32
  }
  func.func @transform_7(%arg0: i32) -> (i32, i32, i32) {
    %c0_i32 = arith.constant 0 : i32
    %c0_i32_0 = arith.constant 0 : i32
    %c0_i32_1 = arith.constant 0 : i32
    return %arg0, %c0_i32, %c0_i32_0 : i32, i32, i32
  }
}

</mosaic_0001>

<llo_original>
// kernel: tpu_custom_call.1
$region0: #{tpu_custom_call.1}
  #allocation0 [shape = 'u32[]', space=smem, size = 0x4, offset = 0x4, fixed_abs, tag = 'smem constant byte address 0x4 - core index']
  #allocation1 [shape = 'u32[144,128]{1,0:T(1,128)}', space=vmem, size = 0x12000, scoped, tag = 'internal scratch']
  #allocation2 [shape = 'f32[288,32]{1,0:T(8,128)}', space=vmem, size = 0x24000, scoped, tag = 'scratch operand']
  #allocation3 [shape = 'f32[288,32]{1,0:T(8,128)}', space=vmem, size = 0x24000, scoped, tag = 'scratch operand']
  #allocation4 [shape = 'f32[288,32]{1,0:T(8,128)}', space=vmem, size = 0x24000, scoped, tag = 'scratch operand']
  %s0 = inlined_call_operand.hbm [shape: f32[2,256,128], index: 0, kind: input, shape index: {}]
  %s1 = inlined_call_operand.vmem [shape: f32[128,32], index: 1, kind: input, shape index: {}]
  %s2 = inlined_call_operand.vmem [shape: f32[1,32], index: 2, kind: input, shape index: {}]
  %s3 = inlined_call_operand.hbm [shape: f32[9,32,32], index: 3, kind: input, shape index: {}]
  %s4 = inlined_call_operand.vmem [shape: f32[1,32], index: 4, kind: input, shape index: {}]
  %s5 = inlined_call_operand.vmem [shape: f32[32,128], index: 5, kind: input, shape index: {}]
  %s6 = inlined_call_operand.vmem [shape: f32[1,128], index: 6, kind: input, shape index: {}]
  %s7 = inlined_call_operand.hbm [shape: f32[2,256,128], index: 7, kind: output, shape index: {}]
  %s8 = sld [smem:[#allocation0]]
  $region69: #{tpu_custom_call.1} parent=0
    _
  %s10 = ssub.s32 1, %s8
  %s11 = scalar_select 0, %s10, %s8
  $region1: #{tpu_custom_call.1} parent=0
    #allocation5 [shape = 'u8[262144]{0}', space=vmem, size = 0x40000, scoped, tag = 'input window, operand 0']
    #allocation6 [shape = 's32[2]{0}', space=sflag, size = 0x8, scoped, tag = 'scoped memory for tpu_custom_call.1']
    #allocation7 [shape = 's32[2]{0}', space=sflag, size = 0x8, scoped, tag = 'scoped memory for tpu_custom_call.1']
    #allocation8 [shape = 'u8[147456]{0}', space=vmem, size = 0x24000, scoped, tag = 'input window, operand 3, single buffered']
    #allocation9 [shape = 's32[1]{0}', space=sflag, size = 0x4, scoped, tag = 'scoped memory for tpu_custom_call.1']
    #allocation10 [shape = 'u8[262144]{0}', space=vmem, size = 0x40000, scoped, tag = 'output window, operand 0']
    %12 = vsyncpa [#allocation6], 0
    %s13 = scalar_lea.sflag [#allocation6], 1
    %14 = vsyncpa %s13, 0
    %15 = vsyncpa [#allocation9], 0
    %16 = vsyncpa [#allocation7], 0
    %s17 = scalar_lea.sflag [#allocation7], 1
    %18 = vsyncpa %s17, 0
    loop: start=0, step=1, limit=4
    $region2: #{tpu_custom_call.1} parent=1 // loop_pre_header
      _
    $region3: #{tpu_custom_call.1} parent=1 // loop_header
      %s20 = sphi 0, %s24
      %p21 = scmp.ge.s32.totalorder %s20, 4
      %s30 = sphi 0, %s32
      %s33 = sphi 0, %s30
      %s34 = sphi 0, %s33
      %s50 = sphi 0, %s34
      %s54 = sphi 0, %s54
      %s56 = sphi 0, %s54
      %s57 = sphi 0, %s56
      %s71 = sphi 0, %s57
      %s75 = sphi 0, %s75
      %s77 = sphi 0, %s75
      %s78 = sphi 0, %s77
      %s92 = sphi 0, %s78
      %s96 = sphi 0, %s96
      %s98 = sphi 0, %s96
      %s99 = sphi 0, %s98
      %s113 = sphi 0, %s99
      %s117 = sphi 0, %s117
      %s119 = sphi 0, %s117
      %s120 = sphi 0, %s119
      %s134 = sphi 0, %s120
      %s138 = sphi 0, %s138
      %s140 = sphi 0, %s138
      %s141 = sphi 0, %s140
      %s155 = sphi 0, %s141
      %s159 = sphi 0, %s159
      %s161 = sphi 0, %s159
      %s162 = sphi 0, %s161
      %s176 = sphi 0, %s162
      %s182 = sphi 0, %s184
      %s185 = sphi 0, %s182
      %s186 = sphi 0, %s185
      %s202 = sphi 0, %s186
    $region4: #{tpu_custom_call.1} parent=1 // loop_header_branch
      %23 = sbr.rel (%p21) target = $region8
    $region5: #{tpu_custom_call.1} parent=1 // loop_body
      %s25 = ssub.s32 %s20, 1
      %s26 = ssub.s32 %s20, 2
      %s27 = sadd.s32 %s20, 1
      %s28 = ssub.s32 %s20, %s27
      %p29 = scmp.eq.s32.totalorder %s28, 0
      %s31 = sadd.s32 %s30, 1
      %s32 = scalar_select %p29, %s30, %s31
      %p35 = pneg %p29
      %p36 = scmp.eq.s32.totalorder %s20, 1
      %p37 = por %p35, %p36
      %p38 = scmp.ne.s32.totalorder %s30, %s33
      %p39 = scmp.eq.s32.totalorder %s20, 0
      %p40 = por %p38, %p39
      %p41 = scmp.ne.s32.totalorder %s30, %s33
      %p42 = scmp.eq.s32.totalorder %s25, 1
      %p43 = por %p41, %p42
      %p44 = scmp.ne.s32.totalorder %s33, %s34
      %p45 = scmp.eq.s32.totalorder %s25, 0
      %p46 = por %p44, %p45
      %p47 = scmp.ne.s32.totalorder %s33, %s34
      %p48 = scmp.eq.s32.totalorder %s26, 1
      %p49 = por %p47, %p48
      %p51 = scmp.ne.s32.totalorder %s34, %s50
      %p52 = scmp.eq.s32.totalorder %s26, 0
      %p53 = por %p51, %p52
      %s55 = sadd.s32 %s54, 1
      %p58 = scmp.eq.s32.totalorder %s20, 1
      %p59 = scmp.ne.s32.totalorder %s54, %s56
      %p60 = scmp.eq.s32.totalorder %s20, 0
      %p61 = por %p59, %p60
      %p62 = scmp.ne.s32.totalorder %s54, %s56
      %p63 = scmp.eq.s32.totalorder %s25, 1
      %p64 = por %p62, %p63
      %p65 = scmp.ne.s32.totalorder %s56, %s57
      %p66 = scmp.eq.s32.totalorder %s25, 0
      %p67 = por %p65, %p66
      %p68 = scmp.ne.s32.totalorder %s56, %s57
      %p69 = scmp.eq.s32.totalorder %s26, 1
      %p70 = por %p68, %p69
      %p72 = scmp.ne.s32.totalorder %s57, %s71
      %p73 = scmp.eq.s32.totalorder %s26, 0
      %p74 = por %p72, %p73
      %s76 = sadd.s32 %s75, 1
      %p79 = scmp.eq.s32.totalorder %s20, 1
      %p80 = scmp.ne.s32.totalorder %s75, %s77
      %p81 = scmp.eq.s32.totalorder %s20, 0
      %p82 = por %p80, %p81
      %p83 = scmp.ne.s32.totalorder %s75, %s77
      %p84 = scmp.eq.s32.totalorder %s25, 1
      %p85 = por %p83, %p84
      %p86 = scmp.ne.s32.totalorder %s77, %s78
      %p87 = scmp.eq.s32.totalorder %s25, 0
      %p88 = por %p86, %p87
      %p89 = scmp.ne.s32.totalorder %s77, %s78
      %p90 = scmp.eq.s32.totalorder %s26, 1
      %p91 = por %p89, %p90
      %p93 = scmp.ne.s32.totalorder %s78, %s92
      %p94 = scmp.eq.s32.totalorder %s26, 0
      %p95 = por %p93, %p94
      %s97 = sadd.s32 %s96, 1
      %p100 = scmp.eq.s32.totalorder %s20, 1
      %p101 = scmp.ne.s32.totalorder %s96, %s98
      %p102 = scmp.eq.s32.totalorder %s20, 0
      %p103 = por %p101, %p102
      %p104 = scmp.ne.s32.totalorder %s96, %s98
      %p105 = scmp.eq.s32.totalorder %s25, 1
      %p106 = por %p104, %p105
      %p107 = scmp.ne.s32.totalorder %s98, %s99
      %p108 = scmp.eq.s32.totalorder %s25, 0
      %p109 = por %p107, %p108
      %p110 = scmp.ne.s32.totalorder %s98, %s99
      %p111 = scmp.eq.s32.totalorder %s26, 1
      %p112 = por %p110, %p111
      %p114 = scmp.ne.s32.totalorder %s99, %s113
      %p115 = scmp.eq.s32.totalorder %s26, 0
      %p116 = por %p114, %p115
      %s118 = sadd.s32 %s117, 1
      %p121 = scmp.eq.s32.totalorder %s20, 1
      %p122 = scmp.ne.s32.totalorder %s117, %s119
      %p123 = scmp.eq.s32.totalorder %s20, 0
      %p124 = por %p122, %p123
      %p125 = scmp.ne.s32.totalorder %s117, %s119
      %p126 = scmp.eq.s32.totalorder %s25, 1
      %p127 = por %p125, %p126
      %p128 = scmp.ne.s32.totalorder %s119, %s120
      %p129 = scmp.eq.s32.totalorder %s25, 0
      %p130 = por %p128, %p129
      %p131 = scmp.ne.s32.totalorder %s119, %s120
      %p132 = scmp.eq.s32.totalorder %s26, 1
      %p133 = por %p131, %p132
      %p135 = scmp.ne.s32.totalorder %s120, %s134
      %p136 = scmp.eq.s32.totalorder %s26, 0
      %p137 = por %p135, %p136
      %s139 = sadd.s32 %s138, 1
      %p142 = scmp.eq.s32.totalorder %s20, 1
      %p143 = scmp.ne.s32.totalorder %s138, %s140
      %p144 = scmp.eq.s32.totalorder %s20, 0
      %p145 = por %p143, %p144
      %p146 = scmp.ne.s32.totalorder %s138, %s140
      %p147 = scmp.eq.s32.totalorder %s25, 1
      %p148 = por %p146, %p147
      %p149 = scmp.ne.s32.totalorder %s140, %s141
      %p150 = scmp.eq.s32.totalorder %s25, 0
      %p151 = por %p149, %p150
      %p152 = scmp.ne.s32.totalorder %s140, %s141
      %p153 = scmp.eq.s32.totalorder %s26, 1
      %p154 = por %p152, %p153
      %p156 = scmp.ne.s32.totalorder %s141, %s155
      %p157 = scmp.eq.s32.totalorder %s26, 0
      %p158 = por %p156, %p157
      %s160 = sadd.s32 %s159, 1
      %p163 = scmp.eq.s32.totalorder %s20, 1
      %p164 = scmp.ne.s32.totalorder %s159, %s161
      %p165 = scmp.eq.s32.totalorder %s20, 0
      %p166 = por %p164, %p165
      %p167 = scmp.ne.s32.totalorder %s159, %s161
      %p168 = scmp.eq.s32.totalorder %s25, 1
      %p169 = por %p167, %p168
      %p170 = scmp.ne.s32.totalorder %s161, %s162
      %p171 = scmp.eq.s32.totalorder %s25, 0
      %p172 = por %p170, %p171
      %p173 = scmp.ne.s32.totalorder %s161, %s162
      %p174 = scmp.eq.s32.totalorder %s26, 1
      %p175 = por %p173, %p174
      %p177 = scmp.ne.s32.totalorder %s162, %s176
      %p178 = scmp.eq.s32.totalorder %s26, 0
      %p179 = por %p177, %p178
      %s180 = ssub.s32 %s20, %s27
      %p181 = scmp.eq.s32.totalorder %s180, 0
      %s183 = sadd.s32 %s182, 1
      %s184 = scalar_select %p181, %s182, %s183
      %p187 = pneg %p181
      %p188 = scmp.eq.s32.totalorder %s20, 1
      %p189 = por %p187, %p188
      %p190 = scmp.ne.s32.totalorder %s182, %s185
      %p191 = scmp.eq.s32.totalorder %s20, 0
      %p192 = por %p190, %p191
      %p193 = scmp.ne.s32.totalorder %s182, %s185
      %p194 = scmp.eq.s32.totalorder %s25, 1
      %p195 = por %p193, %p194
      %p196 = scmp.ne.s32.totalorder %s185, %s186
      %p197 = scmp.eq.s32.totalorder %s25, 0
      %p198 = por %p196, %p197
      %p199 = scmp.ne.s32.totalorder %s185, %s186
      %p200 = scmp.eq.s32.totalorder %s26, 1
      %p201 = por %p199, %p200
      %p203 = scmp.ne.s32.totalorder %s186, %s202
      %p204 = scmp.eq.s32.totalorder %s26, 0
      %p205 = por %p203, %p204
      %p206 = scmp.le.s32.totalorder 1, %s20
      %p207 = scmp.lt.s32.totalorder %s20, 3
      %p208 = pnand %p206, %p207
      %p209 = pneg %p208
      // Predicated region
      $region9: #{tpu_custom_call.1} parent=5 // pred_check
        _
      $region10: #{tpu_custom_call.1} parent=5 // pred_check_branch
        %211 = sbr.rel (%p208) target = $region12
      $region11: #{tpu_custom_call.1} parent=5 // pred_region
        %s212 = ssub.s32 %s20, 1
        // Predicated region
        $region13: #{tpu_custom_call.1} parent=11 // pred_check
          %p213 = pneg %p67
        $region14: #{tpu_custom_call.1} parent=11 // pred_check_branch
          %215 = sbr.rel (%p213) target = $region16
        $region15: #{tpu_custom_call.1} parent=11 // pred_region
          _
        $region16: #{tpu_custom_call.1} parent=11 // pred_fallthru
          _
        // Predicated region
        $region17: #{tpu_custom_call.1} parent=11 // pred_check
          %p216 = pneg %p88
        $region18: #{tpu_custom_call.1} parent=11 // pred_check_branch
          %218 = sbr.rel (%p216) target = $region20
        $region19: #{tpu_custom_call.1} parent=11 // pred_region
          _
        $region20: #{tpu_custom_call.1} parent=11 // pred_fallthru
          _
        // Predicated region
        $region21: #{tpu_custom_call.1} parent=11 // pred_check
          %p219 = pneg %p109
        $region22: #{tpu_custom_call.1} parent=11 // pred_check_branch
          %221 = sbr.rel (%p219) target = $region24
        $region23: #{tpu_custom_call.1} parent=11 // pred_region
          %s223 = ssub.s32 4608, 4608
          %224 = vsyncadd [#allocation9], %s223
          %s225 = sshll.u32 [#allocation8], 4
          %s226 = int_to_ptr.vmem [resolvable:$true] %s225
          %231 = dma.hbm_to_vmem [thread:$0]  %s3, 4608, %s226, [#allocation9], 128, 128, 8
        $region24: #{tpu_custom_call.1} parent=11 // pred_fallthru
          _
        // Predicated region
        $region25: #{tpu_custom_call.1} parent=11 // pred_check
          %p232 = pneg %p130
        $region26: #{tpu_custom_call.1} parent=11 // pred_check_branch
          %234 = sbr.rel (%p232) target = $region28
        $region27: #{tpu_custom_call.1} parent=11 // pred_region
          _
        $region28: #{tpu_custom_call.1} parent=11 // pred_fallthru
          _
        // Predicated region
        $region29: #{tpu_custom_call.1} parent=11 // pred_check
          %p235 = pneg %p151
        $region30: #{tpu_custom_call.1} parent=11 // pred_check_branch
          %237 = sbr.rel (%p235) target = $region32
        $region31: #{tpu_custom_call.1} parent=11 // pred_region
          _
        $region32: #{tpu_custom_call.1} parent=11 // pred_fallthru
          _
        // Predicated region
        $region33: #{tpu_custom_call.1} parent=11 // pred_check
          %p238 = pneg %p172
        $region34: #{tpu_custom_call.1} parent=11 // pred_check_branch
          %240 = sbr.rel (%p238) target = $region36
        $region35: #{tpu_custom_call.1} parent=11 // pred_region
          _
        $region36: #{tpu_custom_call.1} parent=11 // pred_fallthru
          _
      $region12: #{tpu_custom_call.1} parent=5 // pred_fallthru
        _
      %p241 = scmp.lt.s32.totalorder %s20, 2
      // Predicated region
      $region37: #{tpu_custom_call.1} parent=5 // pred_check
        %p242 = pneg %p241
      $region38: #{tpu_custom_call.1} parent=5 // pred_check_branch
        %244 = sbr.rel (%p242) target = $region40
      $region39: #{tpu_custom_call.1} parent=5 // pred_region
        // Predicated region
        $region41: #{tpu_custom_call.1} parent=39 // pred_check
          %p245 = pneg %p40
        $region42: #{tpu_custom_call.1} parent=39 // pred_check_branch
          %247 = sbr.rel (%p245) target = $region44
        $region43: #{tpu_custom_call.1} parent=39 // pred_region
          %s248 = sand.u32 %s30, 1
          %s249 = scalar_lea.sflag [#allocation6], %s248
          %s250 = sand.u32 %s30, 1
          %s251 = smul.addr %s250, 256
          %s252 = scalar_lea.vmem [#allocation5], %s251
          %s254 = ssub.s32 4096, 4096
          %255 = vsyncadd %s249, %s254
          %s256 = smul.addr %s20, 32
          %s257 = smul.addr %s256, 128
          %s258 = scalar_lea.hbm %s0, %s257
          %s259 = sshll.u32 %s252, 4
          %s260 = int_to_ptr.vmem [resolvable:$true] %s259
          %265 = dma.hbm_to_vmem [thread:$0]  %s258, 4096, %s260, %s249, 128, 128, 8
        $region44: #{tpu_custom_call.1} parent=39 // pred_fallthru
          _
      $region40: #{tpu_custom_call.1} parent=5 // pred_fallthru
        _
      %p266 = scmp.le.s32.totalorder 1, %s20
      %p267 = scmp.lt.s32.totalorder %s20, 3
      %p268 = pnand %p266, %p267
      %p269 = pneg %p268
      // Predicated region
      $region45: #{tpu_custom_call.1} parent=5 // pred_check
        _
      $region46: #{tpu_custom_call.1} parent=5 // pred_check_branch
        %271 = sbr.rel (%p268) target = $region48
      $region47: #{tpu_custom_call.1} parent=5 // pred_region
        %s272 = ssub.s32 %s20, 1
        %s273 = sand.u32 %s33, 1
        %s274 = scalar_lea.sflag [#allocation6], %s273
        %s275 = sand.u32 %s33, 1
        %s276 = smul.addr %s275, 256
        %s277 = scalar_lea.vmem [#allocation5], %s276
        // Predicated region
        $region49: #{tpu_custom_call.1} parent=47 // pred_check
          %p278 = pneg %p46
        $region50: #{tpu_custom_call.1} parent=47 // pred_check_branch
          %280 = sbr.rel (%p278) target = $region52
        $region51: #{tpu_custom_call.1} parent=47 // pred_region
          %281 = dma.done %s274, 4096
        $region52: #{tpu_custom_call.1} parent=47 // pred_fallthru
          _
        // Predicated region
        $region53: #{tpu_custom_call.1} parent=47 // pred_check
          %p282 = pneg %p109
        $region54: #{tpu_custom_call.1} parent=47 // pred_check_branch
          %284 = sbr.rel (%p282) target = $region56
        $region55: #{tpu_custom_call.1} parent=47 // pred_region
          %285 = dma.done [#allocation9], 4608
        $region56: #{tpu_custom_call.1} parent=47 // pred_fallthru
          _
        %s286 = sand.u32 %s33, 1
        %s287 = scalar_lea.sflag [#allocation6], %s286
        %s288 = sand.u32 %s33, 1
        %s289 = smul.addr %s288, 256
        %s290 = scalar_lea.vmem [#allocation5], %s289
        %p291 = pneg %p46
        %p292 = pneg %p43
        %p293 = pneg %p67
        %p294 = pneg %p64
        %p295 = pneg %p88
        %p296 = pneg %p85
        %p297 = pneg %p109
        %p298 = pneg %p106
        %p299 = pneg %p130
        %p300 = pneg %p127
        %p301 = pneg %p151
        %p302 = pneg %p148
        %p303 = pneg %p172
        %p304 = pneg %p169
        %p305 = pneg %p198
        %p306 = pneg %p195
        %s307 = sand.u32 %s185, 1
        %s308 = scalar_lea.sflag [#allocation7], %s307
        %s309 = sand.u32 %s185, 1
        %s310 = smul.addr %s309, 256
        %s311 = scalar_lea.vmem [#allocation10], %s310
        %v312 = vld [vmem:[%s277] sm:$0xff]
        %v313 = vld [vmem:[%s277 + $0x8] sm:$0xff]
        %v314 = vld [vmem:[%s277 + $0x10] sm:$0xff]
        %v315 = vld [vmem:[%s277 + $0x18] sm:$0xff]
        %v316 = vld [vmem:[%s277 + $0x20] sm:$0xff]
        %v317 = vld [vmem:[%s277 + $0x28] sm:$0xff]
        %v318 = vld [vmem:[%s277 + $0x30] sm:$0xff]
        %v319 = vld [vmem:[%s277 + $0x38] sm:$0xff]
        %v320 = vld [vmem:[%s277 + $0x40] sm:$0xff]
        %v321 = vld [vmem:[%s277 + $0x48] sm:$0xff]
        %v322 = vld [vmem:[%s277 + $0x50] sm:$0xff]
        %v323 = vld [vmem:[%s277 + $0x58] sm:$0xff]
        %v324 = vld [vmem:[%s277 + $0x60] sm:$0xff]
        %v325 = vld [vmem:[%s277 + $0x68] sm:$0xff]
        %v326 = vld [vmem:[%s277 + $0x70] sm:$0xff]
        %v327 = vld [vmem:[%s277 + $0x78] sm:$0xff]
        %v328 = vld [vmem:[%s277 + $0x80] sm:$0xff]
        %v329 = vld [vmem:[%s277 + $0x88] sm:$0xff]
        %v330 = vld [vmem:[%s277 + $0x90] sm:$0xff]
        %v331 = vld [vmem:[%s277 + $0x98] sm:$0xff]
        %v332 = vld [vmem:[%s277 + $0xa0] sm:$0xff]
        %v333 = vld [vmem:[%s277 + $0xa8] sm:$0xff]
        %v334 = vld [vmem:[%s277 + $0xb0] sm:$0xff]
        %v335 = vld [vmem:[%s277 + $0xb8] sm:$0xff]
        %v336 = vld [vmem:[%s277 + $0xc0] sm:$0xff]
        %v337 = vld [vmem:[%s277 + $0xc8] sm:$0xff]
        %v338 = vld [vmem:[%s277 + $0xd0] sm:$0xff]
        %v339 = vld [vmem:[%s277 + $0xd8] sm:$0xff]
        %v340 = vld [vmem:[%s277 + $0xe0] sm:$0xff]
        %v341 = vld [vmem:[%s277 + $0xe8] sm:$0xff]
        %v342 = vld [vmem:[%s277 + $0xf0] sm:$0xff]
        %v343 = vld [vmem:[%s277 + $0xf8] sm:$0xff]
        %v344 = vld [vmem:[%s1] sm:$0xff]
        %v345 = vld [vmem:[%s1 + $0x8] sm:$0xff]
        %v346 = vld [vmem:[%s1 + $0x10] sm:$0xff]
        %v347 = vld [vmem:[%s1 + $0x18] sm:$0xff]
        %v348 = vld [vmem:[%s1 + $0x20] sm:$0xff]
        %v349 = vld [vmem:[%s1 + $0x28] sm:$0xff]
        %v350 = vld [vmem:[%s1 + $0x30] sm:$0xff]
        %v351 = vld [vmem:[%s1 + $0x38] sm:$0xff]
        %v352 = vld [vmem:[%s1 + $0x40] sm:$0xff]
        %v353 = vld [vmem:[%s1 + $0x48] sm:$0xff]
        %v354 = vld [vmem:[%s1 + $0x50] sm:$0xff]
        %v355 = vld [vmem:[%s1 + $0x58] sm:$0xff]
        %v356 = vld [vmem:[%s1 + $0x60] sm:$0xff]
        %v357 = vld [vmem:[%s1 + $0x68] sm:$0xff]
        %v358 = vld [vmem:[%s1 + $0x70] sm:$0xff]
        %v359 = vld [vmem:[%s1 + $0x78] sm:$0xff]
        %v360 = vld [vmem:[%s2] sm:$0x1]
        %v362 = vlaneseq
        %v363 = vshrl.u32 %v362, 7
        %v364 = vsub.s32 0, %v363
        %v365 = vrot.slane %v360, %v364
        %367 = vmatprep.subr.mxu0 0.0
        %368 = vmatpush1.msra.mxu0 %v344
        %369 = vmatprep.subr.mxu0 0.0
        %370 = vmatpush1.msra.mxu0 %v345
        %371 = vmatprep.subr.mxu0 0.0
        %372 = vmatpush1.msra.mxu0 %v346
        %373 = vmatprep.subr.mxu0 0.0
        %374 = vmatpush1.msra.mxu0 %v347
        %375 = vmatprep.subr.mxu0 0.0
        %376 = vmatpush1.msra.mxu0 %v348
        %377 = vmatprep.subr.mxu0 0.0
        %378 = vmatpush1.msra.mxu0 %v349
        %379 = vmatprep.subr.mxu0 0.0
        %380 = vmatpush1.msra.mxu0 %v350
        %381 = vmatprep.subr.mxu0 0.0
        %382 = vmatpush1.msra.mxu0 %v351
        %383 = vmatprep.subr.mxu0 0.0
        %384 = vmatpush1.msra.mxu0 %v352
        %385 = vmatprep.subr.mxu0 0.0
        %386 = vmatpush1.msra.mxu0 %v353
        %387 = vmatprep.subr.mxu0 0.0
        %388 = vmatpush1.msra.mxu0 %v354
        %389 = vmatprep.subr.mxu0 0.0
        %390 = vmatpush1.msra.mxu0 %v355
        %391 = vmatprep.subr.mxu0 0.0
        %392 = vmatpush1.msra.mxu0 %v356
        %393 = vmatprep.subr.mxu0 0.0
        %394 = vmatpush1.msra.mxu0 %v357
        %395 = vmatprep.subr.mxu0 0.0
        %396 = vmatpush1.msra.mxu0 %v358
        %397 = vmatprep.subr.mxu0 0.0
        %398 = vmatpush1.msra.mxu0 %v359
        %399 = vmatprep.subr.mxu0 0.0
        %400 = vmatpush1.msra.mxu0 0.0
        %401 = vmatprep.subr.mxu0 0.0
        %402 = vmatpush1.msra.mxu0 0.0
        %403 = vmatprep.subr.mxu0 0.0
        %404 = vmatpush1.msra.mxu0 0.0
        %405 = vmatprep.subr.mxu0 0.0
        %406 = vmatpush1.msra.mxu0 0.0
        %407 = vmatprep.subr.mxu0 0.0
        %408 = vmatpush1.msra.mxu0 0.0
        %409 = vmatprep.subr.mxu0 0.0
        %410 = vmatpush1.msra.mxu0 0.0
        %411 = vmatprep.subr.mxu0 0.0
        %412 = vmatpush1.msra.mxu0 0.0
        %413 = vmatprep.subr.mxu0 0.0
        %414 = vmatpush1.msra.mxu0 0.0
        %415 = vmatprep.subr.mxu0 0.0
        %416 = vmatpush1.msra.mxu0 0.0
        %417 = vmatprep.subr.mxu0 0.0
        %418 = vmatpush1.msra.mxu0 0.0
        %419 = vmatprep.subr.mxu0 0.0
        %420 = vmatpush1.msra.mxu0 0.0
        %421 = vmatprep.subr.mxu0 0.0
        %422 = vmatpush1.msra.mxu0 0.0
        %423 = vmatprep.subr.mxu0 0.0
        %424 = vmatpush1.msra.mxu0 0.0
        %425 = vmatprep.subr.mxu0 0.0
        %426 = vmatpush1.msra.mxu0 0.0
        %427 = vmatprep.subr.mxu0 0.0
        %428 = vmatpush1.msra.mxu0 0.0
        %429 = vmatprep.subr.mxu0 0.0
        %430 = vmatpush1.msra.mxu0 0.0
        %431 = vmatprep.mubr.f32.mxu0 0.0
        %432 = vmatmul.mubr.f32.gmra.mrb[0].mxu0 %v312
        %v433 = vpop.f32.mrb[0].mxu0
        %v434 = vadd.f32 %v365, %v433
        %v435 = vpop.f32.mrb[0].mxu0
        %436 = vmatprep.mubr.f32.mxu0 0.0
        %437 = vmatmul.mubr.f32.gmra.mrb[0].mxu0 %v313
        %v438 = vpop.f32.mrb[0].mxu0
        %v439 = vadd.f32 %v365, %v438
        %v440 = vpop.f32.mrb[0].mxu0
        %441 = vmatprep.mubr.f32.mxu0 0.0
        %442 = vmatmul.mubr.f32.gmra.mrb[0].mxu0 %v314
        %v443 = vpop.f32.mrb[0].mxu0
        %v444 = vadd.f32 %v365, %v443
        %v445 = vpop.f32.mrb[0].mxu0
        %446 = vmatprep.mubr.f32.mxu0 0.0
        %447 = vmatmul.mubr.f32.gmra.mrb[0].mxu0 %v315
        %v448 = vpop.f32.mrb[0].mxu0
        %v449 = vadd.f32 %v365, %v448
        %v450 = vpop.f32.mrb[0].mxu0
        %451 = vmatprep.mubr.f32.mxu0 0.0
        %452 = vmatmul.mubr.f32.gmra.mrb[0].mxu0 %v316
        %v453 = vpop.f32.mrb[0].mxu0
        %v454 = vadd.f32 %v365, %v453
        %v455 = vpop.f32.mrb[0].mxu0
        %456 = vmatprep.mubr.f32.mxu0 0.0
        %457 = vmatmul.mubr.f32.gmra.mrb[0].mxu0 %v317
        %v458 = vpop.f32.mrb[0].mxu0
        %v459 = vadd.f32 %v365, %v458
        %v460 = vpop.f32.mrb[0].mxu0
        %461 = vmatprep.mubr.f32.mxu0 0.0
        %462 = vmatmul.mubr.f32.gmra.mrb[0].mxu0 %v318
        %v463 = vpop.f32.mrb[0].mxu0
        %v464 = vadd.f32 %v365, %v463
        %v465 = vpop.f32.mrb[0].mxu0
        %466 = vmatprep.mubr.f32.mxu0 0.0
        %467 = vmatmul.mubr.f32.gmra.mrb[0].mxu0 %v319
        %v468 = vpop.f32.mrb[0].mxu0
        %v469 = vadd.f32 %v365, %v468
        %v470 = vpop.f32.mrb[0].mxu0
        %471 = vmatprep.mubr.f32.mxu0 0.0
        %472 = vmatmul.mubr.f32.gmra.mrb[0].mxu0 %v320
        %v473 = vpop.f32.mrb[0].mxu0
        %v474 = vadd.f32 %v365, %v473
        %v475 = vpop.f32.mrb[0].mxu0
        %476 = vmatprep.mubr.f32.mxu0 0.0
        %477 = vmatmul.mubr.f32.gmra.mrb[0].mxu0 %v321
        %v478 = vpop.f32.mrb[0].mxu0
        %v479 = vadd.f32 %v365, %v478
        %v480 = vpop.f32.mrb[0].mxu0
        %481 = vmatprep.mubr.f32.mxu0 0.0
        %482 = vmatmul.mubr.f32.gmra.mrb[0].mxu0 %v322
        %v483 = vpop.f32.mrb[0].mxu0
        %v484 = vadd.f32 %v365, %v483
        %v485 = vpop.f32.mrb[0].mxu0
        %486 = vmatprep.mubr.f32.mxu0 0.0
        %487 = vmatmul.mubr.f32.gmra.mrb[0].mxu0 %v323
        %v488 = vpop.f32.mrb[0].mxu0
        %v489 = vadd.f32 %v365, %v488
        %v490 = vpop.f32.mrb[0].mxu0
        %491 = vmatprep.mubr.f32.mxu0 0.0
        %492 = vmatmul.mubr.f32.gmra.mrb[0].mxu0 %v324
        %v493 = vpop.f32.mrb[0].mxu0
        %v494 = vadd.f32 %v365, %v493
        %v495 = vpop.f32.mrb[0].mxu0
        %496 = vmatprep.mubr.f32.mxu0 0.0
        %497 = vmatmul.mubr.f32.gmra.mrb[0].mxu0 %v325
        %v498 = vpop.f32.mrb[0].mxu0
        %v499 = vadd.f32 %v365, %v498
        %v500 = vpop.f32.mrb[0].mxu0
        %501 = vmatprep.mubr.f32.mxu0 0.0
        %502 = vmatmul.mubr.f32.gmra.mrb[0].mxu0 %v326
        %v503 = vpop.f32.mrb[0].mxu0
        %v504 = vadd.f32 %v365, %v503
        %v505 = vpop.f32.mrb[0].mxu0
        %506 = vmatprep.mubr.f32.mxu0 0.0
        %507 = vmatmul.mubr.f32.gmra.mrb[0].mxu0 %v327
        %v508 = vpop.f32.mrb[0].mxu0
        %v509 = vadd.f32 %v365, %v508
        %v510 = vpop.f32.mrb[0].mxu0
        %511 = vmatprep.mubr.f32.mxu0 0.0
        %512 = vmatmul.mubr.f32.gmra.mrb[0].mxu0 %v328
        %v513 = vpop.f32.mrb[0].mxu0
        %v514 = vadd.f32 %v365, %v513
        %v515 = vpop.f32.mrb[0].mxu0
        %516 = vmatprep.mubr.f32.mxu0 0.0
        %517 = vmatmul.mubr.f32.gmra.mrb[0].mxu0 %v329
        %v518 = vpop.f32.mrb[0].mxu0
        %v519 = vadd.f32 %v365, %v518
        %v520 = vpop.f32.mrb[0].mxu0
        %521 = vmatprep.mubr.f32.mxu0 0.0
        %522 = vmatmul.mubr.f32.gmra.mrb[0].mxu0 %v330
        %v523 = vpop.f32.mrb[0].mxu0
        %v524 = vadd.f32 %v365, %v523
        %v525 = vpop.f32.mrb[0].mxu0
        %526 = vmatprep.mubr.f32.mxu0 0.0
        %527 = vmatmul.mubr.f32.gmra.mrb[0].mxu0 %v331
        %v528 = vpop.f32.mrb[0].mxu0
        %v529 = vadd.f32 %v365, %v528
        %v530 = vpop.f32.mrb[0].mxu0
        %531 = vmatprep.mubr.f32.mxu0 0.0
        %532 = vmatmul.mubr.f32.gmra.mrb[0].mxu0 %v332
        %v533 = vpop.f32.mrb[0].mxu0
        %v534 = vadd.f32 %v365, %v533
        %v535 = vpop.f32.mrb[0].mxu0
        %536 = vmatprep.mubr.f32.mxu0 0.0
        %537 = vmatmul.mubr.f32.gmra.mrb[0].mxu0 %v333
        %v538 = vpop.f32.mrb[0].mxu0
        %v539 = vadd.f32 %v365, %v538
        %v540 = vpop.f32.mrb[0].mxu0
        %541 = vmatprep.mubr.f32.mxu0 0.0
        %542 = vmatmul.mubr.f32.gmra.mrb[0].mxu0 %v334
        %v543 = vpop.f32.mrb[0].mxu0
        %v544 = vadd.f32 %v365, %v543
        %v545 = vpop.f32.mrb[0].mxu0
        %546 = vmatprep.mubr.f32.mxu0 0.0
        %547 = vmatmul.mubr.f32.gmra.mrb[0].mxu0 %v335
        %v548 = vpop.f32.mrb[0].mxu0
        %v549 = vadd.f32 %v365, %v548
        %v550 = vpop.f32.mrb[0].mxu0
        %551 = vmatprep.mubr.f32.mxu0 0.0
        %552 = vmatmul.mubr.f32.gmra.mrb[0].mxu0 %v336
        %v553 = vpop.f32.mrb[0].mxu0
        %v554 = vadd.f32 %v365, %v553
        %v555 = vpop.f32.mrb[0].mxu0
        %556 = vmatprep.mubr.f32.mxu0 0.0
        %557 = vmatmul.mubr.f32.gmra.mrb[0].mxu0 %v337
        %v558 = vpop.f32.mrb[0].mxu0
        %v559 = vadd.f32 %v365, %v558
        %v560 = vpop.f32.mrb[0].mxu0
        %561 = vmatprep.mubr.f32.mxu0 0.0
        %562 = vmatmul.mubr.f32.gmra.mrb[0].mxu0 %v338
        %v563 = vpop.f32.mrb[0].mxu0
        %v564 = vadd.f32 %v365, %v563
        %v565 = vpop.f32.mrb[0].mxu0
        %566 = vmatprep.mubr.f32.mxu0 0.0
        %567 = vmatmul.mubr.f32.gmra.mrb[0].mxu0 %v339
        %v568 = vpop.f32.mrb[0].mxu0
        %v569 = vadd.f32 %v365, %v568
        %v570 = vpop.f32.mrb[0].mxu0
        %571 = vmatprep.mubr.f32.mxu0 0.0
        %572 = vmatmul.mubr.f32.gmra.mrb[0].mxu0 %v340
        %v573 = vpop.f32.mrb[0].mxu0
        %v574 = vadd.f32 %v365, %v573
        %v575 = vpop.f32.mrb[0].mxu0
        %576 = vmatprep.mubr.f32.mxu0 0.0
        %577 = vmatmul.mubr.f32.gmra.mrb[0].mxu0 %v341
        %v578 = vpop.f32.mrb[0].mxu0
        %v579 = vadd.f32 %v365, %v578
        %v580 = vpop.f32.mrb[0].mxu0
        %581 = vmatprep.mubr.f32.mxu0 0.0
        %582 = vmatmul.mubr.f32.gmra.mrb[0].mxu0 %v342
        %v583 = vpop.f32.mrb[0].mxu0
        %v584 = vadd.f32 %v365, %v583
        %v585 = vpop.f32.mrb[0].mxu0
        %586 = vmatprep.mubr.f32.mxu0 0.0
        %587 = vmatmul.mubr.f32.gmra.mrb[0].mxu0 %v343
        %v588 = vpop.f32.mrb[0].mxu0
        %v589 = vadd.f32 %v365, %v588
        %v590 = vpop.f32.mrb[0].mxu0
        %591 = vdwg.mxu0
        %v592 = vmax.f32 %v434, 0.0
        %v593 = vmax.f32 %v439, 0.0
        %v594 = vmax.f32 %v444, 0.0
        %v595 = vmax.f32 %v449, 0.0
        %v596 = vmax.f32 %v454, 0.0
        %v597 = vmax.f32 %v459, 0.0
        %v598 = vmax.f32 %v464, 0.0
        %v599 = vmax.f32 %v469, 0.0
        %v600 = vmax.f32 %v474, 0.0
        %v601 = vmax.f32 %v479, 0.0
        %v602 = vmax.f32 %v484, 0.0
        %v603 = vmax.f32 %v489, 0.0
        %v604 = vmax.f32 %v494, 0.0
        %v605 = vmax.f32 %v499, 0.0
        %v606 = vmax.f32 %v504, 0.0
        %v607 = vmax.f32 %v509, 0.0
        %v608 = vmax.f32 %v514, 0.0
        %v609 = vmax.f32 %v519, 0.0
        %v610 = vmax.f32 %v524, 0.0
        %v611 = vmax.f32 %v529, 0.0
        %v612 = vmax.f32 %v534, 0.0
        %v613 = vmax.f32 %v539, 0.0
        %v614 = vmax.f32 %v544, 0.0
        %v615 = vmax.f32 %v549, 0.0
        %v616 = vmax.f32 %v554, 0.0
        %v617 = vmax.f32 %v559, 0.0
        %v618 = vmax.f32 %v564, 0.0
        %v619 = vmax.f32 %v569, 0.0
        %v620 = vmax.f32 %v574, 0.0
        %v621 = vmax.f32 %v579, 0.0
        %v622 = vmax.f32 %v584, 0.0
        %v623 = vmax.f32 %v589, 0.0
        %vm624 = vcmask 261120
        %625 = vst.msk [vmem:[#allocation2] sm:$0xff] %vm624, 0.0
        %626 = vst.msk [vmem:[#allocation2 + $0x8] sm:$0xff] %vm624, 0.0
        %627 = vst.msk [vmem:[#allocation2 + $0x110] sm:$0xff] %vm624, 0.0
        %628 = vst.msk [vmem:[#allocation2 + $0x118] sm:$0xff] %vm624, 0.0
        %629 = vst.msk [vmem:[#allocation3] sm:$0xff] %vm624, 0.0
        %630 = vst.msk [vmem:[#allocation3 + $0x8] sm:$0xff] %vm624, 0.0
        %631 = vst.msk [vmem:[#allocation3 + $0x110] sm:$0xff] %vm624, 0.0
        %632 = vst.msk [vmem:[#allocation3 + $0x118] sm:$0xff] %vm624, 0.0
        %633 = vst.msk [vmem:[#allocation4] sm:$0xff] %vm624, 0.0
        %634 = vst.msk [vmem:[#allocation4 + $0x8] sm:$0xff] %vm624, 0.0
        %635 = vst.msk [vmem:[#allocation4 + $0x110] sm:$0xff] %vm624, 0.0
        %636 = vst.msk [vmem:[#allocation4 + $0x118] sm:$0xff] %vm624, 0.0
        %637 = vst.msk [vmem:[#allocation2 + $0x10] sm:$0xff] %vm624, %v592
        %638 = vst.msk [vmem:[#allocation2 + $0x18] sm:$0xff] %vm624, %v593
        %639 = vst.msk [vmem:[#allocation2 + $0x20] sm:$0xff] %vm624, %v594
        %640 = vst.msk [vmem:[#allocation2 + $0x28] sm:$0xff] %vm624, %v595
        %641 = vst.msk [vmem:[#allocation2 + $0x30] sm:$0xff] %vm624, %v596
        %642 = vst.msk [vmem:[#allocation2 + $0x38] sm:$0xff] %vm624, %v597
        %643 = vst.msk [vmem:[#allocation2 + $0x40] sm:$0xff] %vm624, %v598
        %644 = vst.msk [vmem:[#allocation2 + $0x48] sm:$0xff] %vm624, %v599
        %645 = vst.msk [vmem:[#allocation2 + $0x50] sm:$0xff] %vm624, %v600
        %646 = vst.msk [vmem:[#allocation2 + $0x58] sm:$0xff] %vm624, %v601
        %647 = vst.msk [vmem:[#allocation2 + $0x60] sm:$0xff] %vm624, %v602
        %648 = vst.msk [vmem:[#allocation2 + $0x68] sm:$0xff] %vm624, %v603
        %649 = vst.msk [vmem:[#allocation2 + $0x70] sm:$0xff] %vm624, %v604
        %650 = vst.msk [vmem:[#allocation2 + $0x78] sm:$0xff] %vm624, %v605
        %651 = vst.msk [vmem:[#allocation2 + $0x80] sm:$0xff] %vm624, %v606
        %652 = vst.msk [vmem:[#allocation2 + $0x88] sm:$0xff] %vm624, %v607
        %653 = vst.msk [vmem:[#allocation2 + $0x90] sm:$0xff] %vm624, %v608
        %654 = vst.msk [vmem:[#allocation2 + $0x98] sm:$0xff] %vm624, %v609
        %655 = vst.msk [vmem:[#allocation2 + $0xa0] sm:$0xff] %vm624, %v610
        %656 = vst.msk [vmem:[#allocation2 + $0xa8] sm:$0xff] %vm624, %v611
        %657 = vst.msk [vmem:[#allocation2 + $0xb0] sm:$0xff] %vm624, %v612
        %658 = vst.msk [vmem:[#allocation2 + $0xb8] sm:$0xff] %vm624, %v613
        %659 = vst.msk [vmem:[#allocation2 + $0xc0] sm:$0xff] %vm624, %v614
        %660 = vst.msk [vmem:[#allocation2 + $0xc8] sm:$0xff] %vm624, %v615
        %661 = vst.msk [vmem:[#allocation2 + $0xd0] sm:$0xff] %vm624, %v616
        %662 = vst.msk [vmem:[#allocation2 + $0xd8] sm:$0xff] %vm624, %v617
        %663 = vst.msk [vmem:[#allocation2 + $0xe0] sm:$0xff] %vm624, %v618
        %664 = vst.msk [vmem:[#allocation2 + $0xe8] sm:$0xff] %vm624, %v619
        %665 = vst.msk [vmem:[#allocation2 + $0xf0] sm:$0xff] %vm624, %v620
        %666 = vst.msk [vmem:[#allocation2 + $0xf8] sm:$0xff] %vm624, %v621
        %667 = vst.msk [vmem:[#allocation2 + $0x100] sm:$0xff] %vm624, %v622
        %668 = vst.msk [vmem:[#allocation2 + $0x108] sm:$0xff] %vm624, %v623
        %v669 = vlaneseq
        %v670 = vshrl.u32 %v669, 7
        %v671 = vadd.s32 %v670, 8
        %v672 = vadd.s32 %v670, 16
        %v673 = vadd.s32 %v670, 24
        %v674 = vadd.s32 %v670, 32
        %v675 = vadd.s32 %v670, 40
        %v676 = vadd.s32 %v670, 48
        %v677 = vadd.s32 %v670, 56
        %v678 = vadd.s32 %v670, 64
        %v679 = vadd.s32 %v670, 72
        %v680 = vadd.s32 %v670, 80
        %v681 = vadd.s32 %v670, 88
        %v682 = vadd.s32 %v670, 96
        %v683 = vadd.s32 %v670, 104
        %v684 = vadd.s32 %v670, 112
        %v685 = vadd.s32 %v670, 120
        %v686 = vadd.s32 %v670, 128
        %v687 = vadd.s32 %v670, 136
        %v688 = vadd.s32 %v670, 144
        %v689 = vadd.s32 %v670, 152
        %v690 = vadd.s32 %v670, 160
        %v691 = vadd.s32 %v670, 168
        %v692 = vadd.s32 %v670, 176
        %v693 = vadd.s32 %v670, 184
        %v694 = vadd.s32 %v670, 192
        %v695 = vadd.s32 %v670, 200
        %v696 = vadd.s32 %v670, 208
        %v697 = vadd.s32 %v670, 216
        %v698 = vadd.s32 %v670, 224
        %v699 = vadd.s32 %v670, 232
        %v700 = vadd.s32 %v670, 240
        %v701 = vadd.s32 %v670, 248
        %vm702 = vcmp.lt.s32.totalorder %v670, 0
        %v703 = vsub.s32 0, %v670
        %v704 = vsel %vm702, %v703, %v670
        %v705 = vshrl.u32 %v704, 4
        %v706 = vand.u32 %v704, 15
        %v707 = vsub.s32 0, %v706
        %v708 = vsel %vm702, %v707, %v706
        %vm709 = vcmp.lt.s32.totalorder %v671, 0
        %v710 = vsub.s32 0, %v671
        %v711 = vsel %vm709, %v710, %v671
        %v712 = vshrl.u32 %v711, 4
        %v713 = vand.u32 %v711, 15
        %v714 = vsub.s32 0, %v713
        %v715 = vsel %vm709, %v714, %v713
        %vm716 = vcmp.lt.s32.totalorder %v672, 0
        %v717 = vsub.s32 0, %v672
        %v718 = vsel %vm716, %v717, %v672
        %v719 = vshrl.u32 %v718, 4
        %v720 = vand.u32 %v718, 15
        %v721 = vsub.s32 0, %v720
        %v722 = vsel %vm716, %v721, %v720
        %vm723 = vcmp.lt.s32.totalorder %v673, 0
        %v724 = vsub.s32 0, %v673
        %v725 = vsel %vm723, %v724, %v673
        %v726 = vshrl.u32 %v725, 4
        %v727 = vand.u32 %v725, 15
        %v728 = vsub.s32 0, %v727
        %v729 = vsel %vm723, %v728, %v727
        %vm730 = vcmp.lt.s32.totalorder %v674, 0
        %v731 = vsub.s32 0, %v674
        %v732 = vsel %vm730, %v731, %v674
        %v733 = vshrl.u32 %v732, 4
        %v734 = vand.u32 %v732, 15
        %v735 = vsub.s32 0, %v734
        %v736 = vsel %vm730, %v735, %v734
        %vm737 = vcmp.lt.s32.totalorder %v675, 0
        %v738 = vsub.s32 0, %v675
        %v739 = vsel %vm737, %v738, %v675
        %v740 = vshrl.u32 %v739, 4
        %v741 = vand.u32 %v739, 15
        %v742 = vsub.s32 0, %v741
        %v743 = vsel %vm737, %v742, %v741
        %vm744 = vcmp.lt.s32.totalorder %v676, 0
        %v745 = vsub.s32 0, %v676
        %v746 = vsel %vm744, %v745, %v676
        %v747 = vshrl.u32 %v746, 4
        %v748 = vand.u32 %v746, 15
        %v749 = vsub.s32 0, %v748
        %v750 = vsel %vm744, %v749, %v748
        %vm751 = vcmp.lt.s32.totalorder %v677, 0
        %v752 = vsub.s32 0, %v677
        %v753 = vsel %vm751, %v752, %v677
        %v754 = vshrl.u32 %v753, 4
        %v755 = vand.u32 %v753, 15
        %v756 = vsub.s32 0, %v755
        %v757 = vsel %vm751, %v756, %v755
        %vm758 = vcmp.lt.s32.totalorder %v678, 0
        %v759 = vsub.s32 0, %v678
        %v760 = vsel %vm758, %v759, %v678
        %v761 = vshrl.u32 %v760, 4
        %v762 = vand.u32 %v760, 15
        %v763 = vsub.s32 0, %v762
        %v764 = vsel %vm758, %v763, %v762
        %vm765 = vcmp.lt.s32.totalorder %v679, 0
        %v766 = vsub.s32 0, %v679
        %v767 = vsel %vm765, %v766, %v679
        %v768 = vshrl.u32 %v767, 4
        %v769 = vand.u32 %v767, 15
        %v770 = vsub.s32 0, %v769
        %v771 = vsel %vm765, %v770, %v769
        %vm772 = vcmp.lt.s32.totalorder %v680, 0
        %v773 = vsub.s32 0, %v680
        %v774 = vsel %vm772, %v773, %v680
        %v775 = vshrl.u32 %v774, 4
        %v776 = vand.u32 %v774, 15
        %v777 = vsub.s32 0, %v776
        %v778 = vsel %vm772, %v777, %v776
        %vm779 = vcmp.lt.s32.totalorder %v681, 0
        %v780 = vsub.s32 0, %v681
        %v781 = vsel %vm779, %v780, %v681
        %v782 = vshrl.u32 %v781, 4
        %v783 = vand.u32 %v781, 15
        %v784 = vsub.s32 0, %v783
        %v785 = vsel %vm779, %v784, %v783
        %vm786 = vcmp.lt.s32.totalorder %v682, 0
        %v787 = vsub.s32 0, %v682
        %v788 = vsel %vm786, %v787, %v682
        %v789 = vshrl.u32 %v788, 4
        %v790 = vand.u32 %v788, 15
        %v791 = vsub.s32 0, %v790
        %v792 = vsel %vm786, %v791, %v790
        %vm793 = vcmp.lt.s32.totalorder %v683, 0
        %v794 = vsub.s32 0, %v683
        %v795 = vsel %vm793, %v794, %v683
        %v796 = vshrl.u32 %v795, 4
        %v797 = vand.u32 %v795, 15
        %v798 = vsub.s32 0, %v797
        %v799 = vsel %vm793, %v798, %v797
        %vm800 = vcmp.lt.s32.totalorder %v684, 0
        %v801 = vsub.s32 0, %v684
        %v802 = vsel %vm800, %v801, %v684
        %v803 = vshrl.u32 %v802, 4
        %v804 = vand.u32 %v802, 15
        %v805 = vsub.s32 0, %v804
        %v806 = vsel %vm800, %v805, %v804
        %vm807 = vcmp.lt.s32.totalorder %v685, 0
        %v808 = vsub.s32 0, %v685
        %v809 = vsel %vm807, %v808, %v685
        %v810 = vshrl.u32 %v809, 4
        %v811 = vand.u32 %v809, 15
        %v812 = vsub.s32 0, %v811
        %v813 = vsel %vm807, %v812, %v811
        %vm814 = vcmp.lt.s32.totalorder %v686, 0
        %v815 = vsub.s32 0, %v686
        %v816 = vsel %vm814, %v815, %v686
        %v817 = vshrl.u32 %v816, 4
        %v818 = vand.u32 %v816, 15
        %v819 = vsub.s32 0, %v818
        %v820 = vsel %vm814, %v819, %v818
        %vm821 = vcmp.lt.s32.totalorder %v687, 0
        %v822 = vsub.s32 0, %v687
        %v823 = vsel %vm821, %v822, %v687
        %v824 = vshrl.u32 %v823, 4
        %v825 = vand.u32 %v823, 15
        %v826 = vsub.s32 0, %v825
        %v827 = vsel %vm821, %v826, %v825
        %vm828 = vcmp.lt.s32.totalorder %v688, 0
        %v829 = vsub.s32 0, %v688
        %v830 = vsel %vm828, %v829, %v688
        %v831 = vshrl.u32 %v830, 4
        %v832 = vand.u32 %v830, 15
        %v833 = vsub.s32 0, %v832
        %v834 = vsel %vm828, %v833, %v832
        %vm835 = vcmp.lt.s32.totalorder %v689, 0
        %v836 = vsub.s32 0, %v689
        %v837 = vsel %vm835, %v836, %v689
        %v838 = vshrl.u32 %v837, 4
        %v839 = vand.u32 %v837, 15
        %v840 = vsub.s32 0, %v839
        %v841 = vsel %vm835, %v840, %v839
        %vm842 = vcmp.lt.s32.totalorder %v690, 0
        %v843 = vsub.s32 0, %v690
        %v844 = vsel %vm842, %v843, %v690
        %v845 = vshrl.u32 %v844, 4
        %v846 = vand.u32 %v844, 15
        %v847 = vsub.s32 0, %v846
        %v848 = vsel %vm842, %v847, %v846
        %vm849 = vcmp.lt.s32.totalorder %v691, 0
        %v850 = vsub.s32 0, %v691
        %v851 = vsel %vm849, %v850, %v691
        %v852 = vshrl.u32 %v851, 4
        %v853 = vand.u32 %v851, 15
        %v854 = vsub.s32 0, %v853
        %v855 = vsel %vm849, %v854, %v853
        %vm856 = vcmp.lt.s32.totalorder %v692, 0
        %v857 = vsub.s32 0, %v692
        %v858 = vsel %vm856, %v857, %v692
        %v859 = vshrl.u32 %v858, 4
        %v860 = vand.u32 %v858, 15
        %v861 = vsub.s32 0, %v860
        %v862 = vsel %vm856, %v861, %v860
        %vm863 = vcmp.lt.s32.totalorder %v693, 0
        %v864 = vsub.s32 0, %v693
        %v865 = vsel %vm863, %v864, %v693
        %v866 = vshrl.u32 %v865, 4
        %v867 = vand.u32 %v865, 15
        %v868 = vsub.s32 0, %v867
        %v869 = vsel %vm863, %v868, %v867
        %vm870 = vcmp.lt.s32.totalorder %v694, 0
        %v871 = vsub.s32 0, %v694
        %v872 = vsel %vm870, %v871, %v694
        %v873 = vshrl.u32 %v872, 4
        %v874 = vand.u32 %v872, 15
        %v875 = vsub.s32 0, %v874
        %v876 = vsel %vm870, %v875, %v874
        %vm877 = vcmp.lt.s32.totalorder %v695, 0
        %v878 = vsub.s32 0, %v695
        %v879 = vsel %vm877, %v878, %v695
        %v880 = vshrl.u32 %v879, 4
        %v881 = vand.u32 %v879, 15
        %v882 = vsub.s32 0, %v881
        %v883 = vsel %vm877, %v882, %v881
        %vm884 = vcmp.lt.s32.totalorder %v696, 0
        %v885 = vsub.s32 0, %v696
        %v886 = vsel %vm884, %v885, %v696
        %v887 = vshrl.u32 %v886, 4
        %v888 = vand.u32 %v886, 15
        %v889 = vsub.s32 0, %v888
        %v890 = vsel %vm884, %v889, %v888
        %vm891 = vcmp.lt.s32.totalorder %v697, 0
        %v892 = vsub.s32 0, %v697
        %v893 = vsel %vm891, %v892, %v697
        %v894 = vshrl.u32 %v893, 4
        %v895 = vand.u32 %v893, 15
        %v896 = vsub.s32 0, %v895
        %v897 = vsel %vm891, %v896, %v895
        %vm898 = vcmp.lt.s32.totalorder %v698, 0
        %v899 = vsub.s32 0, %v698
        %v900 = vsel %vm898, %v899, %v698
        %v901 = vshrl.u32 %v900, 4
        %v902 = vand.u32 %v900, 15
        %v903 = vsub.s32 0, %v902
        %v904 = vsel %vm898, %v903, %v902
        %vm905 = vcmp.lt.s32.totalorder %v699, 0
        %v906 = vsub.s32 0, %v699
        %v907 = vsel %vm905, %v906, %v699
        %v908 = vshrl.u32 %v907, 4
        %v909 = vand.u32 %v907, 15
        %v910 = vsub.s32 0, %v909
        %v911 = vsel %vm905, %v910, %v909
        %vm912 = vcmp.lt.s32.totalorder %v700, 0
        %v913 = vsub.s32 0, %v700
        %v914 = vsel %vm912, %v913, %v700
        %v915 = vshrl.u32 %v914, 4
        %v916 = vand.u32 %v914, 15
        %v917 = vsub.s32 0, %v916
        %v918 = vsel %vm912, %v917, %v916
        %vm919 = vcmp.lt.s32.totalorder %v701, 0
        %v920 = vsub.s32 0, %v701
        %v921 = vsel %vm919, %v920, %v701
        %v922 = vshrl.u32 %v921, 4
        %v923 = vand.u32 %v921, 15
        %v924 = vsub.s32 0, %v923
        %v925 = vsel %vm919, %v924, %v923
        %vm926 = vcmp.ne.s32.totalorder %v708, 0
        %vm927 = vcmp.ne.s32.totalorder %v715, 0
        %vm928 = vcmp.ne.s32.totalorder %v722, 0
        %vm929 = vcmp.ne.s32.totalorder %v729, 0
        %vm930 = vcmp.ne.s32.totalorder %v736, 0
        %vm931 = vcmp.ne.s32.totalorder %v743, 0
        %vm932 = vcmp.ne.s32.totalorder %v750, 0
        %vm933 = vcmp.ne.s32.totalorder %v757, 0
        %vm934 = vcmp.ne.s32.totalorder %v764, 0
        %vm935 = vcmp.ne.s32.totalorder %v771, 0
        %vm936 = vcmp.ne.s32.totalorder %v778, 0
        %vm937 = vcmp.ne.s32.totalorder %v785, 0
        %vm938 = vcmp.ne.s32.totalorder %v792, 0
        %vm939 = vcmp.ne.s32.totalorder %v799, 0
        %vm940 = vcmp.ne.s32.totalorder %v806, 0
        %vm941 = vcmp.ne.s32.totalorder %v813, 0
        %vm942 = vcmp.ne.s32.totalorder %v820, 0
        %vm943 = vcmp.ne.s32.totalorder %v827, 0
        %vm944 = vcmp.ne.s32.totalorder %v834, 0
        %vm945 = vcmp.ne.s32.totalorder %v841, 0
        %vm946 = vcmp.ne.s32.totalorder %v848, 0
        %vm947 = vcmp.ne.s32.totalorder %v855, 0
        %vm948 = vcmp.ne.s32.totalorder %v862, 0
        %vm949 = vcmp.ne.s32.totalorder %v869, 0
        %vm950 = vcmp.ne.s32.totalorder %v876, 0
        %vm951 = vcmp.ne.s32.totalorder %v883, 0
        %vm952 = vcmp.ne.s32.totalorder %v890, 0
        %vm953 = vcmp.ne.s32.totalorder %v897, 0
        %vm954 = vcmp.ne.s32.totalorder %v904, 0
        %vm955 = vcmp.ne.s32.totalorder %v911, 0
        %vm956 = vcmp.ne.s32.totalorder %v918, 0
        %vm957 = vcmp.ne.s32.totalorder %v925, 0
        %vm958 = vcmp.lt.s32.totalorder %v708, 0
        %vm959 = vcmp.lt.s32.totalorder %v715, 0
        %vm960 = vcmp.lt.s32.totalorder %v722, 0
        %vm961 = vcmp.lt.s32.totalorder %v729, 0
        %vm962 = vcmp.lt.s32.totalorder %v736, 0
        %vm963 = vcmp.lt.s32.totalorder %v743, 0
        %vm964 = vcmp.lt.s32.totalorder %v750, 0
        %vm965 = vcmp.lt.s32.totalorder %v757, 0
        %vm966 = vcmp.lt.s32.totalorder %v764, 0
        %vm967 = vcmp.lt.s32.totalorder %v771, 0
        %vm968 = vcmp.lt.s32.totalorder %v778, 0
        %vm969 = vcmp.lt.s32.totalorder %v785, 0
        %vm970 = vcmp.lt.s32.totalorder %v792, 0
        %vm971 = vcmp.lt.s32.totalorder %v799, 0
        %vm972 = vcmp.lt.s32.totalorder %v806, 0
        %vm973 = vcmp.lt.s32.totalorder %v813, 0
        %vm974 = vcmp.lt.s32.totalorder %v820, 0
        %vm975 = vcmp.lt.s32.totalorder %v827, 0
        %vm976 = vcmp.lt.s32.totalorder %v834, 0
        %vm977 = vcmp.lt.s32.totalorder %v841, 0
        %vm978 = vcmp.lt.s32.totalorder %v848, 0
        %vm979 = vcmp.lt.s32.totalorder %v855, 0
        %vm980 = vcmp.lt.s32.totalorder %v862, 0
        %vm981 = vcmp.lt.s32.totalorder %v869, 0
        %vm982 = vcmp.lt.s32.totalorder %v876, 0
        %vm983 = vcmp.lt.s32.totalorder %v883, 0
        %vm984 = vcmp.lt.s32.totalorder %v890, 0
        %vm985 = vcmp.lt.s32.totalorder %v897, 0
        %vm986 = vcmp.lt.s32.totalorder %v904, 0
        %vm987 = vcmp.lt.s32.totalorder %v911, 0
        %vm988 = vcmp.lt.s32.totalorder %v918, 0
        %vm989 = vcmp.lt.s32.totalorder %v925, 0
        %vm990 = vmand %vm958, %vm926
        %vm991 = vmand %vm959, %vm927
        %vm992 = vmand %vm960, %vm928
        %vm993 = vmand %vm961, %vm929
        %vm994 = vmand %vm962, %vm930
        %vm995 = vmand %vm963, %vm931
        %vm996 = vmand %vm964, %vm932
        %vm997 = vmand %vm965, %vm933
        %vm998 = vmand %vm966, %vm934
        %vm999 = vmand %vm967, %vm935
        %vm1000 = vmand %vm968, %vm936
        %vm1001 = vmand %vm969, %vm937
        %vm1002 = vmand %vm970, %vm938
        %vm1003 = vmand %vm971, %vm939
        %vm1004 = vmand %vm972, %vm940
        %vm1005 = vmand %vm973, %vm941
        %vm1006 = vmand %vm974, %vm942
        %vm1007 = vmand %vm975, %vm943
        %vm1008 = vmand %vm976, %vm944
        %vm1009 = vmand %vm977, %vm945
        %vm1010 = vmand %vm978, %vm946
        %vm1011 = vmand %vm979, %vm947
        %vm1012 = vmand %vm980, %vm948
        %vm1013 = vmand %vm981, %vm949
        %vm1014 = vmand %vm982, %vm950
        %vm1015 = vmand %vm983, %vm951
        %vm1016 = vmand %vm984, %vm952
        %vm1017 = vmand %vm985, %vm953
        %vm1018 = vmand %vm986, %vm954
        %vm1019 = vmand %vm987, %vm955
        %vm1020 = vmand %vm988, %vm956
        %vm1021 = vmand %vm989, %vm957
        %v1022 = vadd.s32 %v708, 16
        %v1023 = vadd.s32 %v715, 16
        %v1024 = vadd.s32 %v722, 16
        %v1025 = vadd.s32 %v729, 16
        %v1026 = vadd.s32 %v736, 16
        %v1027 = vadd.s32 %v743, 16
        %v1028 = vadd.s32 %v750, 16
        %v1029 = vadd.s32 %v757, 16
        %v1030 = vadd.s32 %v764, 16
        %v1031 = vadd.s32 %v771, 16
        %v1032 = vadd.s32 %v778, 16
        %v1033 = vadd.s32 %v785, 16
        %v1034 = vadd.s32 %v792, 16
        %v1035 = vadd.s32 %v799, 16
        %v1036 = vadd.s32 %v806, 16
        %v1037 = vadd.s32 %v813, 16
        %v1038 = vadd.s32 %v820, 16
        %v1039 = vadd.s32 %v827, 16
        %v1040 = vadd.s32 %v834, 16
        %v1041 = vadd.s32 %v841, 16
        %v1042 = vadd.s32 %v848, 16
        %v1043 = vadd.s32 %v855, 16
        %v1044 = vadd.s32 %v862, 16
        %v1045 = vadd.s32 %v869, 16
        %v1046 = vadd.s32 %v876, 16
        %v1047 = vadd.s32 %v883, 16
        %v1048 = vadd.s32 %v890, 16
        %v1049 = vadd.s32 %v897, 16
        %v1050 = vadd.s32 %v904, 16
        %v1051 = vadd.s32 %v911, 16
        %v1052 = vadd.s32 %v918, 16
        %v1053 = vadd.s32 %v925, 16
        %v1054 = vsel %vm990, %v1022, %v708
        %v1055 = vsel %vm991, %v1023, %v715
        %v1056 = vsel %vm992, %v1024, %v722
        %v1057 = vsel %vm993, %v1025, %v729
        %v1058 = vsel %vm994, %v1026, %v736
        %v1059 = vsel %vm995, %v1027, %v743
        %v1060 = vsel %vm996, %v1028, %v750
        %v1061 = vsel %vm997, %v1029, %v757
        %v1062 = vsel %vm998, %v1030, %v764
        %v1063 = vsel %vm999, %v1031, %v771
        %v1064 = vsel %vm1000, %v1032, %v778
        %v1065 = vsel %vm1001, %v1033, %v785
        %v1066 = vsel %vm1002, %v1034, %v792
        %v1067 = vsel %vm1003, %v1035, %v799
        %v1068 = vsel %vm1004, %v1036, %v806
        %v1069 = vsel %vm1005, %v1037, %v813
        %v1070 = vsel %vm1006, %v1038, %v820
        %v1071 = vsel %vm1007, %v1039, %v827
        %v1072 = vsel %vm1008, %v1040, %v834
        %v1073 = vsel %vm1009, %v1041, %v841
        %v1074 = vsel %vm1010, %v1042, %v848
        %v1075 = vsel %vm1011, %v1043, %v855
        %v1076 = vsel %vm1012, %v1044, %v862
        %v1077 = vsel %vm1013, %v1045, %v869
        %v1078 = vsel %vm1014, %v1046, %v876
        %v1079 = vsel %vm1015, %v1047, %v883
        %v1080 = vsel %vm1016, %v1048, %v890
        %v1081 = vsel %vm1017, %v1049, %v897
        %v1082 = vsel %vm1018, %v1050, %v904
        %v1083 = vsel %vm1019, %v1051, %v911
        %v1084 = vsel %vm1020, %v1052, %v918
        %v1085 = vsel %vm1021, %v1053, %v925
        %vm1086 = vcmp.gt.s32.totalorder %v1054, 0
        %vm1087 = vcmp.gt.s32.totalorder %v1055, 0
        %vm1088 = vcmp.gt.s32.totalorder %v1056, 0
        %vm1089 = vcmp.gt.s32.totalorder %v1057, 0
        %vm1090 = vcmp.gt.s32.totalorder %v1058, 0
        %vm1091 = vcmp.gt.s32.totalorder %v1059, 0
        %vm1092 = vcmp.gt.s32.totalorder %v1060, 0
        %vm1093 = vcmp.gt.s32.totalorder %v1061, 0
        %vm1094 = vcmp.gt.s32.totalorder %v1062, 0
        %vm1095 = vcmp.gt.s32.totalorder %v1063, 0
        %vm1096 = vcmp.gt.s32.totalorder %v1064, 0
        %vm1097 = vcmp.gt.s32.totalorder %v1065, 0
        %vm1098 = vcmp.gt.s32.totalorder %v1066, 0
        %vm1099 = vcmp.gt.s32.totalorder %v1067, 0
        %vm1100 = vcmp.gt.s32.totalorder %v1068, 0
        %vm1101 = vcmp.gt.s32.totalorder %v1069, 0
        %vm1102 = vcmp.gt.s32.totalorder %v1070, 0
        %vm1103 = vcmp.gt.s32.totalorder %v1071, 0
        %vm1104 = vcmp.gt.s32.totalorder %v1072, 0
        %vm1105 = vcmp.gt.s32.totalorder %v1073, 0
        %vm1106 = vcmp.gt.s32.totalorder %v1074, 0
        %vm1107 = vcmp.gt.s32.totalorder %v1075, 0
        %vm1108 = vcmp.gt.s32.totalorder %v1076, 0
        %vm1109 = vcmp.gt.s32.totalorder %v1077, 0
        %vm1110 = vcmp.gt.s32.totalorder %v1078, 0
        %vm1111 = vcmp.gt.s32.totalorder %v1079, 0
        %vm1112 = vcmp.gt.s32.totalorder %v1080, 0
        %vm1113 = vcmp.gt.s32.totalorder %v1081, 0
        %vm1114 = vcmp.gt.s32.totalorder %v1082, 0
        %vm1115 = vcmp.gt.s32.totalorder %v1083, 0
        %vm1116 = vcmp.gt.s32.totalorder %v1084, 0
        %vm1117 = vcmp.gt.s32.totalorder %v1085, 0
        %v1118 = vsel %vm1086, 1, 0
        %v1119 = vsel %vm1087, 1, 0
        %v1120 = vsel %vm1088, 1, 0
        %v1121 = vsel %vm1089, 1, 0
        %v1122 = vsel %vm1090, 1, 0
        %v1123 = vsel %vm1091, 1, 0
        %v1124 = vsel %vm1092, 1, 0
        %v1125 = vsel %vm1093, 1, 0
        %v1126 = vsel %vm1094, 1, 0
        %v1127 = vsel %vm1095, 1, 0
        %v1128 = vsel %vm1096, 1, 0
        %v1129 = vsel %vm1097, 1, 0
        %v1130 = vsel %vm1098, 1, 0
        %v1131 = vsel %vm1099, 1, 0
        %v1132 = vsel %vm1100, 1, 0
        %v1133 = vsel %vm1101, 1, 0
        %v1134 = vsel %vm1102, 1, 0
        %v1135 = vsel %vm1103, 1, 0
        %v1136 = vsel %vm1104, 1, 0
        %v1137 = vsel %vm1105, 1, 0
        %v1138 = vsel %vm1106, 1, 0
        %v1139 = vsel %vm1107, 1, 0
        %v1140 = vsel %vm1108, 1, 0
        %v1141 = vsel %vm1109, 1, 0
        %v1142 = vsel %vm1110, 1, 0
        %v1143 = vsel %vm1111, 1, 0
        %v1144 = vsel %vm1112, 1, 0
        %v1145 = vsel %vm1113, 1, 0
        %v1146 = vsel %vm1114, 1, 0
        %v1147 = vsel %vm1115, 1, 0
        %v1148 = vsel %vm1116, 1, 0
        %v1149 = vsel %vm1117, 1, 0
        %v1150 = vcvt.s32.f32 %v1118
        %v1151 = vcvt.s32.f32 %v1119
        %v1152 = vcvt.s32.f32 %v1120
        %v1153 = vcvt.s32.f32 %v1121
        %v1154 = vcvt.s32.f32 %v1122
        %v1155 = vcvt.s32.f32 %v1123
        %v1156 = vcvt.s32.f32 %v1124
        %v1157 = vcvt.s32.f32 %v1125
        %v1158 = vcvt.s32.f32 %v1126
        %v1159 = vcvt.s32.f32 %v1127
        %v1160 = vcvt.s32.f32 %v1128
        %v1161 = vcvt.s32.f32 %v1129
        %v1162 = vcvt.s32.f32 %v1130
        %v1163 = vcvt.s32.f32 %v1131
        %v1164 = vcvt.s32.f32 %v1132
        %v1165 = vcvt.s32.f32 %v1133
        %v1166 = vcvt.s32.f32 %v1134
        %v1167 = vcvt.s32.f32 %v1135
        %v1168 = vcvt.s32.f32 %v1136
        %v1169 = vcvt.s32.f32 %v1137
        %v1170 = vcvt.s32.f32 %v1138
        %v1171 = vcvt.s32.f32 %v1139
        %v1172 = vcvt.s32.f32 %v1140
        %v1173 = vcvt.s32.f32 %v1141
        %v1174 = vcvt.s32.f32 %v1142
        %v1175 = vcvt.s32.f32 %v1143
        %v1176 = vcvt.s32.f32 %v1144
        %v1177 = vcvt.s32.f32 %v1145
        %v1178 = vcvt.s32.f32 %v1146
        %v1179 = vcvt.s32.f32 %v1147
        %v1180 = vcvt.s32.f32 %v1148
        %v1181 = vcvt.s32.f32 %v1149
        %vm1182 = vcmp.lt.s32.totalorder %v1054, 15
        %vm1183 = vcmp.lt.s32.totalorder %v1055, 15
        %vm1184 = vcmp.lt.s32.totalorder %v1056, 15
        %vm1185 = vcmp.lt.s32.totalorder %v1057, 15
        %vm1186 = vcmp.lt.s32.totalorder %v1058, 15
        %vm1187 = vcmp.lt.s32.totalorder %v1059, 15
        %vm1188 = vcmp.lt.s32.totalorder %v1060, 15
        %vm1189 = vcmp.lt.s32.totalorder %v1061, 15
        %vm1190 = vcmp.lt.s32.totalorder %v1062, 15
        %vm1191 = vcmp.lt.s32.totalorder %v1063, 15
        %vm1192 = vcmp.lt.s32.totalorder %v1064, 15
        %vm1193 = vcmp.lt.s32.totalorder %v1065, 15
        %vm1194 = vcmp.lt.s32.totalorder %v1066, 15
        %vm1195 = vcmp.lt.s32.totalorder %v1067, 15
        %vm1196 = vcmp.lt.s32.totalorder %v1068, 15
        %vm1197 = vcmp.lt.s32.totalorder %v1069, 15
        %vm1198 = vcmp.lt.s32.totalorder %v1070, 15
        %vm1199 = vcmp.lt.s32.totalorder %v1071, 15
        %vm1200 = vcmp.lt.s32.totalorder %v1072, 15
        %vm1201 = vcmp.lt.s32.totalorder %v1073, 15
        %vm1202 = vcmp.lt.s32.totalorder %v1074, 15
        %vm1203 = vcmp.lt.s32.totalorder %v1075, 15
        %vm1204 = vcmp.lt.s32.totalorder %v1076, 15
        %vm1205 = vcmp.lt.s32.totalorder %v1077, 15
        %vm1206 = vcmp.lt.s32.totalorder %v1078, 15
        %vm1207 = vcmp.lt.s32.totalorder %v1079, 15
        %vm1208 = vcmp.lt.s32.totalorder %v1080, 15
        %vm1209 = vcmp.lt.s32.totalorder %v1081, 15
        %vm1210 = vcmp.lt.s32.totalorder %v1082, 15
        %vm1211 = vcmp.lt.s32.totalorder %v1083, 15
        %vm1212 = vcmp.lt.s32.totalorder %v1084, 15
        %vm1213 = vcmp.lt.s32.totalorder %v1085, 15
        %v1214 = vsel %vm1182, 1, 0
        %v1215 = vsel %vm1183, 1, 0
        %v1216 = vsel %vm1184, 1, 0
        %v1217 = vsel %vm1185, 1, 0
        %v1218 = vsel %vm1186, 1, 0
        %v1219 = vsel %vm1187, 1, 0
        %v1220 = vsel %vm1188, 1, 0
        %v1221 = vsel %vm1189, 1, 0
        %v1222 = vsel %vm1190, 1, 0
        %v1223 = vsel %vm1191, 1, 0
        %v1224 = vsel %vm1192, 1, 0
        %v1225 = vsel %vm1193, 1, 0
        %v1226 = vsel %vm1194, 1, 0
        %v1227 = vsel %vm1195, 1, 0
        %v1228 = vsel %vm1196, 1, 0
        %v1229 = vsel %vm1197, 1, 0
        %v1230 = vsel %vm1198, 1, 0
        %v1231 = vsel %vm1199, 1, 0
        %v1232 = vsel %vm1200, 1, 0
        %v1233 = vsel %vm1201, 1, 0
        %v1234 = vsel %vm1202, 1, 0
        %v1235 = vsel %vm1203, 1, 0
        %v1236 = vsel %vm1204, 1, 0
        %v1237 = vsel %vm1205, 1, 0
        %v1238 = vsel %vm1206, 1, 0
        %v1239 = vsel %vm1207, 1, 0
        %v1240 = vsel %vm1208, 1, 0
        %v1241 = vsel %vm1209, 1, 0
        %v1242 = vsel %vm1210, 1, 0
        %v1243 = vsel %vm1211, 1, 0
        %v1244 = vsel %vm1212, 1, 0
        %v1245 = vsel %vm1213, 1, 0
        %v1246 = vcvt.s32.f32 %v1214
        %v1247 = vcvt.s32.f32 %v1215
        %v1248 = vcvt.s32.f32 %v1216
        %v1249 = vcvt.s32.f32 %v1217
        %v1250 = vcvt.s32.f32 %v1218
        %v1251 = vcvt.s32.f32 %v1219
        %v1252 = vcvt.s32.f32 %v1220
        %v1253 = vcvt.s32.f32 %v1221
        %v1254 = vcvt.s32.f32 %v1222
        %v1255 = vcvt.s32.f32 %v1223
        %v1256 = vcvt.s32.f32 %v1224
        %v1257 = vcvt.s32.f32 %v1225
        %v1258 = vcvt.s32.f32 %v1226
        %v1259 = vcvt.s32.f32 %v1227
        %v1260 = vcvt.s32.f32 %v1228
        %v1261 = vcvt.s32.f32 %v1229
        %v1262 = vcvt.s32.f32 %v1230
        %v1263 = vcvt.s32.f32 %v1231
        %v1264 = vcvt.s32.f32 %v1232
        %v1265 = vcvt.s32.f32 %v1233
        %v1266 = vcvt.s32.f32 %v1234
        %v1267 = vcvt.s32.f32 %v1235
        %v1268 = vcvt.s32.f32 %v1236
        %v1269 = vcvt.s32.f32 %v1237
        %v1270 = vcvt.s32.f32 %v1238
        %v1271 = vcvt.s32.f32 %v1239
        %v1272 = vcvt.s32.f32 %v1240
        %v1273 = vcvt.s32.f32 %v1241
        %v1274 = vcvt.s32.f32 %v1242
        %v1275 = vcvt.s32.f32 %v1243
        %v1276 = vcvt.s32.f32 %v1244
        %v1277 = vcvt.s32.f32 %v1245
        %v1278 = vld [vmem:[#allocation2 + $0xf] sm:$0xff]
        %v1279 = vld [vmem:[#allocation2 + $0x17] sm:$0xff]
        %v1280 = vld [vmem:[#allocation2 + $0x1f] sm:$0xff]
        %v1281 = vld [vmem:[#allocation2 + $0x27] sm:$0xff]
        %v1282 = vld [vmem:[#allocation2 + $0x2f] sm:$0xff]
        %v1283 = vld [vmem:[#allocation2 + $0x37] sm:$0xff]
        %v1284 = vld [vmem:[#allocation2 + $0x3f] sm:$0xff]
        %v1285 = vld [vmem:[#allocation2 + $0x47] sm:$0xff]
        %v1286 = vld [vmem:[#allocation2 + $0x4f] sm:$0xff]
        %v1287 = vld [vmem:[#allocation2 + $0x57] sm:$0xff]
        %v1288 = vld [vmem:[#allocation2 + $0x5f] sm:$0xff]
        %v1289 = vld [vmem:[#allocation2 + $0x67] sm:$0xff]
        %v1290 = vld [vmem:[#allocation2 + $0x6f] sm:$0xff]
        %v1291 = vld [vmem:[#allocation2 + $0x77] sm:$0xff]
        %v1292 = vld [vmem:[#allocation2 + $0x7f] sm:$0xff]
        %v1293 = vld [vmem:[#allocation2 + $0x87] sm:$0xff]
        %v1294 = vld [vmem:[#allocation2 + $0x8f] sm:$0xff]
        %v1295 = vld [vmem:[#allocation2 + $0x97] sm:$0xff]
        %v1296 = vld [vmem:[#allocation2 + $0x9f] sm:$0xff]
        %v1297 = vld [vmem:[#allocation2 + $0xa7] sm:$0xff]
        %v1298 = vld [vmem:[#allocation2 + $0xaf] sm:$0xff]
        %v1299 = vld [vmem:[#allocation2 + $0xb7] sm:$0xff]
        %v1300 = vld [vmem:[#allocation2 + $0xbf] sm:$0xff]
        %v1301 = vld [vmem:[#allocation2 + $0xc7] sm:$0xff]
        %v1302 = vld [vmem:[#allocation2 + $0xcf] sm:$0xff]
        %v1303 = vld [vmem:[#allocation2 + $0xd7] sm:$0xff]
        %v1304 = vld [vmem:[#allocation2 + $0xdf] sm:$0xff]
        %v1305 = vld [vmem:[#allocation2 + $0xe7] sm:$0xff]
        %v1306 = vld [vmem:[#allocation2 + $0xef] sm:$0xff]
        %v1307 = vld [vmem:[#allocation2 + $0xf7] sm:$0xff]
        %v1308 = vld [vmem:[#allocation2 + $0xff] sm:$0xff]
        %v1309 = vld [vmem:[#allocation2 + $0x107] sm:$0xff]
        %v1310 = vmul.f32 %v1278, %v1150
        %v1311 = vmul.f32 %v1279, %v1151
        %v1312 = vmul.f32 %v1280, %v1152
        %v1313 = vmul.f32 %v1281, %v1153
        %v1314 = vmul.f32 %v1282, %v1154
        %v1315 = vmul.f32 %v1283, %v1155
        %v1316 = vmul.f32 %v1284, %v1156
        %v1317 = vmul.f32 %v1285, %v1157
        %v1318 = vmul.f32 %v1286, %v1158
        %v1319 = vmul.f32 %v1287, %v1159
        %v1320 = vmul.f32 %v1288, %v1160
        %v1321 = vmul.f32 %v1289, %v1161
        %v1322 = vmul.f32 %v1290, %v1162
        %v1323 = vmul.f32 %v1291, %v1163
        %v1324 = vmul.f32 %v1292, %v1164
        %v1325 = vmul.f32 %v1293, %v1165
        %v1326 = vmul.f32 %v1294, %v1166
        %v1327 = vmul.f32 %v1295, %v1167
        %v1328 = vmul.f32 %v1296, %v1168
        %v1329 = vmul.f32 %v1297, %v1169
        %v1330 = vmul.f32 %v1298, %v1170
        %v1331 = vmul.f32 %v1299, %v1171
        %v1332 = vmul.f32 %v1300, %v1172
        %v1333 = vmul.f32 %v1301, %v1173
        %v1334 = vmul.f32 %v1302, %v1174
        %v1335 = vmul.f32 %v1303, %v1175
        %v1336 = vmul.f32 %v1304, %v1176
        %v1337 = vmul.f32 %v1305, %v1177
        %v1338 = vmul.f32 %v1306, %v1178
        %v1339 = vmul.f32 %v1307, %v1179
        %v1340 = vmul.f32 %v1308, %v1180
        %v1341 = vmul.f32 %v1309, %v1181
        %1342 = vst.msk [vmem:[#allocation3 + $0x10] sm:$0xff] %vm624, %v1310
        %1343 = vst.msk [vmem:[#allocation3 + $0x18] sm:$0xff] %vm624, %v1311
        %1344 = vst.msk [vmem:[#allocation3 + $0x20] sm:$0xff] %vm624, %v1312
        %1345 = vst.msk [vmem:[#allocation3 + $0x28] sm:$0xff] %vm624, %v1313
        %1346 = vst.msk [vmem:[#allocation3 + $0x30] sm:$0xff] %vm624, %v1314
        %1347 = vst.msk [vmem:[#allocation3 + $0x38] sm:$0xff] %vm624, %v1315
        %1348 = vst.msk [vmem:[#allocation3 + $0x40] sm:$0xff] %vm624, %v1316
        %1349 = vst.msk [vmem:[#allocation3 + $0x48] sm:$0xff] %vm624, %v1317
        %1350 = vst.msk [vmem:[#allocation3 + $0x50] sm:$0xff] %vm624, %v1318
        %1351 = vst.msk [vmem:[#allocation3 + $0x58] sm:$0xff] %vm624, %v1319
        %1352 = vst.msk [vmem:[#allocation3 + $0x60] sm:$0xff] %vm624, %v1320
        %1353 = vst.msk [vmem:[#allocation3 + $0x68] sm:$0xff] %vm624, %v1321
        %1354 = vst.msk [vmem:[#allocation3 + $0x70] sm:$0xff] %vm624, %v1322
        %1355 = vst.msk [vmem:[#allocation3 + $0x78] sm:$0xff] %vm624, %v1323
        %1356 = vst.msk [vmem:[#allocation3 + $0x80] sm:$0xff] %vm624, %v1324
        %1357 = vst.msk [vmem:[#allocation3 + $0x88] sm:$0xff] %vm624, %v1325
        %1358 = vst.msk [vmem:[#allocation3 + $0x90] sm:$0xff] %vm624, %v1326
        %1359 = vst.msk [vmem:[#allocation3 + $0x98] sm:$0xff] %vm624, %v1327
        %1360 = vst.msk [vmem:[#allocation3 + $0xa0] sm:$0xff] %vm624, %v1328
        %1361 = vst.msk [vmem:[#allocation3 + $0xa8] sm:$0xff] %vm624, %v1329
        %1362 = vst.msk [vmem:[#allocation3 + $0xb0] sm:$0xff] %vm624, %v1330
        %1363 = vst.msk [vmem:[#allocation3 + $0xb8] sm:$0xff] %vm624, %v1331
        %1364 = vst.msk [vmem:[#allocation3 + $0xc0] sm:$0xff] %vm624, %v1332
        %1365 = vst.msk [vmem:[#allocation3 + $0xc8] sm:$0xff] %vm624, %v1333
        %1366 = vst.msk [vmem:[#allocation3 + $0xd0] sm:$0xff] %vm624, %v1334
        %1367 = vst.msk [vmem:[#allocation3 + $0xd8] sm:$0xff] %vm624, %v1335
        %1368 = vst.msk [vmem:[#allocation3 + $0xe0] sm:$0xff] %vm624, %v1336
        %1369 = vst.msk [vmem:[#allocation3 + $0xe8] sm:$0xff] %vm624, %v1337
        %1370 = vst.msk [vmem:[#allocation3 + $0xf0] sm:$0xff] %vm624, %v1338
        %1371 = vst.msk [vmem:[#allocation3 + $0xf8] sm:$0xff] %vm624, %v1339
        %1372 = vst.msk [vmem:[#allocation3 + $0x100] sm:$0xff] %vm624, %v1340
        %1373 = vst.msk [vmem:[#allocation3 + $0x108] sm:$0xff] %vm624, %v1341
        %v1374 = vld [vmem:[#allocation2 + $0x11] sm:$0xff]
        %v1375 = vld [vmem:[#allocation2 + $0x19] sm:$0xff]
        %v1376 = vld [vmem:[#allocation2 + $0x21] sm:$0xff]
        %v1377 = vld [vmem:[#allocation2 + $0x29] sm:$0xff]
        %v1378 = vld [vmem:[#allocation2 + $0x31] sm:$0xff]
        %v1379 = vld [vmem:[#allocation2 + $0x39] sm:$0xff]
        %v1380 = vld [vmem:[#allocation2 + $0x41] sm:$0xff]
        %v1381 = vld [vmem:[#allocation2 + $0x49] sm:$0xff]
        %v1382 = vld [vmem:[#allocation2 + $0x51] sm:$0xff]
        %v1383 = vld [vmem:[#allocation2 + $0x59] sm:$0xff]
        %v1384 = vld [vmem:[#allocation2 + $0x61] sm:$0xff]
        %v1385 = vld [vmem:[#allocation2 + $0x69] sm:$0xff]
        %v1386 = vld [vmem:[#allocation2 + $0x71] sm:$0xff]
        %v1387 = vld [vmem:[#allocation2 + $0x79] sm:$0xff]
        %v1388 = vld [vmem:[#allocation2 + $0x81] sm:$0xff]
        %v1389 = vld [vmem:[#allocation2 + $0x89] sm:$0xff]
        %v1390 = vld [vmem:[#allocation2 + $0x91] sm:$0xff]
        %v1391 = vld [vmem:[#allocation2 + $0x99] sm:$0xff]
        %v1392 = vld [vmem:[#allocation2 + $0xa1] sm:$0xff]
        %v1393 = vld [vmem:[#allocation2 + $0xa9] sm:$0xff]
        %v1394 = vld [vmem:[#allocation2 + $0xb1] sm:$0xff]
        %v1395 = vld [vmem:[#allocation2 + $0xb9] sm:$0xff]
        %v1396 = vld [vmem:[#allocation2 + $0xc1] sm:$0xff]
        %v1397 = vld [vmem:[#allocation2 + $0xc9] sm:$0xff]
        %v1398 = vld [vmem:[#allocation2 + $0xd1] sm:$0xff]
        %v1399 = vld [vmem:[#allocation2 + $0xd9] sm:$0xff]
        %v1400 = vld [vmem:[#allocation2 + $0xe1] sm:$0xff]
        %v1401 = vld [vmem:[#allocation2 + $0xe9] sm:$0xff]
        %v1402 = vld [vmem:[#allocation2 + $0xf1] sm:$0xff]
        %v1403 = vld [vmem:[#allocation2 + $0xf9] sm:$0xff]
        %v1404 = vld [vmem:[#allocation2 + $0x101] sm:$0xff]
        %v1405 = vld [vmem:[#allocation2 + $0x109] sm:$0xff]
        %v1406 = vmul.f32 %v1374, %v1246
        %v1407 = vmul.f32 %v1375, %v1247
        %v1408 = vmul.f32 %v1376, %v1248
        %v1409 = vmul.f32 %v1377, %v1249
        %v1410 = vmul.f32 %v1378, %v1250
        %v1411 = vmul.f32 %v1379, %v1251
        %v1412 = vmul.f32 %v1380, %v1252
        %v1413 = vmul.f32 %v1381, %v1253
        %v1414 = vmul.f32 %v1382, %v1254
        %v1415 = vmul.f32 %v1383, %v1255
        %v1416 = vmul.f32 %v1384, %v1256
        %v1417 = vmul.f32 %v1385, %v1257
        %v1418 = vmul.f32 %v1386, %v1258
        %v1419 = vmul.f32 %v1387, %v1259
        %v1420 = vmul.f32 %v1388, %v1260
        %v1421 = vmul.f32 %v1389, %v1261
        %v1422 = vmul.f32 %v1390, %v1262
        %v1423 = vmul.f32 %v1391, %v1263
        %v1424 = vmul.f32 %v1392, %v1264
        %v1425 = vmul.f32 %v1393, %v1265
        %v1426 = vmul.f32 %v1394, %v1266
        %v1427 = vmul.f32 %v1395, %v1267
        %v1428 = vmul.f32 %v1396, %v1268
        %v1429 = vmul.f32 %v1397, %v1269
        %v1430 = vmul.f32 %v1398, %v1270
        %v1431 = vmul.f32 %v1399, %v1271
        %v1432 = vmul.f32 %v1400, %v1272
        %v1433 = vmul.f32 %v1401, %v1273
        %v1434 = vmul.f32 %v1402, %v1274
        %v1435 = vmul.f32 %v1403, %v1275
        %v1436 = vmul.f32 %v1404, %v1276
        %v1437 = vmul.f32 %v1405, %v1277
        %1438 = vst.msk [vmem:[#allocation4 + $0x10] sm:$0xff] %vm624, %v1406
        %1439 = vst.msk [vmem:[#allocation4 + $0x18] sm:$0xff] %vm624, %v1407
        %1440 = vst.msk [vmem:[#allocation4 + $0x20] sm:$0xff] %vm624, %v1408
        %1441 = vst.msk [vmem:[#allocation4 + $0x28] sm:$0xff] %vm624, %v1409
        %1442 = vst.msk [vmem:[#allocation4 + $0x30] sm:$0xff] %vm624, %v1410
        %1443 = vst.msk [vmem:[#allocation4 + $0x38] sm:$0xff] %vm624, %v1411
        %1444 = vst.msk [vmem:[#allocation4 + $0x40] sm:$0xff] %vm624, %v1412
        %1445 = vst.msk [vmem:[#allocation4 + $0x48] sm:$0xff] %vm624, %v1413
        %1446 = vst.msk [vmem:[#allocation4 + $0x50] sm:$0xff] %vm624, %v1414
        %1447 = vst.msk [vmem:[#allocation4 + $0x58] sm:$0xff] %vm624, %v1415
        %1448 = vst.msk [vmem:[#allocation4 + $0x60] sm:$0xff] %vm624, %v1416
        %1449 = vst.msk [vmem:[#allocation4 + $0x68] sm:$0xff] %vm624, %v1417
        %1450 = vst.msk [vmem:[#allocation4 + $0x70] sm:$0xff] %vm624, %v1418
        %1451 = vst.msk [vmem:[#allocation4 + $0x78] sm:$0xff] %vm624, %v1419
        %1452 = vst.msk [vmem:[#allocation4 + $0x80] sm:$0xff] %vm624, %v1420
        %1453 = vst.msk [vmem:[#allocation4 + $0x88] sm:$0xff] %vm624, %v1421
        %1454 = vst.msk [vmem:[#allocation4 + $0x90] sm:$0xff] %vm624, %v1422
        %1455 = vst.msk [vmem:[#allocation4 + $0x98] sm:$0xff] %vm624, %v1423
        %1456 = vst.msk [vmem:[#allocation4 + $0xa0] sm:$0xff] %vm624, %v1424
        %1457 = vst.msk [vmem:[#allocation4 + $0xa8] sm:$0xff] %vm624, %v1425
        %1458 = vst.msk [vmem:[#allocation4 + $0xb0] sm:$0xff] %vm624, %v1426
        %1459 = vst.msk [vmem:[#allocation4 + $0xb8] sm:$0xff] %vm624, %v1427
        %1460 = vst.msk [vmem:[#allocation4 + $0xc0] sm:$0xff] %vm624, %v1428
        %1461 = vst.msk [vmem:[#allocation4 + $0xc8] sm:$0xff] %vm624, %v1429
        %1462 = vst.msk [vmem:[#allocation4 + $0xd0] sm:$0xff] %vm624, %v1430
        %1463 = vst.msk [vmem:[#allocation4 + $0xd8] sm:$0xff] %vm624, %v1431
        %1464 = vst.msk [vmem:[#allocation4 + $0xe0] sm:$0xff] %vm624, %v1432
        %1465 = vst.msk [vmem:[#allocation4 + $0xe8] sm:$0xff] %vm624, %v1433
        %1466 = vst.msk [vmem:[#allocation4 + $0xf0] sm:$0xff] %vm624, %v1434
        %1467 = vst.msk [vmem:[#allocation4 + $0xf8] sm:$0xff] %vm624, %v1435
        %1468 = vst.msk [vmem:[#allocation4 + $0x100] sm:$0xff] %vm624, %v1436
        %1469 = vst.msk [vmem:[#allocation4 + $0x108] sm:$0xff] %vm624, %v1437
        %v1470 = vld [vmem:[#allocation3] sm:$0xff]
        %v1471 = vld [vmem:[#allocation3 + $0x8] sm:$0xff]
        %v1472 = vld [vmem:[#allocation3 + $0x10] sm:$0xff]
        %v1473 = vld [vmem:[#allocation3 + $0x18] sm:$0xff]
        %v1474 = vld [vmem:[#allocation3 + $0x20] sm:$0xff]
        %v1475 = vld [vmem:[#allocation3 + $0x28] sm:$0xff]
        %v1476 = vld [vmem:[#allocation3 + $0x30] sm:$0xff]
        %v1477 = vld [vmem:[#allocation3 + $0x38] sm:$0xff]
        %v1478 = vld [vmem:[#allocation3 + $0x40] sm:$0xff]
        %v1479 = vld [vmem:[#allocation3 + $0x48] sm:$0xff]
        %v1480 = vld [vmem:[#allocation3 + $0x50] sm:$0xff]
        %v1481 = vld [vmem:[#allocation3 + $0x58] sm:$0xff]
        %v1482 = vld [vmem:[#allocation3 + $0x60] sm:$0xff]
        %v1483 = vld [vmem:[#allocation3 + $0x68] sm:$0xff]
        %v1484 = vld [vmem:[#allocation3 + $0x70] sm:$0xff]
        %v1485 = vld [vmem:[#allocation3 + $0x78] sm:$0xff]
        %v1486 = vld [vmem:[#allocation3 + $0x80] sm:$0xff]
        %v1487 = vld [vmem:[#allocation3 + $0x88] sm:$0xff]
        %v1488 = vld [vmem:[#allocation3 + $0x90] sm:$0xff]
        %v1489 = vld [vmem:[#allocation3 + $0x98] sm:$0xff]
        %v1490 = vld [vmem:[#allocation3 + $0xa0] sm:$0xff]
        %v1491 = vld [vmem:[#allocation3 + $0xa8] sm:$0xff]
        %v1492 = vld [vmem:[#allocation3 + $0xb0] sm:$0xff]
        %v1493 = vld [vmem:[#allocation3 + $0xb8] sm:$0xff]
        %v1494 = vld [vmem:[#allocation3 + $0xc0] sm:$0xff]
        %v1495 = vld [vmem:[#allocation3 + $0xc8] sm:$0xff]
        %v1496 = vld [vmem:[#allocation3 + $0xd0] sm:$0xff]
        %v1497 = vld [vmem:[#allocation3 + $0xd8] sm:$0xff]
        %v1498 = vld [vmem:[#allocation3 + $0xe0] sm:$0xff]
        %v1499 = vld [vmem:[#allocation3 + $0xe8] sm:$0xff]
        %v1500 = vld [vmem:[#allocation3 + $0xf0] sm:$0xff]
        %v1501 = vld [vmem:[#allocation3 + $0xf8] sm:$0xff]
        %v1502 = vld [vmem:[#allocation8] sm:$0xff]
        %v1503 = vld [vmem:[#allocation8 + $0x8] sm:$0xff]
        %v1504 = vld [vmem:[#allocation8 + $0x10] sm:$0xff]
        %v1505 = vld [vmem:[#allocation8 + $0x18] sm:$0xff]
        %v1506 = vld [vmem:[#allocation2] sm:$0xff]
        %v1507 = vld [vmem:[#allocation2 + $0x8] sm:$0xff]
        %v1508 = vld [vmem:[#allocation2 + $0x10] sm:$0xff]
        %v1509 = vld [vmem:[#allocation2 + $0x18] sm:$0xff]
        %v1510 = vld [vmem:[#allocation2 + $0x20] sm:$0xff]
        %v1511 = vld [vmem:[#allocation2 + $0x28] sm:$0xff]
        %v1512 = vld [vmem:[#allocation2 + $0x30] sm:$0xff]
        %v1513 = vld [vmem:[#allocation2 + $0x38] sm:$0xff]
        %v1514 = vld [vmem:[#allocation2 + $0x40] sm:$0xff]
        %v1515 = vld [vmem:[#allocation2 + $0x48] sm:$0xff]
        %v1516 = vld [vmem:[#allocation2 + $0x50] sm:$0xff]
        %v1517 = vld [vmem:[#allocation2 + $0x58] sm:$0xff]
        %v1518 = vld [vmem:[#allocation2 + $0x60] sm:$0xff]
        %v1519 = vld [vmem:[#allocation2 + $0x68] sm:$0xff]
        %v1520 = vld [vmem:[#allocation2 + $0x70] sm:$0xff]
        %v1521 = vld [vmem:[#allocation2 + $0x78] sm:$0xff]
        %v1522 = vld [vmem:[#allocation2 + $0x80] sm:$0xff]
        %v1523 = vld [vmem:[#allocation2 + $0x88] sm:$0xff]
        %v1524 = vld [vmem:[#allocation2 + $0x90] sm:$0xff]
        %v1525 = vld [vmem:[#allocation2 + $0x98] sm:$0xff]
        %v1526 = vld [vmem:[#allocation2 + $0xa0] sm:$0xff]
        %v1527 = vld [vmem:[#allocation2 + $0xa8] sm:$0xff]
        %v1528 = vld [vmem:[#allocation2 + $0xb0] sm:$0xff]
        %v1529 = vld [vmem:[#allocation2 + $0xb8] sm:$0xff]
        %v1530 = vld [vmem:[#allocation2 + $0xc0] sm:$0xff]
        %v1531 = vld [vmem:[#allocation2 + $0xc8] sm:$0xff]
        %v1532 = vld [vmem:[#allocation2 + $0xd0] sm:$0xff]
        %v1533 = vld [vmem:[#allocation2 + $0xd8] sm:$0xff]
        %v1534 = vld [vmem:[#allocation2 + $0xe0] sm:$0xff]
        %v1535 = vld [vmem:[#allocation2 + $0xe8] sm:$0xff]
        %v1536 = vld [vmem:[#allocation2 + $0xf0] sm:$0xff]
        %v1537 = vld [vmem:[#allocation2 + $0xf8] sm:$0xff]
        %s1538 = scalar_lea.vmem [#allocation8], 32
        %v1539 = vld [vmem:[%s1538] sm:$0xff]
        %v1540 = vld [vmem:[%s1538 + $0x8] sm:$0xff]
        %v1541 = vld [vmem:[%s1538 + $0x10] sm:$0xff]
        %v1542 = vld [vmem:[%s1538 + $0x18] sm:$0xff]
        %v1544 = vsel %vm624, %v1506, 0
        %v1547 = vsel %vm624, %v1507, 0
        %v1550 = vsel %vm624, %v1508, 0
        %v1553 = vsel %vm624, %v1509, 0
        %v1556 = vsel %vm624, %v1510, 0
        %v1559 = vsel %vm624, %v1511, 0
        %v1562 = vsel %vm624, %v1512, 0
        %v1565 = vsel %vm624, %v1513, 0
        %v1568 = vsel %vm624, %v1514, 0
        %v1571 = vsel %vm624, %v1515, 0
        %v1574 = vsel %vm624, %v1516, 0
        %v1577 = vsel %vm624, %v1517, 0
        %v1580 = vsel %vm624, %v1518, 0
        %v1583 = vsel %vm624, %v1519, 0
        %v1586 = vsel %vm624, %v1520, 0
        %v1589 = vsel %vm624, %v1521, 0
        %v1592 = vsel %vm624, %v1522, 0
        %v1595 = vsel %vm624, %v1523, 0
        %v1598 = vsel %vm624, %v1524, 0
        %v1601 = vsel %vm624, %v1525, 0
        %v1604 = vsel %vm624, %v1526, 0
        %v1607 = vsel %vm624, %v1527, 0
        %v1610 = vsel %vm624, %v1528, 0
        %v1613 = vsel %vm624, %v1529, 0
        %v1616 = vsel %vm624, %v1530, 0
        %v1619 = vsel %vm624, %v1531, 0
        %v1622 = vsel %vm624, %v1532, 0
        %v1625 = vsel %vm624, %v1533, 0
        %v1628 = vsel %vm624, %v1534, 0
        %v1631 = vsel %vm624, %v1535, 0
        %v1634 = vsel %vm624, %v1536, 0
        %v1637 = vsel %vm624, %v1537, 0
        %1639 = vmatprep.subr.mxu0 0.0
        %1640 = vmatpush1.msra.mxu0 %v1539
        %1641 = vmatprep.subr.mxu0 0.0
        %1642 = vmatpush1.msra.mxu0 %v1540
        %1643 = vmatprep.subr.mxu0 0.0
        %1644 = vmatpush1.msra.mxu0 %v1541
        %1645 = vmatprep.subr.mxu0 0.0
        %1646 = vmatpush1.msra.mxu0 %v1542
        %1647 = vmatprep.subr.mxu0 0.0
        %1648 = vmatpush1.msra.mxu0 0.0
        %1649 = vmatprep.subr.mxu0 0.0
        %1650 = vmatpush1.msra.mxu0 0.0
        %1651 = vmatprep.subr.mxu0 0.0
        %1652 = vmatpush1.msra.mxu0 0.0
        %1653 = vmatprep.subr.mxu0 0.0
        %1654 = vmatpush1.msra.mxu0 0.0
        %1655 = vmatprep.subr.mxu0 0.0
        %1656 = vmatpush1.msra.mxu0 0.0
        %1657 = vmatprep.subr.mxu0 0.0
        %1658 = vmatpush1.msra.mxu0 0.0
        %1659 = vmatprep.subr.mxu0 0.0
        %1660 = vmatpush1.msra.mxu0 0.0
        %1661 = vmatprep.subr.mxu0 0.0
        %1662 = vmatpush1.msra.mxu0 0.0
        %1663 = vmatprep.subr.mxu0 0.0
        %1664 = vmatpush1.msra.mxu0 0.0
        %1665 = vmatprep.subr.mxu0 0.0
        %1666 = vmatpush1.msra.mxu0 0.0
        %1667 = vmatprep.subr.mxu0 0.0
        %1668 = vmatpush1.msra.mxu0 0.0
        %1669 = vmatprep.subr.mxu0 0.0
        %1670 = vmatpush1.msra.mxu0 0.0
        %1671 = vmatprep.subr.mxu0 0.0
        %1672 = vmatpush1.msra.mxu0 0.0
        %1673 = vmatprep.subr.mxu0 0.0
        %1674 = vmatpush1.msra.mxu0 0.0
        %1675 = vmatprep.subr.mxu0 0.0
        %1676 = vmatpush1.msra.mxu0 0.0
        %1677 = vmatprep.subr.mxu0 0.0
        %1678 = vmatpush1.msra.mxu0 0.0
        %1679 = vmatprep.subr.mxu0 0.0
        %1680 = vmatpush1.msra.mxu0 0.0
        %1681 = vmatprep.subr.mxu0 0.0
        %1682 = vmatpush1.msra.mxu0 0.0
        %1683 = vmatprep.subr.mxu0 0.0
        %1684 = vmatpush1.msra.mxu0 0.0
        %1685 = vmatprep.subr.mxu0 0.0
        %1686 = vmatpush1.msra.mxu0 0.0
        %1687 = vmatprep.subr.mxu0 0.0
        %1688 = vmatpush1.msra.mxu0 0.0
        %1689 = vmatprep.subr.mxu0 0.0
        %1690 = vmatpush1.msra.mxu0 0.0
        %1691 = vmatprep.subr.mxu0 0.0
        %1692 = vmatpush1.msra.mxu0 0.0
        %1693 = vmatprep.subr.mxu0 0.0
        %1694 = vmatpush1.msra.mxu0 0.0
        %1695 = vmatprep.subr.mxu0 0.0
        %1696 = vmatpush1.msra.mxu0 0.0
        %1697 = vmatprep.subr.mxu0 0.0
        %1698 = vmatpush1.msra.mxu0 0.0
        %1699 = vmatprep.subr.mxu0 0.0
        %1700 = vmatpush1.msra.mxu0 0.0
        %1701 = vmatprep.subr.mxu0 0.0
        %1702 = vmatpush1.msra.mxu0 0.0
        %1703 = vmatprep.mubr.f32.mxu0 0.0
        %1704 = vmatmul.mubr.f32.gmra.mrb[0].mxu0 %v1544
        %v1705 = vpop.f32.mrb[0].mxu0
        %v1706 = vadd.f32 0.0, %v1705
        %v1707 = vpop.f32.mrb[0].mxu0
        %1708 = vmatprep.mubr.f32.mxu0 0.0
        %1709 = vmatmul.mubr.f32.gmra.mrb[0].mxu0 %v1547
        %v1710 = vpop.f32.mrb[0].mxu0
        %v1711 = vadd.f32 0.0, %v1710
        %v1712 = vpop.f32.mrb[0].mxu0
        %1713 = vmatprep.mubr.f32.mxu0 0.0
        %1714 = vmatmul.mubr.f32.gmra.mrb[0].mxu0 %v1550
        %v1715 = vpop.f32.mrb[0].mxu0
        %v1716 = vadd.f32 0.0, %v1715
        %v1717 = vpop.f32.mrb[0].mxu0
        %1718 = vmatprep.mubr.f32.mxu0 0.0
        %1719 = vmatmul.mubr.f32.gmra.mrb[0].mxu0 %v1553
        %v1720 = vpop.f32.mrb[0].mxu0
        %v1721 = vadd.f32 0.0, %v1720
        %v1722 = vpop.f32.mrb[0].mxu0
        %1723 = vmatprep.mubr.f32.mxu0 0.0
        %1724 = vmatmul.mubr.f32.gmra.mrb[0].mxu0 %v1556
        %v1725 = vpop.f32.mrb[0].mxu0
        %v1726 = vadd.f32 0.0, %v1725
        %v1727 = vpop.f32.mrb[0].mxu0
        %1728 = vmatprep.mubr.f32.mxu0 0.0
        %1729 = vmatmul.mubr.f32.gmra.mrb[0].mxu0 %v1559
        %v1730 = vpop.f32.mrb[0].mxu0
        %v1731 = vadd.f32 0.0, %v1730
        %v1732 = vpop.f32.mrb[0].mxu0
        %1733 = vmatprep.mubr.f32.mxu0 0.0
        %1734 = vmatmul.mubr.f32.gmra.mrb[0].mxu0 %v1562
        %v1735 = vpop.f32.mrb[0].mxu0
        %v1736 = vadd.f32 0.0, %v1735
        %v1737 = vpop.f32.mrb[0].mxu0
        %1738 = vmatprep.mubr.f32.mxu0 0.0
        %1739 = vmatmul.mubr.f32.gmra.mrb[0].mxu0 %v1565
        %v1740 = vpop.f32.mrb[0].mxu0
        %v1741 = vadd.f32 0.0, %v1740
        %v1742 = vpop.f32.mrb[0].mxu0
        %1743 = vmatprep.mubr.f32.mxu0 0.0
        %1744 = vmatmul.mubr.f32.gmra.mrb[0].mxu0 %v1568
        %v1745 = vpop.f32.mrb[0].mxu0
        %v1746 = vadd.f32 0.0, %v1745
        %v1747 = vpop.f32.mrb[0].mxu0
        %1748 = vmatprep.mubr.f32.mxu0 0.0
        %1749 = vmatmul.mubr.f32.gmra.mrb[0].mxu0 %v1571
        %v1750 = vpop.f32.mrb[0].mxu0
        %v1751 = vadd.f32 0.0, %v1750
        %v1752 = vpop.f32.mrb[0].mxu0
        %1753 = vmatprep.mubr.f32.mxu0 0.0
        %1754 = vmatmul.mubr.f32.gmra.mrb[0].mxu0 %v1574
        %v1755 = vpop.f32.mrb[0].mxu0
        %v1756 = vadd.f32 0.0, %v1755
        %v1757 = vpop.f32.mrb[0].mxu0
        %1758 = vmatprep.mubr.f32.mxu0 0.0
        %1759 = vmatmul.mubr.f32.gmra.mrb[0].mxu0 %v1577
        %v1760 = vpop.f32.mrb[0].mxu0
        %v1761 = vadd.f32 0.0, %v1760
        %v1762 = vpop.f32.mrb[0].mxu0
        %1763 = vmatprep.mubr.f32.mxu0 0.0
        %1764 = vmatmul.mubr.f32.gmra.mrb[0].mxu0 %v1580
        %v1765 = vpop.f32.mrb[0].mxu0
        %v1766 = vadd.f32 0.0, %v1765
        %v1767 = vpop.f32.mrb[0].mxu0
        %1768 = vmatprep.mubr.f32.mxu0 0.0
        %1769 = vmatmul.mubr.f32.gmra.mrb[0].mxu0 %v1583
        %v1770 = vpop.f32.mrb[0].mxu0
        %v1771 = vadd.f32 0.0, %v1770
        %v1772 = vpop.f32.mrb[0].mxu0
        %1773 = vmatprep.mubr.f32.mxu0 0.0
        %1774 = vmatmul.mubr.f32.gmra.mrb[0].mxu0 %v1586
        %v1775 = vpop.f32.mrb[0].mxu0
        %v1776 = vadd.f32 0.0, %v1775
        %v1777 = vpop.f32.mrb[0].mxu0
        %1778 = vmatprep.mubr.f32.mxu0 0.0
        %1779 = vmatmul.mubr.f32.gmra.mrb[0].mxu0 %v1589
        %v1780 = vpop.f32.mrb[0].mxu0
        %v1781 = vadd.f32 0.0, %v1780
        %v1782 = vpop.f32.mrb[0].mxu0
        %1783 = vmatprep.mubr.f32.mxu0 0.0
        %1784 = vmatmul.mubr.f32.gmra.mrb[0].mxu0 %v1592
        %v1785 = vpop.f32.mrb[0].mxu0
        %v1786 = vadd.f32 0.0, %v1785
        %v1787 = vpop.f32.mrb[0].mxu0
        %1788 = vmatprep.mubr.f32.mxu0 0.0
        %1789 = vmatmul.mubr.f32.gmra.mrb[0].mxu0 %v1595
        %v1790 = vpop.f32.mrb[0].mxu0
        %v1791 = vadd.f32 0.0, %v1790
        %v1792 = vpop.f32.mrb[0].mxu0
        %1793 = vmatprep.mubr.f32.mxu0 0.0
        %1794 = vmatmul.mubr.f32.gmra.mrb[0].mxu0 %v1598
        %v1795 = vpop.f32.mrb[0].mxu0
        %v1796 = vadd.f32 0.0, %v1795
        %v1797 = vpop.f32.mrb[0].mxu0
        %1798 = vmatprep.mubr.f32.mxu0 0.0
        %1799 = vmatmul.mubr.f32.gmra.mrb[0].mxu0 %v1601
        %v1800 = vpop.f32.mrb[0].mxu0
        %v1801 = vadd.f32 0.0, %v1800
        %v1802 = vpop.f32.mrb[0].mxu0
        %1803 = vmatprep.mubr.f32.mxu0 0.0
        %1804 = vmatmul.mubr.f32.gmra.mrb[0].mxu0 %v1604
        %v1805 = vpop.f32.mrb[0].mxu0
        %v1806 = vadd.f32 0.0, %v1805
        %v1807 = vpop.f32.mrb[0].mxu0
        %1808 = vmatprep.mubr.f32.mxu0 0.0
        %1809 = vmatmul.mubr.f32.gmra.mrb[0].mxu0 %v1607
        %v1810 = vpop.f32.mrb[0].mxu0
        %v1811 = vadd.f32 0.0, %v1810
        %v1812 = vpop.f32.mrb[0].mxu0
        %1813 = vmatprep.mubr.f32.mxu0 0.0
        %1814 = vmatmul.mubr.f32.gmra.mrb[0].mxu0 %v1610
        %v1815 = vpop.f32.mrb[0].mxu0
        %v1816 = vadd.f32 0.0, %v1815
        %v1817 = vpop.f32.mrb[0].mxu0
        %1818 = vmatprep.mubr.f32.mxu0 0.0
        %1819 = vmatmul.mubr.f32.gmra.mrb[0].mxu0 %v1613
        %v1820 = vpop.f32.mrb[0].mxu0
        %v1821 = vadd.f32 0.0, %v1820
        %v1822 = vpop.f32.mrb[0].mxu0
        %1823 = vmatprep.mubr.f32.mxu0 0.0
        %1824 = vmatmul.mubr.f32.gmra.mrb[0].mxu0 %v1616
        %v1825 = vpop.f32.mrb[0].mxu0
        %v1826 = vadd.f32 0.0, %v1825
        %v1827 = vpop.f32.mrb[0].mxu0
        %1828 = vmatprep.mubr.f32.mxu0 0.0
        %1829 = vmatmul.mubr.f32.gmra.mrb[0].mxu0 %v1619
        %v1830 = vpop.f32.mrb[0].mxu0
        %v1831 = vadd.f32 0.0, %v1830
        %v1832 = vpop.f32.mrb[0].mxu0
        %1833 = vmatprep.mubr.f32.mxu0 0.0
        %1834 = vmatmul.mubr.f32.gmra.mrb[0].mxu0 %v1622
        %v1835 = vpop.f32.mrb[0].mxu0
        %v1836 = vadd.f32 0.0, %v1835
        %v1837 = vpop.f32.mrb[0].mxu0
        %1838 = vmatprep.mubr.f32.mxu0 0.0
        %1839 = vmatmul.mubr.f32.gmra.mrb[0].mxu0 %v1625
        %v1840 = vpop.f32.mrb[0].mxu0
        %v1841 = vadd.f32 0.0, %v1840
        %v1842 = vpop.f32.mrb[0].mxu0
        %1843 = vmatprep.mubr.f32.mxu0 0.0
        %1844 = vmatmul.mubr.f32.gmra.mrb[0].mxu0 %v1628
        %v1845 = vpop.f32.mrb[0].mxu0
        %v1846 = vadd.f32 0.0, %v1845
        %v1847 = vpop.f32.mrb[0].mxu0
        %1848 = vmatprep.mubr.f32.mxu0 0.0
        %1849 = vmatmul.mubr.f32.gmra.mrb[0].mxu0 %v1631
        %v1850 = vpop.f32.mrb[0].mxu0
        %v1851 = vadd.f32 0.0, %v1850
        %v1852 = vpop.f32.mrb[0].mxu0
        %1853 = vmatprep.mubr.f32.mxu0 0.0
        %1854 = vmatmul.mubr.f32.gmra.mrb[0].mxu0 %v1634
        %v1855 = vpop.f32.mrb[0].mxu0
        %v1856 = vadd.f32 0.0, %v1855
        %v1857 = vpop.f32.mrb[0].mxu0
        %1858 = vmatprep.mubr.f32.mxu0 0.0
        %1859 = vmatmul.mubr.f32.gmra.mrb[0].mxu0 %v1637
        %v1860 = vpop.f32.mrb[0].mxu0
        %v1861 = vadd.f32 0.0, %v1860
        %v1862 = vpop.f32.mrb[0].mxu0
        %1863 = vdwg.mxu0
        %v1865 = vsel %vm624, %v1470, 0
        %v1868 = vsel %vm624, %v1471, 0
        %v1871 = vsel %vm624, %v1472, 0
        %v1874 = vsel %vm624, %v1473, 0
        %v1877 = vsel %vm624, %v1474, 0
        %v1880 = vsel %vm624, %v1475, 0
        %v1883 = vsel %vm624, %v1476, 0
        %v1886 = vsel %vm624, %v1477, 0
        %v1889 = vsel %vm624, %v1478, 0
        %v1892 = vsel %vm624, %v1479, 0
        %v1895 = vsel %vm624, %v1480, 0
        %v1898 = vsel %vm624, %v1481, 0
        %v1901 = vsel %vm624, %v1482, 0
        %v1904 = vsel %vm624, %v1483, 0
        %v1907 = vsel %vm624, %v1484, 0
        %v1910 = vsel %vm624, %v1485, 0
        %v1913 = vsel %vm624, %v1486, 0
        %v1916 = vsel %vm624, %v1487, 0
        %v1919 = vsel %vm624, %v1488, 0
        %v1922 = vsel %vm624, %v1489, 0
        %v1925 = vsel %vm624, %v1490, 0
        %v1928 = vsel %vm624, %v1491, 0
        %v1931 = vsel %vm624, %v1492, 0
        %v1934 = vsel %vm624, %v1493, 0
        %v1937 = vsel %vm624, %v1494, 0
        %v1940 = vsel %vm624, %v1495, 0
        %v1943 = vsel %vm624, %v1496, 0
        %v1946 = vsel %vm624, %v1497, 0
        %v1949 = vsel %vm624, %v1498, 0
        %v1952 = vsel %vm624, %v1499, 0
        %v1955 = vsel %vm624, %v1500, 0
        %v1958 = vsel %vm624, %v1501, 0
        %1960 = vmatprep.subr.mxu0 0.0
        %1961 = vmatpush1.msra.mxu0 %v1502
        %1962 = vmatprep.subr.mxu0 0.0
        %1963 = vmatpush1.msra.mxu0 %v1503
        %1964 = vmatprep.subr.mxu0 0.0
        %1965 = vmatpush1.msra.mxu0 %v1504
        %1966 = vmatprep.subr.mxu0 0.0
        %1967 = vmatpush1.msra.mxu0 %v1505
        %1968 = vmatprep.subr.mxu0 0.0
        %1969 = vmatpush1.msra.mxu0 0.0
        %1970 = vmatprep.subr.mxu0 0.0
        %1971 = vmatpush1.msra.mxu0 0.0
        %1972 = vmatprep.subr.mxu0 0.0
        %1973 = vmatpush1.msra.mxu0 0.0
        %1974 = vmatprep.subr.mxu0 0.0
        %1975 = vmatpush1.msra.mxu0 0.0
        %1976 = vmatprep.subr.mxu0 0.0
        %1977 = vmatpush1.msra.mxu0 0.0
        %1978 = vmatprep.subr.mxu0 0.0
        %1979 = vmatpush1.msra.mxu0 0.0
        %1980 = vmatprep.subr.mxu0 0.0
        %1981 = vmatpush1.msra.mxu0 0.0
        %1982 = vmatprep.subr.mxu0 0.0
        %1983 = vmatpush1.msra.mxu0 0.0
        %1984 = vmatprep.subr.mxu0 0.0
        %1985 = vmatpush1.msra.mxu0 0.0
        %1986 = vmatprep.subr.mxu0 0.0
        %1987 = vmatpush1.msra.mxu0 0.0
        %1988 = vmatprep.subr.mxu0 0.0
        %1989 = vmatpush1.msra.mxu0 0.0
        %1990 = vmatprep.subr.mxu0 0.0
        %1991 = vmatpush1.msra.mxu0 0.0
        %1992 = vmatprep.subr.mxu0 0.0
        %1993 = vmatpush1.msra.mxu0 0.0
        %1994 = vmatprep.subr.mxu0 0.0
        %1995 = vmatpush1.msra.mxu0 0.0
        %1996 = vmatprep.subr.mxu0 0.0
        %1997 = vmatpush1.msra.mxu0 0.0
        %1998 = vmatprep.subr.mxu0 0.0
        %1999 = vmatpush1.msra.mxu0 0.0
        %2000 = vmatprep.subr.mxu0 0.0
        %2001 = vmatpush1.msra.mxu0 0.0
        %2002 = vmatprep.subr.mxu0 0.0
        %2003 = vmatpush1.msra.mxu0 0.0
        %2004 = vmatprep.subr.mxu0 0.0
        %2005 = vmatpush1.msra.mxu0 0.0
        %2006 = vmatprep.subr.mxu0 0.0
        %2007 = vmatpush1.msra.mxu0 0.0
        %2008 = vmatprep.subr.mxu0 0.0
        %2009 = vmatpush1.msra.mxu0 0.0
        %2010 = vmatprep.subr.mxu0 0.0
        %2011 = vmatpush1.msra.mxu0 0.0
        %2012 = vmatprep.subr.mxu0 0.0
        %2013 = vmatpush1.msra.mxu0 0.0
        %2014 = vmatprep.subr.mxu0 0.0
        %2015 = vmatpush1.msra.mxu0 0.0
        %2016 = vmatprep.subr.mxu0 0.0
        %2017 = vmatpush1.msra.mxu0 0.0
        %2018 = vmatprep.subr.mxu0 0.0
        %2019 = vmatpush1.msra.mxu0 0.0
        %2020 = vmatprep.subr.mxu0 0.0
        %2021 = vmatpush1.msra.mxu0 0.0
        %2022 = vmatprep.subr.mxu0 0.0
        %2023 = vmatpush1.msra.mxu0 0.0
        %2024 = vmatprep.mubr.f32.mxu0 0.0
        %2025 = vmatmul.mubr.f32.gmra.mrb[0].mxu0 %v1865
        %v2026 = vpop.f32.mrb[0].mxu0
        %v2027 = vadd.f32 %v1706, %v2026
        %v2028 = vpop.f32.mrb[0].mxu0
        %2029 = vmatprep.mubr.f32.mxu0 0.0
        %2030 = vmatmul.mubr.f32.gmra.mrb[0].mxu0 %v1868
        %v2031 = vpop.f32.mrb[0].mxu0
        %v2032 = vadd.f32 %v1711, %v2031
        %v2033 = vpop.f32.mrb[0].mxu0
        %2034 = vmatprep.mubr.f32.mxu0 0.0
        %2035 = vmatmul.mubr.f32.gmra.mrb[0].mxu0 %v1871
        %v2036 = vpop.f32.mrb[0].mxu0
        %v2037 = vadd.f32 %v1716, %v2036
        %v2038 = vpop.f32.mrb[0].mxu0
        %2039 = vmatprep.mubr.f32.mxu0 0.0
        %2040 = vmatmul.mubr.f32.gmra.mrb[0].mxu0 %v1874
        %v2041 = vpop.f32.mrb[0].mxu0
        %v2042 = vadd.f32 %v1721, %v2041
        %v2043 = vpop.f32.mrb[0].mxu0
        %2044 = vmatprep.mubr.f32.mxu0 0.0
        %2045 = vmatmul.mubr.f32.gmra.mrb[0].mxu0 %v1877
        %v2046 = vpop.f32.mrb[0].mxu0
        %v2047 = vadd.f32 %v1726, %v2046
        %v2048 = vpop.f32.mrb[0].mxu0
        %2049 = vmatprep.mubr.f32.mxu0 0.0
        %2050 = vmatmul.mubr.f32.gmra.mrb[0].mxu0 %v1880
        %v2051 = vpop.f32.mrb[0].mxu0
        %v2052 = vadd.f32 %v1731, %v2051
        %v2053 = vpop.f32.mrb[0].mxu0
        %2054 = vmatprep.mubr.f32.mxu0 0.0
        %2055 = vmatmul.mubr.f32.gmra.mrb[0].mxu0 %v1883
        %v2056 = vpop.f32.mrb[0].mxu0
        %v2057 = vadd.f32 %v1736, %v2056
        %v2058 = vpop.f32.mrb[0].mxu0
        %2059 = vmatprep.mubr.f32.mxu0 0.0
        %2060 = vmatmul.mubr.f32.gmra.mrb[0].mxu0 %v1886
        %v2061 = vpop.f32.mrb[0].mxu0
        %v2062 = vadd.f32 %v1741, %v2061
        %v2063 = vpop.f32.mrb[0].mxu0
        %2064 = vmatprep.mubr.f32.mxu0 0.0
        %2065 = vmatmul.mubr.f32.gmra.mrb[0].mxu0 %v1889
        %v2066 = vpop.f32.mrb[0].mxu0
        %v2067 = vadd.f32 %v1746, %v2066
        %v2068 = vpop.f32.mrb[0].mxu0
        %2069 = vmatprep.mubr.f32.mxu0 0.0
        %2070 = vmatmul.mubr.f32.gmra.mrb[0].mxu0 %v1892
        %v2071 = vpop.f32.mrb[0].mxu0
        %v2072 = vadd.f32 %v1751, %v2071
        %v2073 = vpop.f32.mrb[0].mxu0
        %2074 = vmatprep.mubr.f32.mxu0 0.0
        %2075 = vmatmul.mubr.f32.gmra.mrb[0].mxu0 %v1895
        %v2076 = vpop.f32.mrb[0].mxu0
        %v2077 = vadd.f32 %v1756, %v2076
        %v2078 = vpop.f32.mrb[0].mxu0
        %2079 = vmatprep.mubr.f32.mxu0 0.0
        %2080 = vmatmul.mubr.f32.gmra.mrb[0].mxu0 %v1898
        %v2081 = vpop.f32.mrb[0].mxu0
        %v2082 = vadd.f32 %v1761, %v2081
        %v2083 = vpop.f32.mrb[0].mxu0
        %2084 = vmatprep.mubr.f32.mxu0 0.0
        %2085 = vmatmul.mubr.f32.gmra.mrb[0].mxu0 %v1901
        %v2086 = vpop.f32.mrb[0].mxu0
        %v2087 = vadd.f32 %v1766, %v2086
        %v2088 = vpop.f32.mrb[0].mxu0
        %2089 = vmatprep.mubr.f32.mxu0 0.0
        %2090 = vmatmul.mubr.f32.gmra.mrb[0].mxu0 %v1904
        %v2091 = vpop.f32.mrb[0].mxu0
        %v2092 = vadd.f32 %v1771, %v2091
        %v2093 = vpop.f32.mrb[0].mxu0
        %2094 = vmatprep.mubr.f32.mxu0 0.0
        %2095 = vmatmul.mubr.f32.gmra.mrb[0].mxu0 %v1907
        %v2096 = vpop.f32.mrb[0].mxu0
        %v2097 = vadd.f32 %v1776, %v2096
        %v2098 = vpop.f32.mrb[0].mxu0
        %2099 = vmatprep.mubr.f32.mxu0 0.0
        %2100 = vmatmul.mubr.f32.gmra.mrb[0].mxu0 %v1910
        %v2101 = vpop.f32.mrb[0].mxu0
        %v2102 = vadd.f32 %v1781, %v2101
        %v2103 = vpop.f32.mrb[0].mxu0
        %2104 = vmatprep.mubr.f32.mxu0 0.0
        %2105 = vmatmul.mubr.f32.gmra.mrb[0].mxu0 %v1913
        %v2106 = vpop.f32.mrb[0].mxu0
        %v2107 = vadd.f32 %v1786, %v2106
        %v2108 = vpop.f32.mrb[0].mxu0
        %2109 = vmatprep.mubr.f32.mxu0 0.0
        %2110 = vmatmul.mubr.f32.gmra.mrb[0].mxu0 %v1916
        %v2111 = vpop.f32.mrb[0].mxu0
        %v2112 = vadd.f32 %v1791, %v2111
        %v2113 = vpop.f32.mrb[0].mxu0
        %2114 = vmatprep.mubr.f32.mxu0 0.0
        %2115 = vmatmul.mubr.f32.gmra.mrb[0].mxu0 %v1919
        %v2116 = vpop.f32.mrb[0].mxu0
        %v2117 = vadd.f32 %v1796, %v2116
        %v2118 = vpop.f32.mrb[0].mxu0
        %2119 = vmatprep.mubr.f32.mxu0 0.0
        %2120 = vmatmul.mubr.f32.gmra.mrb[0].mxu0 %v1922
        %v2121 = vpop.f32.mrb[0].mxu0
        %v2122 = vadd.f32 %v1801, %v2121
        %v2123 = vpop.f32.mrb[0].mxu0
        %2124 = vmatprep.mubr.f32.mxu0 0.0
        %2125 = vmatmul.mubr.f32.gmra.mrb[0].mxu0 %v1925
        %v2126 = vpop.f32.mrb[0].mxu0
        %v2127 = vadd.f32 %v1806, %v2126
        %v2128 = vpop.f32.mrb[0].mxu0
        %2129 = vmatprep.mubr.f32.mxu0 0.0
        %2130 = vmatmul.mubr.f32.gmra.mrb[0].mxu0 %v1928
        %v2131 = vpop.f32.mrb[0].mxu0
        %v2132 = vadd.f32 %v1811, %v2131
        %v2133 = vpop.f32.mrb[0].mxu0
        %2134 = vmatprep.mubr.f32.mxu0 0.0
        %2135 = vmatmul.mubr.f32.gmra.mrb[0].mxu0 %v1931
        %v2136 = vpop.f32.mrb[0].mxu0
        %v2137 = vadd.f32 %v1816, %v2136
        %v2138 = vpop.f32.mrb[0].mxu0
        %2139 = vmatprep.mubr.f32.mxu0 0.0
        %2140 = vmatmul.mubr.f32.gmra.mrb[0].mxu0 %v1934
        %v2141 = vpop.f32.mrb[0].mxu0
        %v2142 = vadd.f32 %v1821, %v2141
        %v2143 = vpop.f32.mrb[0].mxu0
        %2144 = vmatprep.mubr.f32.mxu0 0.0
        %2145 = vmatmul.mubr.f32.gmra.mrb[0].mxu0 %v1937
        %v2146 = vpop.f32.mrb[0].mxu0
        %v2147 = vadd.f32 %v1826, %v2146
        %v2148 = vpop.f32.mrb[0].mxu0
        %2149 = vmatprep.mubr.f32.mxu0 0.0
        %2150 = vmatmul.mubr.f32.gmra.mrb[0].mxu0 %v1940
        %v2151 = vpop.f32.mrb[0].mxu0
        %v2152 = vadd.f32 %v1831, %v2151
        %v2153 = vpop.f32.mrb[0].mxu0
        %2154 = vmatprep.mubr.f32.mxu0 0.0
        %2155 = vmatmul.mubr.f32.gmra.mrb[0].mxu0 %v1943
        %v2156 = vpop.f32.mrb[0].mxu0
        %v2157 = vadd.f32 %v1836, %v2156
        %v2158 = vpop.f32.mrb[0].mxu0
        %2159 = vmatprep.mubr.f32.mxu0 0.0
        %2160 = vmatmul.mubr.f32.gmra.mrb[0].mxu0 %v1946
        %v2161 = vpop.f32.mrb[0].mxu0
        %v2162 = vadd.f32 %v1841, %v2161
        %v2163 = vpop.f32.mrb[0].mxu0
        %2164 = vmatprep.mubr.f32.mxu0 0.0
        %2165 = vmatmul.mubr.f32.gmra.mrb[0].mxu0 %v1949
        %v2166 = vpop.f32.mrb[0].mxu0
        %v2167 = vadd.f32 %v1846, %v2166
        %v2168 = vpop.f32.mrb[0].mxu0
        %2169 = vmatprep.mubr.f32.mxu0 0.0
        %2170 = vmatmul.mubr.f32.gmra.mrb[0].mxu0 %v1952
        %v2171 = vpop.f32.mrb[0].mxu0
        %v2172 = vadd.f32 %v1851, %v2171
        %v2173 = vpop.f32.mrb[0].mxu0
        %2174 = vmatprep.mubr.f32.mxu0 0.0
        %2175 = vmatmul.mubr.f32.gmra.mrb[0].mxu0 %v1955
        %v2176 = vpop.f32.mrb[0].mxu0
        %v2177 = vadd.f32 %v1856, %v2176
        %v2178 = vpop.f32.mrb[0].mxu0
        %2179 = vmatprep.mubr.f32.mxu0 0.0
        %2180 = vmatmul.mubr.f32.gmra.mrb[0].mxu0 %v1958
        %v2181 = vpop.f32.mrb[0].mxu0
        %v2182 = vadd.f32 %v1861, %v2181
        %v2183 = vpop.f32.mrb[0].mxu0
        %2184 = vdwg.mxu0
        %v2185 = vld [vmem:[#allocation4] sm:$0xff]
        %v2186 = vld [vmem:[#allocation4 + $0x8] sm:$0xff]
        %v2187 = vld [vmem:[#allocation4 + $0x10] sm:$0xff]
        %v2188 = vld [vmem:[#allocation4 + $0x18] sm:$0xff]
        %v2189 = vld [vmem:[#allocation4 + $0x20] sm:$0xff]
        %v2190 = vld [vmem:[#allocation4 + $0x28] sm:$0xff]
        %v2191 = vld [vmem:[#allocation4 + $0x30] sm:$0xff]
        %v2192 = vld [vmem:[#allocation4 + $0x38] sm:$0xff]
        %v2193 = vld [vmem:[#allocation4 + $0x40] sm:$0xff]
        %v2194 = vld [vmem:[#allocation4 + $0x48] sm:$0xff]
        %v2195 = vld [vmem:[#allocation4 + $0x50] sm:$0xff]
        %v2196 = vld [vmem:[#allocation4 + $0x58] sm:$0xff]
        %v2197 = vld [vmem:[#allocation4 + $0x60] sm:$0xff]
        %v2198 = vld [vmem:[#allocation4 + $0x68] sm:$0xff]
        %v2199 = vld [vmem:[#allocation4 + $0x70] sm:$0xff]
        %v2200 = vld [vmem:[#allocation4 + $0x78] sm:$0xff]
        %v2201 = vld [vmem:[#allocation4 + $0x80] sm:$0xff]
        %v2202 = vld [vmem:[#allocation4 + $0x88] sm:$0xff]
        %v2203 = vld [vmem:[#allocation4 + $0x90] sm:$0xff]
        %v2204 = vld [vmem:[#allocation4 + $0x98] sm:$0xff]
        %v2205 = vld [vmem:[#allocation4 + $0xa0] sm:$0xff]
        %v2206 = vld [vmem:[#allocation4 + $0xa8] sm:$0xff]
        %v2207 = vld [vmem:[#allocation4 + $0xb0] sm:$0xff]
        %v2208 = vld [vmem:[#allocation4 + $0xb8] sm:$0xff]
        %v2209 = vld [vmem:[#allocation4 + $0xc0] sm:$0xff]
        %v2210 = vld [vmem:[#allocation4 + $0xc8] sm:$0xff]
        %v2211 = vld [vmem:[#allocation4 + $0xd0] sm:$0xff]
        %v2212 = vld [vmem:[#allocation4 + $0xd8] sm:$0xff]
        %v2213 = vld [vmem:[#allocation4 + $0xe0] sm:$0xff]
        %v2214 = vld [vmem:[#allocation4 + $0xe8] sm:$0xff]
        %v2215 = vld [vmem:[#allocation4 + $0xf0] sm:$0xff]
        %v2216 = vld [vmem:[#allocation4 + $0xf8] sm:$0xff]
        %s2217 = scalar_lea.vmem [#allocation8], 64
        %v2218 = vld [vmem:[%s2217] sm:$0xff]
        %v2219 = vld [vmem:[%s2217 + $0x8] sm:$0xff]
        %v2220 = vld [vmem:[%s2217 + $0x10] sm:$0xff]
        %v2221 = vld [vmem:[%s2217 + $0x18] sm:$0xff]
        %v2223 = vsel %vm624, %v2185, 0
        %v2226 = vsel %vm624, %v2186, 0
        %v2229 = vsel %vm624, %v2187, 0
        %v2232 = vsel %vm624, %v2188, 0
        %v2235 = vsel %vm624, %v2189, 0
        %v2238 = vsel %vm624, %v2190, 0
        %v2241 = vsel %vm624, %v2191, 0
        %v2244 = vsel %vm624, %v2192, 0
        %v2247 = vsel %vm624, %v2193, 0
        %v2250 = vsel %vm624, %v2194, 0
        %v2253 = vsel %vm624, %v2195, 0
        %v2256 = vsel %vm624, %v2196, 0
        %v2259 = vsel %vm624, %v2197, 0
        %v2262 = vsel %vm624, %v2198, 0
        %v2265 = vsel %vm624, %v2199, 0
        %v2268 = vsel %vm624, %v2200, 0
        %v2271 = vsel %vm624, %v2201, 0
        %v2274 = vsel %vm624, %v2202, 0
        %v2277 = vsel %vm624, %v2203, 0
        %v2280 = vsel %vm624, %v2204, 0
        %v2283 = vsel %vm624, %v2205, 0
        %v2286 = vsel %vm624, %v2206, 0
        %v2289 = vsel %vm624, %v2207, 0
        %v2292 = vsel %vm624, %v2208, 0
        %v2295 = vsel %vm624, %v2209, 0
        %v2298 = vsel %vm624, %v2210, 0
        %v2301 = vsel %vm624, %v2211, 0
        %v2304 = vsel %vm624, %v2212, 0
        %v2307 = vsel %vm624, %v2213, 0
        %v2310 = vsel %vm624, %v2214, 0
        %v2313 = vsel %vm624, %v2215, 0
        %v2316 = vsel %vm624, %v2216, 0
        %2318 = vmatprep.subr.mxu0 0.0
        %2319 = vmatpush1.msra.mxu0 %v2218
        %2320 = vmatprep.subr.mxu0 0.0
        %2321 = vmatpush1.msra.mxu0 %v2219
        %2322 = vmatprep.subr.mxu0 0.0
        %2323 = vmatpush1.msra.mxu0 %v2220
        %2324 = vmatprep.subr.mxu0 0.0
        %2325 = vmatpush1.msra.mxu0 %v2221
        %2326 = vmatprep.subr.mxu0 0.0
        %2327 = vmatpush1.msra.mxu0 0.0
        %2328 = vmatprep.subr.mxu0 0.0
        %2329 = vmatpush1.msra.mxu0 0.0
        %2330 = vmatprep.subr.mxu0 0.0
        %2331 = vmatpush1.msra.mxu0 0.0
        %2332 = vmatprep.subr.mxu0 0.0
        %2333 = vmatpush1.msra.mxu0 0.0
        %2334 = vmatprep.subr.mxu0 0.0
        %2335 = vmatpush1.msra.mxu0 0.0
        %2336 = vmatprep.subr.mxu0 0.0
        %2337 = vmatpush1.msra.mxu0 0.0
        %2338 = vmatprep.subr.mxu0 0.0
        %2339 = vmatpush1.msra.mxu0 0.0
        %2340 = vmatprep.subr.mxu0 0.0
        %2341 = vmatpush1.msra.mxu0 0.0
        %2342 = vmatprep.subr.mxu0 0.0
        %2343 = vmatpush1.msra.mxu0 0.0
        %2344 = vmatprep.subr.mxu0 0.0
        %2345 = vmatpush1.msra.mxu0 0.0
        %2346 = vmatprep.subr.mxu0 0.0
        %2347 = vmatpush1.msra.mxu0 0.0
        %2348 = vmatprep.subr.mxu0 0.0
        %2349 = vmatpush1.msra.mxu0 0.0
        %2350 = vmatprep.subr.mxu0 0.0
        %2351 = vmatpush1.msra.mxu0 0.0
        %2352 = vmatprep.subr.mxu0 0.0
        %2353 = vmatpush1.msra.mxu0 0.0
        %2354 = vmatprep.subr.mxu0 0.0
        %2355 = vmatpush1.msra.mxu0 0.0
        %2356 = vmatprep.subr.mxu0 0.0
        %2357 = vmatpush1.msra.mxu0 0.0
        %2358 = vmatprep.subr.mxu0 0.0
        %2359 = vmatpush1.msra.mxu0 0.0
        %2360 = vmatprep.subr.mxu0 0.0
        %2361 = vmatpush1.msra.mxu0 0.0
        %2362 = vmatprep.subr.mxu0 0.0
        %2363 = vmatpush1.msra.mxu0 0.0
        %2364 = vmatprep.subr.mxu0 0.0
        %2365 = vmatpush1.msra.mxu0 0.0
        %2366 = vmatprep.subr.mxu0 0.0
        %2367 = vmatpush1.msra.mxu0 0.0
        %2368 = vmatprep.subr.mxu0 0.0
        %2369 = vmatpush1.msra.mxu0 0.0
        %2370 = vmatprep.subr.mxu0 0.0
        %2371 = vmatpush1.msra.mxu0 0.0
        %2372 = vmatprep.subr.mxu0 0.0
        %2373 = vmatpush1.msra.mxu0 0.0
        %2374 = vmatprep.subr.mxu0 0.0
        %2375 = vmatpush1.msra.mxu0 0.0
        %2376 = vmatprep.subr.mxu0 0.0
        %2377 = vmatpush1.msra.mxu0 0.0
        %2378 = vmatprep.subr.mxu0 0.0
        %2379 = vmatpush1.msra.mxu0 0.0
        %2380 = vmatprep.subr.mxu0 0.0
        %2381 = vmatpush1.msra.mxu0 0.0
        %2382 = vmatprep.mubr.f32.mxu0 0.0
        %2383 = vmatmul.mubr.f32.gmra.mrb[0].mxu0 %v2223
        %v2384 = vpop.f32.mrb[0].mxu0
        %v2385 = vadd.f32 0.0, %v2384
        %v2386 = vpop.f32.mrb[0].mxu0
        %2387 = vmatprep.mubr.f32.mxu0 0.0
        %2388 = vmatmul.mubr.f32.gmra.mrb[0].mxu0 %v2226
        %v2389 = vpop.f32.mrb[0].mxu0
        %v2390 = vadd.f32 0.0, %v2389
        %v2391 = vpop.f32.mrb[0].mxu0
        %2392 = vmatprep.mubr.f32.mxu0 0.0
        %2393 = vmatmul.mubr.f32.gmra.mrb[0].mxu0 %v2229
        %v2394 = vpop.f32.mrb[0].mxu0
        %v2395 = vadd.f32 0.0, %v2394
        %v2396 = vpop.f32.mrb[0].mxu0
        %2397 = vmatprep.mubr.f32.mxu0 0.0
        %2398 = vmatmul.mubr.f32.gmra.mrb[0].mxu0 %v2232
        %v2399 = vpop.f32.mrb[0].mxu0
        %v2400 = vadd.f32 0.0, %v2399
        %v2401 = vpop.f32.mrb[0].mxu0
        %2402 = vmatprep.mubr.f32.mxu0 0.0
        %2403 = vmatmul.mubr.f32.gmra.mrb[0].mxu0 %v2235
        %v2404 = vpop.f32.mrb[0].mxu0
        %v2405 = vadd.f32 0.0, %v2404
        %v2406 = vpop.f32.mrb[0].mxu0
        %2407 = vmatprep.mubr.f32.mxu0 0.0
        %2408 = vmatmul.mubr.f32.gmra.mrb[0].mxu0 %v2238
        %v2409 = vpop.f32.mrb[0].mxu0
        %v2410 = vadd.f32 0.0, %v2409
        %v2411 = vpop.f32.mrb[0].mxu0
        %2412 = vmatprep.mubr.f32.mxu0 0.0
        %2413 = vmatmul.mubr.f32.gmra.mrb[0].mxu0 %v2241
        %v2414 = vpop.f32.mrb[0].mxu0
        %v2415 = vadd.f32 0.0, %v2414
        %v2416 = vpop.f32.mrb[0].mxu0
        %2417 = vmatprep.mubr.f32.mxu0 0.0
        %2418 = vmatmul.mubr.f32.gmra.mrb[0].mxu0 %v2244
        %v2419 = vpop.f32.mrb[0].mxu0
        %v2420 = vadd.f32 0.0, %v2419
        %v2421 = vpop.f32.mrb[0].mxu0
        %2422 = vmatprep.mubr.f32.mxu0 0.0
        %2423 = vmatmul.mubr.f32.gmra.mrb[0].mxu0 %v2247
        %v2424 = vpop.f32.mrb[0].mxu0
        %v2425 = vadd.f32 0.0, %v2424
        %v2426 = vpop.f32.mrb[0].mxu0
        %2427 = vmatprep.mubr.f32.mxu0 0.0
        %2428 = vmatmul.mubr.f32.gmra.mrb[0].mxu0 %v2250
        %v2429 = vpop.f32.mrb[0].mxu0
        %v2430 = vadd.f32 0.0, %v2429
        %v2431 = vpop.f32.mrb[0].mxu0
        %2432 = vmatprep.mubr.f32.mxu0 0.0
        %2433 = vmatmul.mubr.f32.gmra.mrb[0].mxu0 %v2253
        %v2434 = vpop.f32.mrb[0].mxu0
        %v2435 = vadd.f32 0.0, %v2434
        %v2436 = vpop.f32.mrb[0].mxu0
        %2437 = vmatprep.mubr.f32.mxu0 0.0
        %2438 = vmatmul.mubr.f32.gmra.mrb[0].mxu0 %v2256
        %v2439 = vpop.f32.mrb[0].mxu0
        %v2440 = vadd.f32 0.0, %v2439
        %v2441 = vpop.f32.mrb[0].mxu0
        %2442 = vmatprep.mubr.f32.mxu0 0.0
        %2443 = vmatmul.mubr.f32.gmra.mrb[0].mxu0 %v2259
        %v2444 = vpop.f32.mrb[0].mxu0
        %v2445 = vadd.f32 0.0, %v2444
        %v2446 = vpop.f32.mrb[0].mxu0
        %2447 = vmatprep.mubr.f32.mxu0 0.0
        %2448 = vmatmul.mubr.f32.gmra.mrb[0].mxu0 %v2262
        %v2449 = vpop.f32.mrb[0].mxu0
        %v2450 = vadd.f32 0.0, %v2449
        %v2451 = vpop.f32.mrb[0].mxu0
        %2452 = vmatprep.mubr.f32.mxu0 0.0
        %2453 = vmatmul.mubr.f32.gmra.mrb[0].mxu0 %v2265
        %v2454 = vpop.f32.mrb[0].mxu0
        %v2455 = vadd.f32 0.0, %v2454
        %v2456 = vpop.f32.mrb[0].mxu0
        %2457 = vmatprep.mubr.f32.mxu0 0.0
        %2458 = vmatmul.mubr.f32.gmra.mrb[0].mxu0 %v2268
        %v2459 = vpop.f32.mrb[0].mxu0
        %v2460 = vadd.f32 0.0, %v2459
        %v2461 = vpop.f32.mrb[0].mxu0
        %2462 = vmatprep.mubr.f32.mxu0 0.0
        %2463 = vmatmul.mubr.f32.gmra.mrb[0].mxu0 %v2271
        %v2464 = vpop.f32.mrb[0].mxu0
        %v2465 = vadd.f32 0.0, %v2464
        %v2466 = vpop.f32.mrb[0].mxu0
        %2467 = vmatprep.mubr.f32.mxu0 0.0
        %2468 = vmatmul.mubr.f32.gmra.mrb[0].mxu0 %v2274
        %v2469 = vpop.f32.mrb[0].mxu0
        %v2470 = vadd.f32 0.0, %v2469
        %v2471 = vpop.f32.mrb[0].mxu0
        %2472 = vmatprep.mubr.f32.mxu0 0.0
        %2473 = vmatmul.mubr.f32.gmra.mrb[0].mxu0 %v2277
        %v2474 = vpop.f32.mrb[0].mxu0
        %v2475 = vadd.f32 0.0, %v2474
        %v2476 = vpop.f32.mrb[0].mxu0
        %2477 = vmatprep.mubr.f32.mxu0 0.0
        %2478 = vmatmul.mubr.f32.gmra.mrb[0].mxu0 %v2280
        %v2479 = vpop.f32.mrb[0].mxu0
        %v2480 = vadd.f32 0.0, %v2479
        %v2481 = vpop.f32.mrb[0].mxu0
        %2482 = vmatprep.mubr.f32.mxu0 0.0
        %2483 = vmatmul.mubr.f32.gmra.mrb[0].mxu0 %v2283
        %v2484 = vpop.f32.mrb[0].mxu0
        %v2485 = vadd.f32 0.0, %v2484
        %v2486 = vpop.f32.mrb[0].mxu0
        %2487 = vmatprep.mubr.f32.mxu0 0.0
        %2488 = vmatmul.mubr.f32.gmra.mrb[0].mxu0 %v2286
        %v2489 = vpop.f32.mrb[0].mxu0
        %v2490 = vadd.f32 0.0, %v2489
        %v2491 = vpop.f32.mrb[0].mxu0
        %2492 = vmatprep.mubr.f32.mxu0 0.0
        %2493 = vmatmul.mubr.f32.gmra.mrb[0].mxu0 %v2289
        %v2494 = vpop.f32.mrb[0].mxu0
        %v2495 = vadd.f32 0.0, %v2494
        %v2496 = vpop.f32.mrb[0].mxu0
        %2497 = vmatprep.mubr.f32.mxu0 0.0
        %2498 = vmatmul.mubr.f32.gmra.mrb[0].mxu0 %v2292
        %v2499 = vpop.f32.mrb[0].mxu0
        %v2500 = vadd.f32 0.0, %v2499
        %v2501 = vpop.f32.mrb[0].mxu0
        %2502 = vmatprep.mubr.f32.mxu0 0.0
        %2503 = vmatmul.mubr.f32.gmra.mrb[0].mxu0 %v2295
        %v2504 = vpop.f32.mrb[0].mxu0
        %v2505 = vadd.f32 0.0, %v2504
        %v2506 = vpop.f32.mrb[0].mxu0
        %2507 = vmatprep.mubr.f32.mxu0 0.0
        %2508 = vmatmul.mubr.f32.gmra.mrb[0].mxu0 %v2298
        %v2509 = vpop.f32.mrb[0].mxu0
        %v2510 = vadd.f32 0.0, %v2509
        %v2511 = vpop.f32.mrb[0].mxu0
        %2512 = vmatprep.mubr.f32.mxu0 0.0
        %2513 = vmatmul.mubr.f32.gmra.mrb[0].mxu0 %v2301
        %v2514 = vpop.f32.mrb[0].mxu0
        %v2515 = vadd.f32 0.0, %v2514
        %v2516 = vpop.f32.mrb[0].mxu0
        %2517 = vmatprep.mubr.f32.mxu0 0.0
        %2518 = vmatmul.mubr.f32.gmra.mrb[0].mxu0 %v2304
        %v2519 = vpop.f32.mrb[0].mxu0
        %v2520 = vadd.f32 0.0, %v2519
        %v2521 = vpop.f32.mrb[0].mxu0
        %2522 = vmatprep.mubr.f32.mxu0 0.0
        %2523 = vmatmul.mubr.f32.gmra.mrb[0].mxu0 %v2307
        %v2524 = vpop.f32.mrb[0].mxu0
        %v2525 = vadd.f32 0.0, %v2524
        %v2526 = vpop.f32.mrb[0].mxu0
        %2527 = vmatprep.mubr.f32.mxu0 0.0
        %2528 = vmatmul.mubr.f32.gmra.mrb[0].mxu0 %v2310
        %v2529 = vpop.f32.mrb[0].mxu0
        %v2530 = vadd.f32 0.0, %v2529
        %v2531 = vpop.f32.mrb[0].mxu0
        %2532 = vmatprep.mubr.f32.mxu0 0.0
        %2533 = vmatmul.mubr.f32.gmra.mrb[0].mxu0 %v2313
        %v2534 = vpop.f32.mrb[0].mxu0
        %v2535 = vadd.f32 0.0, %v2534
        %v2536 = vpop.f32.mrb[0].mxu0
        %2537 = vmatprep.mubr.f32.mxu0 0.0
        %2538 = vmatmul.mubr.f32.gmra.mrb[0].mxu0 %v2316
        %v2539 = vpop.f32.mrb[0].mxu0
        %v2540 = vadd.f32 0.0, %v2539
        %v2541 = vpop.f32.mrb[0].mxu0
        %2542 = vdwg.mxu0
        %v2543 = vadd.f32 %v2027, %v2385
        %v2544 = vadd.f32 %v2032, %v2390
        %v2545 = vadd.f32 %v2037, %v2395
        %v2546 = vadd.f32 %v2042, %v2400
        %v2547 = vadd.f32 %v2047, %v2405
        %v2548 = vadd.f32 %v2052, %v2410
        %v2549 = vadd.f32 %v2057, %v2415
        %v2550 = vadd.f32 %v2062, %v2420
        %v2551 = vadd.f32 %v2067, %v2425
        %v2552 = vadd.f32 %v2072, %v2430
        %v2553 = vadd.f32 %v2077, %v2435
        %v2554 = vadd.f32 %v2082, %v2440
        %v2555 = vadd.f32 %v2087, %v2445
        %v2556 = vadd.f32 %v2092, %v2450
        %v2557 = vadd.f32 %v2097, %v2455
        %v2558 = vadd.f32 %v2102, %v2460
        %v2559 = vadd.f32 %v2107, %v2465
        %v2560 = vadd.f32 %v2112, %v2470
        %v2561 = vadd.f32 %v2117, %v2475
        %v2562 = vadd.f32 %v2122, %v2480
        %v2563 = vadd.f32 %v2127, %v2485
        %v2564 = vadd.f32 %v2132, %v2490
        %v2565 = vadd.f32 %v2137, %v2495
        %v2566 = vadd.f32 %v2142, %v2500
        %v2567 = vadd.f32 %v2147, %v2505
        %v2568 = vadd.f32 %v2152, %v2510
        %v2569 = vadd.f32 %v2157, %v2515
        %v2570 = vadd.f32 %v2162, %v2520
        %v2571 = vadd.f32 %v2167, %v2525
        %v2572 = vadd.f32 %v2172, %v2530
        %v2573 = vadd.f32 %v2177, %v2535
        %v2574 = vadd.f32 %v2182, %v2540
        %v2575 = vld [vmem:[#allocation3 + $0x10] sm:$0xff]
        %v2576 = vld [vmem:[#allocation3 + $0x18] sm:$0xff]
        %v2577 = vld [vmem:[#allocation3 + $0x20] sm:$0xff]
        %v2578 = vld [vmem:[#allocation3 + $0x28] sm:$0xff]
        %v2579 = vld [vmem:[#allocation3 + $0x30] sm:$0xff]
        %v2580 = vld [vmem:[#allocation3 + $0x38] sm:$0xff]
        %v2581 = vld [vmem:[#allocation3 + $0x40] sm:$0xff]
        %v2582 = vld [vmem:[#allocation3 + $0x48] sm:$0xff]
        %v2583 = vld [vmem:[#allocation3 + $0x50] sm:$0xff]
        %v2584 = vld [vmem:[#allocation3 + $0x58] sm:$0xff]
        %v2585 = vld [vmem:[#allocation3 + $0x60] sm:$0xff]
        %v2586 = vld [vmem:[#allocation3 + $0x68] sm:$0xff]
        %v2587 = vld [vmem:[#allocation3 + $0x70] sm:$0xff]
        %v2588 = vld [vmem:[#allocation3 + $0x78] sm:$0xff]
        %v2589 = vld [vmem:[#allocation3 + $0x80] sm:$0xff]
        %v2590 = vld [vmem:[#allocation3 + $0x88] sm:$0xff]
        %v2591 = vld [vmem:[#allocation3 + $0x90] sm:$0xff]
        %v2592 = vld [vmem:[#allocation3 + $0x98] sm:$0xff]
        %v2593 = vld [vmem:[#allocation3 + $0xa0] sm:$0xff]
        %v2594 = vld [vmem:[#allocation3 + $0xa8] sm:$0xff]
        %v2595 = vld [vmem:[#allocation3 + $0xb0] sm:$0xff]
        %v2596 = vld [vmem:[#allocation3 + $0xb8] sm:$0xff]
        %v2597 = vld [vmem:[#allocation3 + $0xc0] sm:$0xff]
        %v2598 = vld [vmem:[#allocation3 + $0xc8] sm:$0xff]
        %v2599 = vld [vmem:[#allocation3 + $0xd0] sm:$0xff]
        %v2600 = vld [vmem:[#allocation3 + $0xd8] sm:$0xff]
        %v2601 = vld [vmem:[#allocation3 + $0xe0] sm:$0xff]
        %v2602 = vld [vmem:[#allocation3 + $0xe8] sm:$0xff]
        %v2603 = vld [vmem:[#allocation3 + $0xf0] sm:$0xff]
        %v2604 = vld [vmem:[#allocation3 + $0xf8] sm:$0xff]
        %v2605 = vld [vmem:[#allocation3 + $0x100] sm:$0xff]
        %v2606 = vld [vmem:[#allocation3 + $0x108] sm:$0xff]
        %s2607 = scalar_lea.vmem [#allocation8], 96
        %v2608 = vld [vmem:[%s2607] sm:$0xff]
        %v2609 = vld [vmem:[%s2607 + $0x8] sm:$0xff]
        %v2610 = vld [vmem:[%s2607 + $0x10] sm:$0xff]
        %v2611 = vld [vmem:[%s2607 + $0x18] sm:$0xff]
        %v2613 = vsel %vm624, %v2575, 0
        %v2616 = vsel %vm624, %v2576, 0
        %v2619 = vsel %vm624, %v2577, 0
        %v2622 = vsel %vm624, %v2578, 0
        %v2625 = vsel %vm624, %v2579, 0
        %v2628 = vsel %vm624, %v2580, 0
        %v2631 = vsel %vm624, %v2581, 0
        %v2634 = vsel %vm624, %v2582, 0
        %v2637 = vsel %vm624, %v2583, 0
        %v2640 = vsel %vm624, %v2584, 0
        %v2643 = vsel %vm624, %v2585, 0
        %v2646 = vsel %vm624, %v2586, 0
        %v2649 = vsel %vm624, %v2587, 0
        %v2652 = vsel %vm624, %v2588, 0
        %v2655 = vsel %vm624, %v2589, 0
        %v2658 = vsel %vm624, %v2590, 0
        %v2661 = vsel %vm624, %v2591, 0
        %v2664 = vsel %vm624, %v2592, 0
        %v2667 = vsel %vm624, %v2593, 0
        %v2670 = vsel %vm624, %v2594, 0
        %v2673 = vsel %vm624, %v2595, 0
        %v2676 = vsel %vm624, %v2596, 0
        %v2679 = vsel %vm624, %v2597, 0
        %v2682 = vsel %vm624, %v2598, 0
        %v2685 = vsel %vm624, %v2599, 0
        %v2688 = vsel %vm624, %v2600, 0
        %v2691 = vsel %vm624, %v2601, 0
        %v2694 = vsel %vm624, %v2602, 0
        %v2697 = vsel %vm624, %v2603, 0
        %v2700 = vsel %vm624, %v2604, 0
        %v2703 = vsel %vm624, %v2605, 0
        %v2706 = vsel %vm624, %v2606, 0
        %2708 = vmatprep.subr.mxu0 0.0
        %2709 = vmatpush1.msra.mxu0 %v2608
        %2710 = vmatprep.subr.mxu0 0.0
        %2711 = vmatpush1.msra.mxu0 %v2609
        %2712 = vmatprep.subr.mxu0 0.0
        %2713 = vmatpush1.msra.mxu0 %v2610
        %2714 = vmatprep.subr.mxu0 0.0
        %2715 = vmatpush1.msra.mxu0 %v2611
        %2716 = vmatprep.subr.mxu0 0.0
        %2717 = vmatpush1.msra.mxu0 0.0
        %2718 = vmatprep.subr.mxu0 0.0
        %2719 = vmatpush1.msra.mxu0 0.0
        %2720 = vmatprep.subr.mxu0 0.0
        %2721 = vmatpush1.msra.mxu0 0.0
        %2722 = vmatprep.subr.mxu0 0.0
        %2723 = vmatpush1.msra.mxu0 0.0
        %2724 = vmatprep.subr.mxu0 0.0
        %2725 = vmatpush1.msra.mxu0 0.0
        %2726 = vmatprep.subr.mxu0 0.0
        %2727 = vmatpush1.msra.mxu0 0.0
        %2728 = vmatprep.subr.mxu0 0.0
        %2729 = vmatpush1.msra.mxu0 0.0
        %2730 = vmatprep.subr.mxu0 0.0
        %2731 = vmatpush1.msra.mxu0 0.0
        %2732 = vmatprep.subr.mxu0 0.0
        %2733 = vmatpush1.msra.mxu0 0.0
        %2734 = vmatprep.subr.mxu0 0.0
        %2735 = vmatpush1.msra.mxu0 0.0
        %2736 = vmatprep.subr.mxu0 0.0
        %2737 = vmatpush1.msra.mxu0 0.0
        %2738 = vmatprep.subr.mxu0 0.0
        %2739 = vmatpush1.msra.mxu0 0.0
        %2740 = vmatprep.subr.mxu0 0.0
        %2741 = vmatpush1.msra.mxu0 0.0
        %2742 = vmatprep.subr.mxu0 0.0
        %2743 = vmatpush1.msra.mxu0 0.0
        %2744 = vmatprep.subr.mxu0 0.0
        %2745 = vmatpush1.msra.mxu0 0.0
        %2746 = vmatprep.subr.mxu0 0.0
        %2747 = vmatpush1.msra.mxu0 0.0
        %2748 = vmatprep.subr.mxu0 0.0
        %2749 = vmatpush1.msra.mxu0 0.0
        %2750 = vmatprep.subr.mxu0 0.0
        %2751 = vmatpush1.msra.mxu0 0.0
        %2752 = vmatprep.subr.mxu0 0.0
        %2753 = vmatpush1.msra.mxu0 0.0
        %2754 = vmatprep.subr.mxu0 0.0
        %2755 = vmatpush1.msra.mxu0 0.0
        %2756 = vmatprep.subr.mxu0 0.0
        %2757 = vmatpush1.msra.mxu0 0.0
        %2758 = vmatprep.subr.mxu0 0.0
        %2759 = vmatpush1.msra.mxu0 0.0
        %2760 = vmatprep.subr.mxu0 0.0
        %2761 = vmatpush1.msra.mxu0 0.0
        %2762 = vmatprep.subr.mxu0 0.0
        %2763 = vmatpush1.msra.mxu0 0.0
        %2764 = vmatprep.subr.mxu0 0.0
        %2765 = vmatpush1.msra.mxu0 0.0
        %2766 = vmatprep.subr.mxu0 0.0
        %2767 = vmatpush1.msra.mxu0 0.0
        %2768 = vmatprep.subr.mxu0 0.0
        %2769 = vmatpush1.msra.mxu0 0.0
        %2770 = vmatprep.subr.mxu0 0.0
        %2771 = vmatpush1.msra.mxu0 0.0
        %2772 = vmatprep.mubr.f32.mxu0 0.0
        %2773 = vmatmul.mubr.f32.gmra.mrb[0].mxu0 %v2613
        %v2774 = vpop.f32.mrb[0].mxu0
        %v2775 = vadd.f32 0.0, %v2774
        %v2776 = vpop.f32.mrb[0].mxu0
        %2777 = vmatprep.mubr.f32.mxu0 0.0
        %2778 = vmatmul.mubr.f32.gmra.mrb[0].mxu0 %v2616
        %v2779 = vpop.f32.mrb[0].mxu0
        %v2780 = vadd.f32 0.0, %v2779
        %v2781 = vpop.f32.mrb[0].mxu0
        %2782 = vmatprep.mubr.f32.mxu0 0.0
        %2783 = vmatmul.mubr.f32.gmra.mrb[0].mxu0 %v2619
        %v2784 = vpop.f32.mrb[0].mxu0
        %v2785 = vadd.f32 0.0, %v2784
        %v2786 = vpop.f32.mrb[0].mxu0
        %2787 = vmatprep.mubr.f32.mxu0 0.0
        %2788 = vmatmul.mubr.f32.gmra.mrb[0].mxu0 %v2622
        %v2789 = vpop.f32.mrb[0].mxu0
        %v2790 = vadd.f32 0.0, %v2789
        %v2791 = vpop.f32.mrb[0].mxu0
        %2792 = vmatprep.mubr.f32.mxu0 0.0
        %2793 = vmatmul.mubr.f32.gmra.mrb[0].mxu0 %v2625
        %v2794 = vpop.f32.mrb[0].mxu0
        %v2795 = vadd.f32 0.0, %v2794
        %v2796 = vpop.f32.mrb[0].mxu0
        %2797 = vmatprep.mubr.f32.mxu0 0.0
        %2798 = vmatmul.mubr.f32.gmra.mrb[0].mxu0 %v2628
        %v2799 = vpop.f32.mrb[0].mxu0
        %v2800 = vadd.f32 0.0, %v2799
        %v2801 = vpop.f32.mrb[0].mxu0
        %2802 = vmatprep.mubr.f32.mxu0 0.0
        %2803 = vmatmul.mubr.f32.gmra.mrb[0].mxu0 %v2631
        %v2804 = vpop.f32.mrb[0].mxu0
        %v2805 = vadd.f32 0.0, %v2804
        %v2806 = vpop.f32.mrb[0].mxu0
        %2807 = vmatprep.mubr.f32.mxu0 0.0
        %2808 = vmatmul.mubr.f32.gmra.mrb[0].mxu0 %v2634
        %v2809 = vpop.f32.mrb[0].mxu0
        %v2810 = vadd.f32 0.0, %v2809
        %v2811 = vpop.f32.mrb[0].mxu0
        %2812 = vmatprep.mubr.f32.mxu0 0.0
        %2813 = vmatmul.mubr.f32.gmra.mrb[0].mxu0 %v2637
        %v2814 = vpop.f32.mrb[0].mxu0
        %v2815 = vadd.f32 0.0, %v2814
        %v2816 = vpop.f32.mrb[0].mxu0
        %2817 = vmatprep.mubr.f32.mxu0 0.0
        %2818 = vmatmul.mubr.f32.gmra.mrb[0].mxu0 %v2640
        %v2819 = vpop.f32.mrb[0].mxu0
        %v2820 = vadd.f32 0.0, %v2819
        %v2821 = vpop.f32.mrb[0].mxu0
        %2822 = vmatprep.mubr.f32.mxu0 0.0
        %2823 = vmatmul.mubr.f32.gmra.mrb[0].mxu0 %v2643
        %v2824 = vpop.f32.mrb[0].mxu0
        %v2825 = vadd.f32 0.0, %v2824
        %v2826 = vpop.f32.mrb[0].mxu0
        %2827 = vmatprep.mubr.f32.mxu0 0.0
        %2828 = vmatmul.mubr.f32.gmra.mrb[0].mxu0 %v2646
        %v2829 = vpop.f32.mrb[0].mxu0
        %v2830 = vadd.f32 0.0, %v2829
        %v2831 = vpop.f32.mrb[0].mxu0
        %2832 = vmatprep.mubr.f32.mxu0 0.0
        %2833 = vmatmul.mubr.f32.gmra.mrb[0].mxu0 %v2649
        %v2834 = vpop.f32.mrb[0].mxu0
        %v2835 = vadd.f32 0.0, %v2834
        %v2836 = vpop.f32.mrb[0].mxu0
        %2837 = vmatprep.mubr.f32.mxu0 0.0
        %2838 = vmatmul.mubr.f32.gmra.mrb[0].mxu0 %v2652
        %v2839 = vpop.f32.mrb[0].mxu0
        %v2840 = vadd.f32 0.0, %v2839
        %v2841 = vpop.f32.mrb[0].mxu0
        %2842 = vmatprep.mubr.f32.mxu0 0.0
        %2843 = vmatmul.mubr.f32.gmra.mrb[0].mxu0 %v2655
        %v2844 = vpop.f32.mrb[0].mxu0
        %v2845 = vadd.f32 0.0, %v2844
        %v2846 = vpop.f32.mrb[0].mxu0
        %2847 = vmatprep.mubr.f32.mxu0 0.0
        %2848 = vmatmul.mubr.f32.gmra.mrb[0].mxu0 %v2658
        %v2849 = vpop.f32.mrb[0].mxu0
        %v2850 = vadd.f32 0.0, %v2849
        %v2851 = vpop.f32.mrb[0].mxu0
        %2852 = vmatprep.mubr.f32.mxu0 0.0
        %2853 = vmatmul.mubr.f32.gmra.mrb[0].mxu0 %v2661
        %v2854 = vpop.f32.mrb[0].mxu0
        %v2855 = vadd.f32 0.0, %v2854
        %v2856 = vpop.f32.mrb[0].mxu0
        %2857 = vmatprep.mubr.f32.mxu0 0.0
        %2858 = vmatmul.mubr.f32.gmra.mrb[0].mxu0 %v2664
        %v2859 = vpop.f32.mrb[0].mxu0
        %v2860 = vadd.f32 0.0, %v2859
        %v2861 = vpop.f32.mrb[0].mxu0
        %2862 = vmatprep.mubr.f32.mxu0 0.0
        %2863 = vmatmul.mubr.f32.gmra.mrb[0].mxu0 %v2667
        %v2864 = vpop.f32.mrb[0].mxu0
        %v2865 = vadd.f32 0.0, %v2864
        %v2866 = vpop.f32.mrb[0].mxu0
        %2867 = vmatprep.mubr.f32.mxu0 0.0
        %2868 = vmatmul.mubr.f32.gmra.mrb[0].mxu0 %v2670
        %v2869 = vpop.f32.mrb[0].mxu0
        %v2870 = vadd.f32 0.0, %v2869
        %v2871 = vpop.f32.mrb[0].mxu0
        %2872 = vmatprep.mubr.f32.mxu0 0.0
        %2873 = vmatmul.mubr.f32.gmra.mrb[0].mxu0 %v2673
        %v2874 = vpop.f32.mrb[0].mxu0
        %v2875 = vadd.f32 0.0, %v2874
        %v2876 = vpop.f32.mrb[0].mxu0
        %2877 = vmatprep.mubr.f32.mxu0 0.0
        %2878 = vmatmul.mubr.f32.gmra.mrb[0].mxu0 %v2676
        %v2879 = vpop.f32.mrb[0].mxu0
        %v2880 = vadd.f32 0.0, %v2879
        %v2881 = vpop.f32.mrb[0].mxu0
        %2882 = vmatprep.mubr.f32.mxu0 0.0
        %2883 = vmatmul.mubr.f32.gmra.mrb[0].mxu0 %v2679
        %v2884 = vpop.f32.mrb[0].mxu0
        %v2885 = vadd.f32 0.0, %v2884
        %v2886 = vpop.f32.mrb[0].mxu0
        %2887 = vmatprep.mubr.f32.mxu0 0.0
        %2888 = vmatmul.mubr.f32.gmra.mrb[0].mxu0 %v2682
        %v2889 = vpop.f32.mrb[0].mxu0
        %v2890 = vadd.f32 0.0, %v2889
        %v2891 = vpop.f32.mrb[0].mxu0
        %2892 = vmatprep.mubr.f32.mxu0 0.0
        %2893 = vmatmul.mubr.f32.gmra.mrb[0].mxu0 %v2685
        %v2894 = vpop.f32.mrb[0].mxu0
        %v2895 = vadd.f32 0.0, %v2894
        %v2896 = vpop.f32.mrb[0].mxu0
        %2897 = vmatprep.mubr.f32.mxu0 0.0
        %2898 = vmatmul.mubr.f32.gmra.mrb[0].mxu0 %v2688
        %v2899 = vpop.f32.mrb[0].mxu0
        %v2900 = vadd.f32 0.0, %v2899
        %v2901 = vpop.f32.mrb[0].mxu0
        %2902 = vmatprep.mubr.f32.mxu0 0.0
        %2903 = vmatmul.mubr.f32.gmra.mrb[0].mxu0 %v2691
        %v2904 = vpop.f32.mrb[0].mxu0
        %v2905 = vadd.f32 0.0, %v2904
        %v2906 = vpop.f32.mrb[0].mxu0
        %2907 = vmatprep.mubr.f32.mxu0 0.0
        %2908 = vmatmul.mubr.f32.gmra.mrb[0].mxu0 %v2694
        %v2909 = vpop.f32.mrb[0].mxu0
        %v2910 = vadd.f32 0.0, %v2909
        %v2911 = vpop.f32.mrb[0].mxu0
        %2912 = vmatprep.mubr.f32.mxu0 0.0
        %2913 = vmatmul.mubr.f32.gmra.mrb[0].mxu0 %v2697
        %v2914 = vpop.f32.mrb[0].mxu0
        %v2915 = vadd.f32 0.0, %v2914
        %v2916 = vpop.f32.mrb[0].mxu0
        %2917 = vmatprep.mubr.f32.mxu0 0.0
        %2918 = vmatmul.mubr.f32.gmra.mrb[0].mxu0 %v2700
        %v2919 = vpop.f32.mrb[0].mxu0
        %v2920 = vadd.f32 0.0, %v2919
        %v2921 = vpop.f32.mrb[0].mxu0
        %2922 = vmatprep.mubr.f32.mxu0 0.0
        %2923 = vmatmul.mubr.f32.gmra.mrb[0].mxu0 %v2703
        %v2924 = vpop.f32.mrb[0].mxu0
        %v2925 = vadd.f32 0.0, %v2924
        %v2926 = vpop.f32.mrb[0].mxu0
        %2927 = vmatprep.mubr.f32.mxu0 0.0
        %2928 = vmatmul.mubr.f32.gmra.mrb[0].mxu0 %v2706
        %v2929 = vpop.f32.mrb[0].mxu0
        %v2930 = vadd.f32 0.0, %v2929
        %v2931 = vpop.f32.mrb[0].mxu0
        %2932 = vdwg.mxu0
        %v2933 = vadd.f32 %v2543, %v2775
        %v2934 = vadd.f32 %v2544, %v2780
        %v2935 = vadd.f32 %v2545, %v2785
        %v2936 = vadd.f32 %v2546, %v2790
        %v2937 = vadd.f32 %v2547, %v2795
        %v2938 = vadd.f32 %v2548, %v2800
        %v2939 = vadd.f32 %v2549, %v2805
        %v2940 = vadd.f32 %v2550, %v2810
        %v2941 = vadd.f32 %v2551, %v2815
        %v2942 = vadd.f32 %v2552, %v2820
        %v2943 = vadd.f32 %v2553, %v2825
        %v2944 = vadd.f32 %v2554, %v2830
        %v2945 = vadd.f32 %v2555, %v2835
        %v2946 = vadd.f32 %v2556, %v2840
        %v2947 = vadd.f32 %v2557, %v2845
        %v2948 = vadd.f32 %v2558, %v2850
        %v2949 = vadd.f32 %v2559, %v2855
        %v2950 = vadd.f32 %v2560, %v2860
        %v2951 = vadd.f32 %v2561, %v2865
        %v2952 = vadd.f32 %v2562, %v2870
        %v2953 = vadd.f32 %v2563, %v2875
        %v2954 = vadd.f32 %v2564, %v2880
        %v2955 = vadd.f32 %v2565, %v2885
        %v2956 = vadd.f32 %v2566, %v2890
        %v2957 = vadd.f32 %v2567, %v2895
        %v2958 = vadd.f32 %v2568, %v2900
        %v2959 = vadd.f32 %v2569, %v2905
        %v2960 = vadd.f32 %v2570, %v2910
        %v2961 = vadd.f32 %v2571, %v2915
        %v2962 = vadd.f32 %v2572, %v2920
        %v2963 = vadd.f32 %v2573, %v2925
        %v2964 = vadd.f32 %v2574, %v2930
        %v2965 = vld [vmem:[#allocation2 + $0x10] sm:$0xff]
        %v2966 = vld [vmem:[#allocation2 + $0x18] sm:$0xff]
        %v2967 = vld [vmem:[#allocation2 + $0x20] sm:$0xff]
        %v2968 = vld [vmem:[#allocation2 + $0x28] sm:$0xff]
        %v2969 = vld [vmem:[#allocation2 + $0x30] sm:$0xff]
        %v2970 = vld [vmem:[#allocation2 + $0x38] sm:$0xff]
        %v2971 = vld [vmem:[#allocation2 + $0x40] sm:$0xff]
        %v2972 = vld [vmem:[#allocation2 + $0x48] sm:$0xff]
        %v2973 = vld [vmem:[#allocation2 + $0x50] sm:$0xff]
        %v2974 = vld [vmem:[#allocation2 + $0x58] sm:$0xff]
        %v2975 = vld [vmem:[#allocation2 + $0x60] sm:$0xff]
        %v2976 = vld [vmem:[#allocation2 + $0x68] sm:$0xff]
        %v2977 = vld [vmem:[#allocation2 + $0x70] sm:$0xff]
        %v2978 = vld [vmem:[#allocation2 + $0x78] sm:$0xff]
        %v2979 = vld [vmem:[#allocation2 + $0x80] sm:$0xff]
        %v2980 = vld [vmem:[#allocation2 + $0x88] sm:$0xff]
        %v2981 = vld [vmem:[#allocation2 + $0x90] sm:$0xff]
        %v2982 = vld [vmem:[#allocation2 + $0x98] sm:$0xff]
        %v2983 = vld [vmem:[#allocation2 + $0xa0] sm:$0xff]
        %v2984 = vld [vmem:[#allocation2 + $0xa8] sm:$0xff]
        %v2985 = vld [vmem:[#allocation2 + $0xb0] sm:$0xff]
        %v2986 = vld [vmem:[#allocation2 + $0xb8] sm:$0xff]
        %v2987 = vld [vmem:[#allocation2 + $0xc0] sm:$0xff]
        %v2988 = vld [vmem:[#allocation2 + $0xc8] sm:$0xff]
        %v2989 = vld [vmem:[#allocation2 + $0xd0] sm:$0xff]
        %v2990 = vld [vmem:[#allocation2 + $0xd8] sm:$0xff]
        %v2991 = vld [vmem:[#allocation2 + $0xe0] sm:$0xff]
        %v2992 = vld [vmem:[#allocation2 + $0xe8] sm:$0xff]
        %v2993 = vld [vmem:[#allocation2 + $0xf0] sm:$0xff]
        %v2994 = vld [vmem:[#allocation2 + $0xf8] sm:$0xff]
        %v2995 = vld [vmem:[#allocation2 + $0x100] sm:$0xff]
        %v2996 = vld [vmem:[#allocation2 + $0x108] sm:$0xff]
        %s2997 = scalar_lea.vmem [#allocation8], 128
        %v2998 = vld [vmem:[%s2997] sm:$0xff]
        %v2999 = vld [vmem:[%s2997 + $0x8] sm:$0xff]
        %v3000 = vld [vmem:[%s2997 + $0x10] sm:$0xff]
        %v3001 = vld [vmem:[%s2997 + $0x18] sm:$0xff]
        %v3003 = vsel %vm624, %v2965, 0
        %v3006 = vsel %vm624, %v2966, 0
        %v3009 = vsel %vm624, %v2967, 0
        %v3012 = vsel %vm624, %v2968, 0
        %v3015 = vsel %vm624, %v2969, 0
        %v3018 = vsel %vm624, %v2970, 0
        %v3021 = vsel %vm624, %v2971, 0
        %v3024 = vsel %vm624, %v2972, 0
        %v3027 = vsel %vm624, %v2973, 0
        %v3030 = vsel %vm624, %v2974, 0
        %v3033 = vsel %vm624, %v2975, 0
        %v3036 = vsel %vm624, %v2976, 0
        %v3039 = vsel %vm624, %v2977, 0
        %v3042 = vsel %vm624, %v2978, 0
        %v3045 = vsel %vm624, %v2979, 0
        %v3048 = vsel %vm624, %v2980, 0
        %v3051 = vsel %vm624, %v2981, 0
        %v3054 = vsel %vm624, %v2982, 0
        %v3057 = vsel %vm624, %v2983, 0
        %v3060 = vsel %vm624, %v2984, 0
        %v3063 = vsel %vm624, %v2985, 0
        %v3066 = vsel %vm624, %v2986, 0
        %v3069 = vsel %vm624, %v2987, 0
        %v3072 = vsel %vm624, %v2988, 0
        %v3075 = vsel %vm624, %v2989, 0
        %v3078 = vsel %vm624, %v2990, 0
        %v3081 = vsel %vm624, %v2991, 0
        %v3084 = vsel %vm624, %v2992, 0
        %v3087 = vsel %vm624, %v2993, 0
        %v3090 = vsel %vm624, %v2994, 0
        %v3093 = vsel %vm624, %v2995, 0
        %v3096 = vsel %vm624, %v2996, 0
        %3098 = vmatprep.subr.mxu0 0.0
        %3099 = vmatpush1.msra.mxu0 %v2998
        %3100 = vmatprep.subr.mxu0 0.0
        %3101 = vmatpush1.msra.mxu0 %v2999
        %3102 = vmatprep.subr.mxu0 0.0
        %3103 = vmatpush1.msra.mxu0 %v3000
        %3104 = vmatprep.subr.mxu0 0.0
        %3105 = vmatpush1.msra.mxu0 %v3001
        %3106 = vmatprep.subr.mxu0 0.0
        %3107 = vmatpush1.msra.mxu0 0.0
        %3108 = vmatprep.subr.mxu0 0.0
        %3109 = vmatpush1.msra.mxu0 0.0
        %3110 = vmatprep.subr.mxu0 0.0
        %3111 = vmatpush1.msra.mxu0 0.0
        %3112 = vmatprep.subr.mxu0 0.0
        %3113 = vmatpush1.msra.mxu0 0.0
        %3114 = vmatprep.subr.mxu0 0.0
        %3115 = vmatpush1.msra.mxu0 0.0
        %3116 = vmatprep.subr.mxu0 0.0
        %3117 = vmatpush1.msra.mxu0 0.0
        %3118 = vmatprep.subr.mxu0 0.0
        %3119 = vmatpush1.msra.mxu0 0.0
        %3120 = vmatprep.subr.mxu0 0.0
        %3121 = vmatpush1.msra.mxu0 0.0
        %3122 = vmatprep.subr.mxu0 0.0
        %3123 = vmatpush1.msra.mxu0 0.0
        %3124 = vmatprep.subr.mxu0 0.0
        %3125 = vmatpush1.msra.mxu0 0.0
        %3126 = vmatprep.subr.mxu0 0.0
        %3127 = vmatpush1.msra.mxu0 0.0
        %3128 = vmatprep.subr.mxu0 0.0
        %3129 = vmatpush1.msra.mxu0 0.0
        %3130 = vmatprep.subr.mxu0 0.0
        %3131 = vmatpush1.msra.mxu0 0.0
        %3132 = vmatprep.subr.mxu0 0.0
        %3133 = vmatpush1.msra.mxu0 0.0
        %3134 = vmatprep.subr.mxu0 0.0
        %3135 = vmatpush1.msra.mxu0 0.0
        %3136 = vmatprep.subr.mxu0 0.0
        %3137 = vmatpush1.msra.mxu0 0.0
        %3138 = vmatprep.subr.mxu0 0.0
        %3139 = vmatpush1.msra.mxu0 0.0
        %3140 = vmatprep.subr.mxu0 0.0
        %3141 = vmatpush1.msra.mxu0 0.0
        %3142 = vmatprep.subr.mxu0 0.0
        %3143 = vmatpush1.msra.mxu0 0.0
        %3144 = vmatprep.subr.mxu0 0.0
        %3145 = vmatpush1.msra.mxu0 0.0
        %3146 = vmatprep.subr.mxu0 0.0
        %3147 = vmatpush1.msra.mxu0 0.0
        %3148 = vmatprep.subr.mxu0 0.0
        %3149 = vmatpush1.msra.mxu0 0.0
        %3150 = vmatprep.subr.mxu0 0.0
        %3151 = vmatpush1.msra.mxu0 0.0
        %3152 = vmatprep.subr.mxu0 0.0
        %3153 = vmatpush1.msra.mxu0 0.0
        %3154 = vmatprep.subr.mxu0 0.0
        %3155 = vmatpush1.msra.mxu0 0.0
        %3156 = vmatprep.subr.mxu0 0.0
        %3157 = vmatpush1.msra.mxu0 0.0
        %3158 = vmatprep.subr.mxu0 0.0
        %3159 = vmatpush1.msra.mxu0 0.0
        %3160 = vmatprep.subr.mxu0 0.0
        %3161 = vmatpush1.msra.mxu0 0.0
        %3162 = vmatprep.mubr.f32.mxu0 0.0
        %3163 = vmatmul.mubr.f32.gmra.mrb[0].mxu0 %v3003
        %v3164 = vpop.f32.mrb[0].mxu0
        %v3165 = vadd.f32 0.0, %v3164
        %v3166 = vpop.f32.mrb[0].mxu0
        %3167 = vmatprep.mubr.f32.mxu0 0.0
        %3168 = vmatmul.mubr.f32.gmra.mrb[0].mxu0 %v3006
        %v3169 = vpop.f32.mrb[0].mxu0
        %v3170 = vadd.f32 0.0, %v3169
        %v3171 = vpop.f32.mrb[0].mxu0
        %3172 = vmatprep.mubr.f32.mxu0 0.0
        %3173 = vmatmul.mubr.f32.gmra.mrb[0].mxu0 %v3009
        %v3174 = vpop.f32.mrb[0].mxu0
        %v3175 = vadd.f32 0.0, %v3174
        %v3176 = vpop.f32.mrb[0].mxu0
        %3177 = vmatprep.mubr.f32.mxu0 0.0
        %3178 = vmatmul.mubr.f32.gmra.mrb[0].mxu0 %v3012
        %v3179 = vpop.f32.mrb[0].mxu0
        %v3180 = vadd.f32 0.0, %v3179
        %v3181 = vpop.f32.mrb[0].mxu0
        %3182 = vmatprep.mubr.f32.mxu0 0.0
        %3183 = vmatmul.mubr.f32.gmra.mrb[0].mxu0 %v3015
        %v3184 = vpop.f32.mrb[0].mxu0
        %v3185 = vadd.f32 0.0, %v3184
        %v3186 = vpop.f32.mrb[0].mxu0
        %3187 = vmatprep.mubr.f32.mxu0 0.0
        %3188 = vmatmul.mubr.f32.gmra.mrb[0].mxu0 %v3018
        %v3189 = vpop.f32.mrb[0].mxu0
        %v3190 = vadd.f32 0.0, %v3189
        %v3191 = vpop.f32.mrb[0].mxu0
        %3192 = vmatprep.mubr.f32.mxu0 0.0
        %3193 = vmatmul.mubr.f32.gmra.mrb[0].mxu0 %v3021
        %v3194 = vpop.f32.mrb[0].mxu0
        %v3195 = vadd.f32 0.0, %v3194
        %v3196 = vpop.f32.mrb[0].mxu0
        %3197 = vmatprep.mubr.f32.mxu0 0.0
        %3198 = vmatmul.mubr.f32.gmra.mrb[0].mxu0 %v3024
        %v3199 = vpop.f32.mrb[0].mxu0
        %v3200 = vadd.f32 0.0, %v3199
        %v3201 = vpop.f32.mrb[0].mxu0
        %3202 = vmatprep.mubr.f32.mxu0 0.0
        %3203 = vmatmul.mubr.f32.gmra.mrb[0].mxu0 %v3027
        %v3204 = vpop.f32.mrb[0].mxu0
        %v3205 = vadd.f32 0.0, %v3204
        %v3206 = vpop.f32.mrb[0].mxu0
        %3207 = vmatprep.mubr.f32.mxu0 0.0
        %3208 = vmatmul.mubr.f32.gmra.mrb[0].mxu0 %v3030
        %v3209 = vpop.f32.mrb[0].mxu0
        %v3210 = vadd.f32 0.0, %v3209
        %v3211 = vpop.f32.mrb[0].mxu0
        %3212 = vmatprep.mubr.f32.mxu0 0.0
        %3213 = vmatmul.mubr.f32.gmra.mrb[0].mxu0 %v3033
        %v3214 = vpop.f32.mrb[0].mxu0
        %v3215 = vadd.f32 0.0, %v3214
        %v3216 = vpop.f32.mrb[0].mxu0
        %3217 = vmatprep.mubr.f32.mxu0 0.0
        %3218 = vmatmul.mubr.f32.gmra.mrb[0].mxu0 %v3036
        %v3219 = vpop.f32.mrb[0].mxu0
        %v3220 = vadd.f32 0.0, %v3219
        %v3221 = vpop.f32.mrb[0].mxu0
        %3222 = vmatprep.mubr.f32.mxu0 0.0
        %3223 = vmatmul.mubr.f32.gmra.mrb[0].mxu0 %v3039
        %v3224 = vpop.f32.mrb[0].mxu0
        %v3225 = vadd.f32 0.0, %v3224
        %v3226 = vpop.f32.mrb[0].mxu0
        %3227 = vmatprep.mubr.f32.mxu0 0.0
        %3228 = vmatmul.mubr.f32.gmra.mrb[0].mxu0 %v3042
        %v3229 = vpop.f32.mrb[0].mxu0
        %v3230 = vadd.f32 0.0, %v3229
        %v3231 = vpop.f32.mrb[0].mxu0
        %3232 = vmatprep.mubr.f32.mxu0 0.0
        %3233 = vmatmul.mubr.f32.gmra.mrb[0].mxu0 %v3045
        %v3234 = vpop.f32.mrb[0].mxu0
        %v3235 = vadd.f32 0.0, %v3234
        %v3236 = vpop.f32.mrb[0].mxu0
        %3237 = vmatprep.mubr.f32.mxu0 0.0
        %3238 = vmatmul.mubr.f32.gmra.mrb[0].mxu0 %v3048
        %v3239 = vpop.f32.mrb[0].mxu0
        %v3240 = vadd.f32 0.0, %v3239
        %v3241 = vpop.f32.mrb[0].mxu0
        %3242 = vmatprep.mubr.f32.mxu0 0.0
        %3243 = vmatmul.mubr.f32.gmra.mrb[0].mxu0 %v3051
        %v3244 = vpop.f32.mrb[0].mxu0
        %v3245 = vadd.f32 0.0, %v3244
        %v3246 = vpop.f32.mrb[0].mxu0
        %3247 = vmatprep.mubr.f32.mxu0 0.0
        %3248 = vmatmul.mubr.f32.gmra.mrb[0].mxu0 %v3054
        %v3249 = vpop.f32.mrb[0].mxu0
        %v3250 = vadd.f32 0.0, %v3249
        %v3251 = vpop.f32.mrb[0].mxu0
        %3252 = vmatprep.mubr.f32.mxu0 0.0
        %3253 = vmatmul.mubr.f32.gmra.mrb[0].mxu0 %v3057
        %v3254 = vpop.f32.mrb[0].mxu0
        %v3255 = vadd.f32 0.0, %v3254
        %v3256 = vpop.f32.mrb[0].mxu0
        %3257 = vmatprep.mubr.f32.mxu0 0.0
        %3258 = vmatmul.mubr.f32.gmra.mrb[0].mxu0 %v3060
        %v3259 = vpop.f32.mrb[0].mxu0
        %v3260 = vadd.f32 0.0, %v3259
        %v3261 = vpop.f32.mrb[0].mxu0
        %3262 = vmatprep.mubr.f32.mxu0 0.0
        %3263 = vmatmul.mubr.f32.gmra.mrb[0].mxu0 %v3063
        %v3264 = vpop.f32.mrb[0].mxu0
        %v3265 = vadd.f32 0.0, %v3264
        %v3266 = vpop.f32.mrb[0].mxu0
        %3267 = vmatprep.mubr.f32.mxu0 0.0
        %3268 = vmatmul.mubr.f32.gmra.mrb[0].mxu0 %v3066
        %v3269 = vpop.f32.mrb[0].mxu0
        %v3270 = vadd.f32 0.0, %v3269
        %v3271 = vpop.f32.mrb[0].mxu0
        %3272 = vmatprep.mubr.f32.mxu0 0.0
        %3273 = vmatmul.mubr.f32.gmra.mrb[0].mxu0 %v3069
        %v3274 = vpop.f32.mrb[0].mxu0
        %v3275 = vadd.f32 0.0, %v3274
        %v3276 = vpop.f32.mrb[0].mxu0
        %3277 = vmatprep.mubr.f32.mxu0 0.0
        %3278 = vmatmul.mubr.f32.gmra.mrb[0].mxu0 %v3072
        %v3279 = vpop.f32.mrb[0].mxu0
        %v3280 = vadd.f32 0.0, %v3279
        %v3281 = vpop.f32.mrb[0].mxu0
        %3282 = vmatprep.mubr.f32.mxu0 0.0
        %3283 = vmatmul.mubr.f32.gmra.mrb[0].mxu0 %v3075
        %v3284 = vpop.f32.mrb[0].mxu0
        %v3285 = vadd.f32 0.0, %v3284
        %v3286 = vpop.f32.mrb[0].mxu0
        %3287 = vmatprep.mubr.f32.mxu0 0.0
        %3288 = vmatmul.mubr.f32.gmra.mrb[0].mxu0 %v3078
        %v3289 = vpop.f32.mrb[0].mxu0
        %v3290 = vadd.f32 0.0, %v3289
        %v3291 = vpop.f32.mrb[0].mxu0
        %3292 = vmatprep.mubr.f32.mxu0 0.0
        %3293 = vmatmul.mubr.f32.gmra.mrb[0].mxu0 %v3081
        %v3294 = vpop.f32.mrb[0].mxu0
        %v3295 = vadd.f32 0.0, %v3294
        %v3296 = vpop.f32.mrb[0].mxu0
        %3297 = vmatprep.mubr.f32.mxu0 0.0
        %3298 = vmatmul.mubr.f32.gmra.mrb[0].mxu0 %v3084
        %v3299 = vpop.f32.mrb[0].mxu0
        %v3300 = vadd.f32 0.0, %v3299
        %v3301 = vpop.f32.mrb[0].mxu0
        %3302 = vmatprep.mubr.f32.mxu0 0.0
        %3303 = vmatmul.mubr.f32.gmra.mrb[0].mxu0 %v3087
        %v3304 = vpop.f32.mrb[0].mxu0
        %v3305 = vadd.f32 0.0, %v3304
        %v3306 = vpop.f32.mrb[0].mxu0
        %3307 = vmatprep.mubr.f32.mxu0 0.0
        %3308 = vmatmul.mubr.f32.gmra.mrb[0].mxu0 %v3090
        %v3309 = vpop.f32.mrb[0].mxu0
        %v3310 = vadd.f32 0.0, %v3309
        %v3311 = vpop.f32.mrb[0].mxu0
        %3312 = vmatprep.mubr.f32.mxu0 0.0
        %3313 = vmatmul.mubr.f32.gmra.mrb[0].mxu0 %v3093
        %v3314 = vpop.f32.mrb[0].mxu0
        %v3315 = vadd.f32 0.0, %v3314
        %v3316 = vpop.f32.mrb[0].mxu0
        %3317 = vmatprep.mubr.f32.mxu0 0.0
        %3318 = vmatmul.mubr.f32.gmra.mrb[0].mxu0 %v3096
        %v3319 = vpop.f32.mrb[0].mxu0
        %v3320 = vadd.f32 0.0, %v3319
        %v3321 = vpop.f32.mrb[0].mxu0
        %3322 = vdwg.mxu0
        %v3323 = vadd.f32 %v2933, %v3165
        %v3324 = vadd.f32 %v2934, %v3170
        %v3325 = vadd.f32 %v2935, %v3175
        %v3326 = vadd.f32 %v2936, %v3180
        %v3327 = vadd.f32 %v2937, %v3185
        %v3328 = vadd.f32 %v2938, %v3190
        %v3329 = vadd.f32 %v2939, %v3195
        %v3330 = vadd.f32 %v2940, %v3200
        %v3331 = vadd.f32 %v2941, %v3205
        %v3332 = vadd.f32 %v2942, %v3210
        %v3333 = vadd.f32 %v2943, %v3215
        %v3334 = vadd.f32 %v2944, %v3220
        %v3335 = vadd.f32 %v2945, %v3225
        %v3336 = vadd.f32 %v2946, %v3230
        %v3337 = vadd.f32 %v2947, %v3235
        %v3338 = vadd.f32 %v2948, %v3240
        %v3339 = vadd.f32 %v2949, %v3245
        %v3340 = vadd.f32 %v2950, %v3250
        %v3341 = vadd.f32 %v2951, %v3255
        %v3342 = vadd.f32 %v2952, %v3260
        %v3343 = vadd.f32 %v2953, %v3265
        %v3344 = vadd.f32 %v2954, %v3270
        %v3345 = vadd.f32 %v2955, %v3275
        %v3346 = vadd.f32 %v2956, %v3280
        %v3347 = vadd.f32 %v2957, %v3285
        %v3348 = vadd.f32 %v2958, %v3290
        %v3349 = vadd.f32 %v2959, %v3295
        %v3350 = vadd.f32 %v2960, %v3300
        %v3351 = vadd.f32 %v2961, %v3305
        %v3352 = vadd.f32 %v2962, %v3310
        %v3353 = vadd.f32 %v2963, %v3315
        %v3354 = vadd.f32 %v2964, %v3320
        %v3355 = vld [vmem:[#allocation4 + $0x10] sm:$0xff]
        %v3356 = vld [vmem:[#allocation4 + $0x18] sm:$0xff]
        %v3357 = vld [vmem:[#allocation4 + $0x20] sm:$0xff]
        %v3358 = vld [vmem:[#allocation4 + $0x28] sm:$0xff]
        %v3359 = vld [vmem:[#allocation4 + $0x30] sm:$0xff]
        %v3360 = vld [vmem:[#allocation4 + $0x38] sm:$0xff]
        %v3361 = vld [vmem:[#allocation4 + $0x40] sm:$0xff]
        %v3362 = vld [vmem:[#allocation4 + $0x48] sm:$0xff]
        %v3363 = vld [vmem:[#allocation4 + $0x50] sm:$0xff]
        %v3364 = vld [vmem:[#allocation4 + $0x58] sm:$0xff]
        %v3365 = vld [vmem:[#allocation4 + $0x60] sm:$0xff]
        %v3366 = vld [vmem:[#allocation4 + $0x68] sm:$0xff]
        %v3367 = vld [vmem:[#allocation4 + $0x70] sm:$0xff]
        %v3368 = vld [vmem:[#allocation4 + $0x78] sm:$0xff]
        %v3369 = vld [vmem:[#allocation4 + $0x80] sm:$0xff]
        %v3370 = vld [vmem:[#allocation4 + $0x88] sm:$0xff]
        %v3371 = vld [vmem:[#allocation4 + $0x90] sm:$0xff]
        %v3372 = vld [vmem:[#allocation4 + $0x98] sm:$0xff]
        %v3373 = vld [vmem:[#allocation4 + $0xa0] sm:$0xff]
        %v3374 = vld [vmem:[#allocation4 + $0xa8] sm:$0xff]
        %v3375 = vld [vmem:[#allocation4 + $0xb0] sm:$0xff]
        %v3376 = vld [vmem:[#allocation4 + $0xb8] sm:$0xff]
        %v3377 = vld [vmem:[#allocation4 + $0xc0] sm:$0xff]
        %v3378 = vld [vmem:[#allocation4 + $0xc8] sm:$0xff]
        %v3379 = vld [vmem:[#allocation4 + $0xd0] sm:$0xff]
        %v3380 = vld [vmem:[#allocation4 + $0xd8] sm:$0xff]
        %v3381 = vld [vmem:[#allocation4 + $0xe0] sm:$0xff]
        %v3382 = vld [vmem:[#allocation4 + $0xe8] sm:$0xff]
        %v3383 = vld [vmem:[#allocation4 + $0xf0] sm:$0xff]
        %v3384 = vld [vmem:[#allocation4 + $0xf8] sm:$0xff]
        %v3385 = vld [vmem:[#allocation4 + $0x100] sm:$0xff]
        %v3386 = vld [vmem:[#allocation4 + $0x108] sm:$0xff]
        %s3387 = scalar_lea.vmem [#allocation8], 160
        %v3388 = vld [vmem:[%s3387] sm:$0xff]
        %v3389 = vld [vmem:[%s3387 + $0x8] sm:$0xff]
        %v3390 = vld [vmem:[%s3387 + $0x10] sm:$0xff]
        %v3391 = vld [vmem:[%s3387 + $0x18] sm:$0xff]
        %v3393 = vsel %vm624, %v3355, 0
        %v3396 = vsel %vm624, %v3356, 0
        %v3399 = vsel %vm624, %v3357, 0
        %v3402 = vsel %vm624, %v3358, 0
        %v3405 = vsel %vm624, %v3359, 0
        %v3408 = vsel %vm624, %v3360, 0
        %v3411 = vsel %vm624, %v3361, 0
        %v3414 = vsel %vm624, %v3362, 0
        %v3417 = vsel %vm624, %v3363, 0
        %v3420 = vsel %vm624, %v3364, 0
        %v3423 = vsel %vm624, %v3365, 0
        %v3426 = vsel %vm624, %v3366, 0
        %v3429 = vsel %vm624, %v3367, 0
        %v3432 = vsel %vm624, %v3368, 0
        %v3435 = vsel %vm624, %v3369, 0
        %v3438 = vsel %vm624, %v3370, 0
        %v3441 = vsel %vm624, %v3371, 0
        %v3444 = vsel %vm624, %v3372, 0
        %v3447 = vsel %vm624, %v3373, 0
        %v3450 = vsel %vm624, %v3374, 0
        %v3453 = vsel %vm624, %v3375, 0
        %v3456 = vsel %vm624, %v3376, 0
        %v3459 = vsel %vm624, %v3377, 0
        %v3462 = vsel %vm624, %v3378, 0
        %v3465 = vsel %vm624, %v3379, 0
        %v3468 = vsel %vm624, %v3380, 0
        %v3471 = vsel %vm624, %v3381, 0
        %v3474 = vsel %vm624, %v3382, 0
        %v3477 = vsel %vm624, %v3383, 0
        %v3480 = vsel %vm624, %v3384, 0
        %v3483 = vsel %vm624, %v3385, 0
        %v3486 = vsel %vm624, %v3386, 0
        %3488 = vmatprep.subr.mxu0 0.0
        %3489 = vmatpush1.msra.mxu0 %v3388
        %3490 = vmatprep.subr.mxu0 0.0
        %3491 = vmatpush1.msra.mxu0 %v3389
        %3492 = vmatprep.subr.mxu0 0.0
        %3493 = vmatpush1.msra.mxu0 %v3390
        %3494 = vmatprep.subr.mxu0 0.0
        %3495 = vmatpush1.msra.mxu0 %v3391
        %3496 = vmatprep.subr.mxu0 0.0
        %3497 = vmatpush1.msra.mxu0 0.0
        %3498 = vmatprep.subr.mxu0 0.0
        %3499 = vmatpush1.msra.mxu0 0.0
        %3500 = vmatprep.subr.mxu0 0.0
        %3501 = vmatpush1.msra.mxu0 0.0
        %3502 = vmatprep.subr.mxu0 0.0
        %3503 = vmatpush1.msra.mxu0 0.0
        %3504 = vmatprep.subr.mxu0 0.0
        %3505 = vmatpush1.msra.mxu0 0.0
        %3506 = vmatprep.subr.mxu0 0.0
        %3507 = vmatpush1.msra.mxu0 0.0
        %3508 = vmatprep.subr.mxu0 0.0
        %3509 = vmatpush1.msra.mxu0 0.0
        %3510 = vmatprep.subr.mxu0 0.0
        %3511 = vmatpush1.msra.mxu0 0.0
        %3512 = vmatprep.subr.mxu0 0.0
        %3513 = vmatpush1.msra.mxu0 0.0
        %3514 = vmatprep.subr.mxu0 0.0
        %3515 = vmatpush1.msra.mxu0 0.0
        %3516 = vmatprep.subr.mxu0 0.0
        %3517 = vmatpush1.msra.mxu0 0.0
        %3518 = vmatprep.subr.mxu0 0.0
        %3519 = vmatpush1.msra.mxu0 0.0
        %3520 = vmatprep.subr.mxu0 0.0
        %3521 = vmatpush1.msra.mxu0 0.0
        %3522 = vmatprep.subr.mxu0 0.0
        %3523 = vmatpush1.msra.mxu0 0.0
        %3524 = vmatprep.subr.mxu0 0.0
        %3525 = vmatpush1.msra.mxu0 0.0
        %3526 = vmatprep.subr.mxu0 0.0
        %3527 = vmatpush1.msra.mxu0 0.0
        %3528 = vmatprep.subr.mxu0 0.0
        %3529 = vmatpush1.msra.mxu0 0.0
        %3530 = vmatprep.subr.mxu0 0.0
        %3531 = vmatpush1.msra.mxu0 0.0
        %3532 = vmatprep.subr.mxu0 0.0
        %3533 = vmatpush1.msra.mxu0 0.0
        %3534 = vmatprep.subr.mxu0 0.0
        %3535 = vmatpush1.msra.mxu0 0.0
        %3536 = vmatprep.subr.mxu0 0.0
        %3537 = vmatpush1.msra.mxu0 0.0
        %3538 = vmatprep.subr.mxu0 0.0
        %3539 = vmatpush1.msra.mxu0 0.0
        %3540 = vmatprep.subr.mxu0 0.0
        %3541 = vmatpush1.msra.mxu0 0.0
        %3542 = vmatprep.subr.mxu0 0.0
        %3543 = vmatpush1.msra.mxu0 0.0
        %3544 = vmatprep.subr.mxu0 0.0
        %3545 = vmatpush1.msra.mxu0 0.0
        %3546 = vmatprep.subr.mxu0 0.0
        %3547 = vmatpush1.msra.mxu0 0.0
        %3548 = vmatprep.subr.mxu0 0.0
        %3549 = vmatpush1.msra.mxu0 0.0
        %3550 = vmatprep.subr.mxu0 0.0
        %3551 = vmatpush1.msra.mxu0 0.0
        %3552 = vmatprep.mubr.f32.mxu0 0.0
        %3553 = vmatmul.mubr.f32.gmra.mrb[0].mxu0 %v3393
        %v3554 = vpop.f32.mrb[0].mxu0
        %v3555 = vadd.f32 0.0, %v3554
        %v3556 = vpop.f32.mrb[0].mxu0
        %3557 = vmatprep.mubr.f32.mxu0 0.0
        %3558 = vmatmul.mubr.f32.gmra.mrb[0].mxu0 %v3396
        %v3559 = vpop.f32.mrb[0].mxu0
        %v3560 = vadd.f32 0.0, %v3559
        %v3561 = vpop.f32.mrb[0].mxu0
        %3562 = vmatprep.mubr.f32.mxu0 0.0
        %3563 = vmatmul.mubr.f32.gmra.mrb[0].mxu0 %v3399
        %v3564 = vpop.f32.mrb[0].mxu0
        %v3565 = vadd.f32 0.0, %v3564
        %v3566 = vpop.f32.mrb[0].mxu0
        %3567 = vmatprep.mubr.f32.mxu0 0.0
        %3568 = vmatmul.mubr.f32.gmra.mrb[0].mxu0 %v3402
        %v3569 = vpop.f32.mrb[0].mxu0
        %v3570 = vadd.f32 0.0, %v3569
        %v3571 = vpop.f32.mrb[0].mxu0
        %3572 = vmatprep.mubr.f32.mxu0 0.0
        %3573 = vmatmul.mubr.f32.gmra.mrb[0].mxu0 %v3405
        %v3574 = vpop.f32.mrb[0].mxu0
        %v3575 = vadd.f32 0.0, %v3574
        %v3576 = vpop.f32.mrb[0].mxu0
        %3577 = vmatprep.mubr.f32.mxu0 0.0
        %3578 = vmatmul.mubr.f32.gmra.mrb[0].mxu0 %v3408
        %v3579 = vpop.f32.mrb[0].mxu0
        %v3580 = vadd.f32 0.0, %v3579
        %v3581 = vpop.f32.mrb[0].mxu0
        %3582 = vmatprep.mubr.f32.mxu0 0.0
        %3583 = vmatmul.mubr.f32.gmra.mrb[0].mxu0 %v3411
        %v3584 = vpop.f32.mrb[0].mxu0
        %v3585 = vadd.f32 0.0, %v3584
        %v3586 = vpop.f32.mrb[0].mxu0
        %3587 = vmatprep.mubr.f32.mxu0 0.0
        %3588 = vmatmul.mubr.f32.gmra.mrb[0].mxu0 %v3414
        %v3589 = vpop.f32.mrb[0].mxu0
        %v3590 = vadd.f32 0.0, %v3589
        %v3591 = vpop.f32.mrb[0].mxu0
        %3592 = vmatprep.mubr.f32.mxu0 0.0
        %3593 = vmatmul.mubr.f32.gmra.mrb[0].mxu0 %v3417
        %v3594 = vpop.f32.mrb[0].mxu0
        %v3595 = vadd.f32 0.0, %v3594
        %v3596 = vpop.f32.mrb[0].mxu0
        %3597 = vmatprep.mubr.f32.mxu0 0.0
        %3598 = vmatmul.mubr.f32.gmra.mrb[0].mxu0 %v3420
        %v3599 = vpop.f32.mrb[0].mxu0
        %v3600 = vadd.f32 0.0, %v3599
        %v3601 = vpop.f32.mrb[0].mxu0
        %3602 = vmatprep.mubr.f32.mxu0 0.0
        %3603 = vmatmul.mubr.f32.gmra.mrb[0].mxu0 %v3423
        %v3604 = vpop.f32.mrb[0].mxu0
        %v3605 = vadd.f32 0.0, %v3604
        %v3606 = vpop.f32.mrb[0].mxu0
        %3607 = vmatprep.mubr.f32.mxu0 0.0
        %3608 = vmatmul.mubr.f32.gmra.mrb[0].mxu0 %v3426
        %v3609 = vpop.f32.mrb[0].mxu0
        %v3610 = vadd.f32 0.0, %v3609
        %v3611 = vpop.f32.mrb[0].mxu0
        %3612 = vmatprep.mubr.f32.mxu0 0.0
        %3613 = vmatmul.mubr.f32.gmra.mrb[0].mxu0 %v3429
        %v3614 = vpop.f32.mrb[0].mxu0
        %v3615 = vadd.f32 0.0, %v3614
        %v3616 = vpop.f32.mrb[0].mxu0
        %3617 = vmatprep.mubr.f32.mxu0 0.0
        %3618 = vmatmul.mubr.f32.gmra.mrb[0].mxu0 %v3432
        %v3619 = vpop.f32.mrb[0].mxu0
        %v3620 = vadd.f32 0.0, %v3619
        %v3621 = vpop.f32.mrb[0].mxu0
        %3622 = vmatprep.mubr.f32.mxu0 0.0
        %3623 = vmatmul.mubr.f32.gmra.mrb[0].mxu0 %v3435
        %v3624 = vpop.f32.mrb[0].mxu0
        %v3625 = vadd.f32 0.0, %v3624
        %v3626 = vpop.f32.mrb[0].mxu0
        %3627 = vmatprep.mubr.f32.mxu0 0.0
        %3628 = vmatmul.mubr.f32.gmra.mrb[0].mxu0 %v3438
        %v3629 = vpop.f32.mrb[0].mxu0
        %v3630 = vadd.f32 0.0, %v3629
        %v3631 = vpop.f32.mrb[0].mxu0
        %3632 = vmatprep.mubr.f32.mxu0 0.0
        %3633 = vmatmul.mubr.f32.gmra.mrb[0].mxu0 %v3441
        %v3634 = vpop.f32.mrb[0].mxu0
        %v3635 = vadd.f32 0.0, %v3634
        %v3636 = vpop.f32.mrb[0].mxu0
        %3637 = vmatprep.mubr.f32.mxu0 0.0
        %3638 = vmatmul.mubr.f32.gmra.mrb[0].mxu0 %v3444
        %v3639 = vpop.f32.mrb[0].mxu0
        %v3640 = vadd.f32 0.0, %v3639
        %v3641 = vpop.f32.mrb[0].mxu0
        %3642 = vmatprep.mubr.f32.mxu0 0.0
        %3643 = vmatmul.mubr.f32.gmra.mrb[0].mxu0 %v3447
        %v3644 = vpop.f32.mrb[0].mxu0
        %v3645 = vadd.f32 0.0, %v3644
        %v3646 = vpop.f32.mrb[0].mxu0
        %3647 = vmatprep.mubr.f32.mxu0 0.0
        %3648 = vmatmul.mubr.f32.gmra.mrb[0].mxu0 %v3450
        %v3649 = vpop.f32.mrb[0].mxu0
        %v3650 = vadd.f32 0.0, %v3649
        %v3651 = vpop.f32.mrb[0].mxu0
        %3652 = vmatprep.mubr.f32.mxu0 0.0
        %3653 = vmatmul.mubr.f32.gmra.mrb[0].mxu0 %v3453
        %v3654 = vpop.f32.mrb[0].mxu0
        %v3655 = vadd.f32 0.0, %v3654
        %v3656 = vpop.f32.mrb[0].mxu0
        %3657 = vmatprep.mubr.f32.mxu0 0.0
        %3658 = vmatmul.mubr.f32.gmra.mrb[0].mxu0 %v3456
        %v3659 = vpop.f32.mrb[0].mxu0
        %v3660 = vadd.f32 0.0, %v3659
        %v3661 = vpop.f32.mrb[0].mxu0
        %3662 = vmatprep.mubr.f32.mxu0 0.0
        %3663 = vmatmul.mubr.f32.gmra.mrb[0].mxu0 %v3459
        %v3664 = vpop.f32.mrb[0].mxu0
        %v3665 = vadd.f32 0.0, %v3664
        %v3666 = vpop.f32.mrb[0].mxu0
        %3667 = vmatprep.mubr.f32.mxu0 0.0
        %3668 = vmatmul.mubr.f32.gmra.mrb[0].mxu0 %v3462
        %v3669 = vpop.f32.mrb[0].mxu0
        %v3670 = vadd.f32 0.0, %v3669
        %v3671 = vpop.f32.mrb[0].mxu0
        %3672 = vmatprep.mubr.f32.mxu0 0.0
        %3673 = vmatmul.mubr.f32.gmra.mrb[0].mxu0 %v3465
        %v3674 = vpop.f32.mrb[0].mxu0
        %v3675 = vadd.f32 0.0, %v3674
        %v3676 = vpop.f32.mrb[0].mxu0
        %3677 = vmatprep.mubr.f32.mxu0 0.0
        %3678 = vmatmul.mubr.f32.gmra.mrb[0].mxu0 %v3468
        %v3679 = vpop.f32.mrb[0].mxu0
        %v3680 = vadd.f32 0.0, %v3679
        %v3681 = vpop.f32.mrb[0].mxu0
        %3682 = vmatprep.mubr.f32.mxu0 0.0
        %3683 = vmatmul.mubr.f32.gmra.mrb[0].mxu0 %v3471
        %v3684 = vpop.f32.mrb[0].mxu0
        %v3685 = vadd.f32 0.0, %v3684
        %v3686 = vpop.f32.mrb[0].mxu0
        %3687 = vmatprep.mubr.f32.mxu0 0.0
        %3688 = vmatmul.mubr.f32.gmra.mrb[0].mxu0 %v3474
        %v3689 = vpop.f32.mrb[0].mxu0
        %v3690 = vadd.f32 0.0, %v3689
        %v3691 = vpop.f32.mrb[0].mxu0
        %3692 = vmatprep.mubr.f32.mxu0 0.0
        %3693 = vmatmul.mubr.f32.gmra.mrb[0].mxu0 %v3477
        %v3694 = vpop.f32.mrb[0].mxu0
        %v3695 = vadd.f32 0.0, %v3694
        %v3696 = vpop.f32.mrb[0].mxu0
        %3697 = vmatprep.mubr.f32.mxu0 0.0
        %3698 = vmatmul.mubr.f32.gmra.mrb[0].mxu0 %v3480
        %v3699 = vpop.f32.mrb[0].mxu0
        %v3700 = vadd.f32 0.0, %v3699
        %v3701 = vpop.f32.mrb[0].mxu0
        %3702 = vmatprep.mubr.f32.mxu0 0.0
        %3703 = vmatmul.mubr.f32.gmra.mrb[0].mxu0 %v3483
        %v3704 = vpop.f32.mrb[0].mxu0
        %v3705 = vadd.f32 0.0, %v3704
        %v3706 = vpop.f32.mrb[0].mxu0
        %3707 = vmatprep.mubr.f32.mxu0 0.0
        %3708 = vmatmul.mubr.f32.gmra.mrb[0].mxu0 %v3486
        %v3709 = vpop.f32.mrb[0].mxu0
        %v3710 = vadd.f32 0.0, %v3709
        %v3711 = vpop.f32.mrb[0].mxu0
        %3712 = vdwg.mxu0
        %v3713 = vadd.f32 %v3323, %v3555
        %v3714 = vadd.f32 %v3324, %v3560
        %v3715 = vadd.f32 %v3325, %v3565
        %v3716 = vadd.f32 %v3326, %v3570
        %v3717 = vadd.f32 %v3327, %v3575
        %v3718 = vadd.f32 %v3328, %v3580
        %v3719 = vadd.f32 %v3329, %v3585
        %v3720 = vadd.f32 %v3330, %v3590
        %v3721 = vadd.f32 %v3331, %v3595
        %v3722 = vadd.f32 %v3332, %v3600
        %v3723 = vadd.f32 %v3333, %v3605
        %v3724 = vadd.f32 %v3334, %v3610
        %v3725 = vadd.f32 %v3335, %v3615
        %v3726 = vadd.f32 %v3336, %v3620
        %v3727 = vadd.f32 %v3337, %v3625
        %v3728 = vadd.f32 %v3338, %v3630
        %v3729 = vadd.f32 %v3339, %v3635
        %v3730 = vadd.f32 %v3340, %v3640
        %v3731 = vadd.f32 %v3341, %v3645
        %v3732 = vadd.f32 %v3342, %v3650
        %v3733 = vadd.f32 %v3343, %v3655
        %v3734 = vadd.f32 %v3344, %v3660
        %v3735 = vadd.f32 %v3345, %v3665
        %v3736 = vadd.f32 %v3346, %v3670
        %v3737 = vadd.f32 %v3347, %v3675
        %v3738 = vadd.f32 %v3348, %v3680
        %v3739 = vadd.f32 %v3349, %v3685
        %v3740 = vadd.f32 %v3350, %v3690
        %v3741 = vadd.f32 %v3351, %v3695
        %v3742 = vadd.f32 %v3352, %v3700
        %v3743 = vadd.f32 %v3353, %v3705
        %v3744 = vadd.f32 %v3354, %v3710
        %v3745 = vld [vmem:[#allocation3 + $0x20] sm:$0xff]
        %v3746 = vld [vmem:[#allocation3 + $0x28] sm:$0xff]
        %v3747 = vld [vmem:[#allocation3 + $0x30] sm:$0xff]
        %v3748 = vld [vmem:[#allocation3 + $0x38] sm:$0xff]
        %v3749 = vld [vmem:[#allocation3 + $0x40] sm:$0xff]
        %v3750 = vld [vmem:[#allocation3 + $0x48] sm:$0xff]
        %v3751 = vld [vmem:[#allocation3 + $0x50] sm:$0xff]
        %v3752 = vld [vmem:[#allocation3 + $0x58] sm:$0xff]
        %v3753 = vld [vmem:[#allocation3 + $0x60] sm:$0xff]
        %v3754 = vld [vmem:[#allocation3 + $0x68] sm:$0xff]
        %v3755 = vld [vmem:[#allocation3 + $0x70] sm:$0xff]
        %v3756 = vld [vmem:[#allocation3 + $0x78] sm:$0xff]
        %v3757 = vld [vmem:[#allocation3 + $0x80] sm:$0xff]
        %v3758 = vld [vmem:[#allocation3 + $0x88] sm:$0xff]
        %v3759 = vld [vmem:[#allocation3 + $0x90] sm:$0xff]
        %v3760 = vld [vmem:[#allocation3 + $0x98] sm:$0xff]
        %v3761 = vld [vmem:[#allocation3 + $0xa0] sm:$0xff]
        %v3762 = vld [vmem:[#allocation3 + $0xa8] sm:$0xff]
        %v3763 = vld [vmem:[#allocation3 + $0xb0] sm:$0xff]
        %v3764 = vld [vmem:[#allocation3 + $0xb8] sm:$0xff]
        %v3765 = vld [vmem:[#allocation3 + $0xc0] sm:$0xff]
        %v3766 = vld [vmem:[#allocation3 + $0xc8] sm:$0xff]
        %v3767 = vld [vmem:[#allocation3 + $0xd0] sm:$0xff]
        %v3768 = vld [vmem:[#allocation3 + $0xd8] sm:$0xff]
        %v3769 = vld [vmem:[#allocation3 + $0xe0] sm:$0xff]
        %v3770 = vld [vmem:[#allocation3 + $0xe8] sm:$0xff]
        %v3771 = vld [vmem:[#allocation3 + $0xf0] sm:$0xff]
        %v3772 = vld [vmem:[#allocation3 + $0xf8] sm:$0xff]
        %v3773 = vld [vmem:[#allocation3 + $0x100] sm:$0xff]
        %v3774 = vld [vmem:[#allocation3 + $0x108] sm:$0xff]
        %v3775 = vld [vmem:[#allocation3 + $0x110] sm:$0xff]
        %v3776 = vld [vmem:[#allocation3 + $0x118] sm:$0xff]
        %s3777 = scalar_lea.vmem [#allocation8], 192
        %v3778 = vld [vmem:[%s3777] sm:$0xff]
        %v3779 = vld [vmem:[%s3777 + $0x8] sm:$0xff]
        %v3780 = vld [vmem:[%s3777 + $0x10] sm:$0xff]
        %v3781 = vld [vmem:[%s3777 + $0x18] sm:$0xff]
        %v3783 = vsel %vm624, %v3745, 0
        %v3786 = vsel %vm624, %v3746, 0
        %v3789 = vsel %vm624, %v3747, 0
        %v3792 = vsel %vm624, %v3748, 0
        %v3795 = vsel %vm624, %v3749, 0
        %v3798 = vsel %vm624, %v3750, 0
        %v3801 = vsel %vm624, %v3751, 0
        %v3804 = vsel %vm624, %v3752, 0
        %v3807 = vsel %vm624, %v3753, 0
        %v3810 = vsel %vm624, %v3754, 0
        %v3813 = vsel %vm624, %v3755, 0
        %v3816 = vsel %vm624, %v3756, 0
        %v3819 = vsel %vm624, %v3757, 0
        %v3822 = vsel %vm624, %v3758, 0
        %v3825 = vsel %vm624, %v3759, 0
        %v3828 = vsel %vm624, %v3760, 0
        %v3831 = vsel %vm624, %v3761, 0
        %v3834 = vsel %vm624, %v3762, 0
        %v3837 = vsel %vm624, %v3763, 0
        %v3840 = vsel %vm624, %v3764, 0
        %v3843 = vsel %vm624, %v3765, 0
        %v3846 = vsel %vm624, %v3766, 0
        %v3849 = vsel %vm624, %v3767, 0
        %v3852 = vsel %vm624, %v3768, 0
        %v3855 = vsel %vm624, %v3769, 0
        %v3858 = vsel %vm624, %v3770, 0
        %v3861 = vsel %vm624, %v3771, 0
        %v3864 = vsel %vm624, %v3772, 0
        %v3867 = vsel %vm624, %v3773, 0
        %v3870 = vsel %vm624, %v3774, 0
        %v3873 = vsel %vm624, %v3775, 0
        %v3876 = vsel %vm624, %v3776, 0
        %3878 = vmatprep.subr.mxu0 0.0
        %3879 = vmatpush1.msra.mxu0 %v3778
        %3880 = vmatprep.subr.mxu0 0.0
        %3881 = vmatpush1.msra.mxu0 %v3779
        %3882 = vmatprep.subr.mxu0 0.0
        %3883 = vmatpush1.msra.mxu0 %v3780
        %3884 = vmatprep.subr.mxu0 0.0
        %3885 = vmatpush1.msra.mxu0 %v3781
        %3886 = vmatprep.subr.mxu0 0.0
        %3887 = vmatpush1.msra.mxu0 0.0
        %3888 = vmatprep.subr.mxu0 0.0
        %3889 = vmatpush1.msra.mxu0 0.0
        %3890 = vmatprep.subr.mxu0 0.0
        %3891 = vmatpush1.msra.mxu0 0.0
        %3892 = vmatprep.subr.mxu0 0.0
        %3893 = vmatpush1.msra.mxu0 0.0
        %3894 = vmatprep.subr.mxu0 0.0
        %3895 = vmatpush1.msra.mxu0 0.0
        %3896 = vmatprep.subr.mxu0 0.0
        %3897 = vmatpush1.msra.mxu0 0.0
        %3898 = vmatprep.subr.mxu0 0.0
        %3899 = vmatpush1.msra.mxu0 0.0
        %3900 = vmatprep.subr.mxu0 0.0
        %3901 = vmatpush1.msra.mxu0 0.0
        %3902 = vmatprep.subr.mxu0 0.0
        %3903 = vmatpush1.msra.mxu0 0.0
        %3904 = vmatprep.subr.mxu0 0.0
        %3905 = vmatpush1.msra.mxu0 0.0
        %3906 = vmatprep.subr.mxu0 0.0
        %3907 = vmatpush1.msra.mxu0 0.0
        %3908 = vmatprep.subr.mxu0 0.0
        %3909 = vmatpush1.msra.mxu0 0.0
        %3910 = vmatprep.subr.mxu0 0.0
        %3911 = vmatpush1.msra.mxu0 0.0
        %3912 = vmatprep.subr.mxu0 0.0
        %3913 = vmatpush1.msra.mxu0 0.0
        %3914 = vmatprep.subr.mxu0 0.0
        %3915 = vmatpush1.msra.mxu0 0.0
        %3916 = vmatprep.subr.mxu0 0.0
        %3917 = vmatpush1.msra.mxu0 0.0
        %3918 = vmatprep.subr.mxu0 0.0
        %3919 = vmatpush1.msra.mxu0 0.0
        %3920 = vmatprep.subr.mxu0 0.0
        %3921 = vmatpush1.msra.mxu0 0.0
        %3922 = vmatprep.subr.mxu0 0.0
        %3923 = vmatpush1.msra.mxu0 0.0
        %3924 = vmatprep.subr.mxu0 0.0
        %3925 = vmatpush1.msra.mxu0 0.0
        %3926 = vmatprep.subr.mxu0 0.0
        %3927 = vmatpush1.msra.mxu0 0.0
        %3928 = vmatprep.subr.mxu0 0.0
        %3929 = vmatpush1.msra.mxu0 0.0
        %3930 = vmatprep.subr.mxu0 0.0
        %3931 = vmatpush1.msra.mxu0 0.0
        %3932 = vmatprep.subr.mxu0 0.0
        %3933 = vmatpush1.msra.mxu0 0.0
        %3934 = vmatprep.subr.mxu0 0.0
        %3935 = vmatpush1.msra.mxu0 0.0
        %3936 = vmatprep.subr.mxu0 0.0
        %3937 = vmatpush1.msra.mxu0 0.0
        %3938 = vmatprep.subr.mxu0 0.0
        %3939 = vmatpush1.msra.mxu0 0.0
        %3940 = vmatprep.subr.mxu0 0.0
        %3941 = vmatpush1.msra.mxu0 0.0
        %3942 = vmatprep.mubr.f32.mxu0 0.0
        %3943 = vmatmul.mubr.f32.gmra.mrb[0].mxu0 %v3783
        %v3944 = vpop.f32.mrb[0].mxu0
        %v3945 = vadd.f32 0.0, %v3944
        %v3946 = vpop.f32.mrb[0].mxu0
        %3947 = vmatprep.mubr.f32.mxu0 0.0
        %3948 = vmatmul.mubr.f32.gmra.mrb[0].mxu0 %v3786
        %v3949 = vpop.f32.mrb[0].mxu0
        %v3950 = vadd.f32 0.0, %v3949
        %v3951 = vpop.f32.mrb[0].mxu0
        %3952 = vmatprep.mubr.f32.mxu0 0.0
        %3953 = vmatmul.mubr.f32.gmra.mrb[0].mxu0 %v3789
        %v3954 = vpop.f32.mrb[0].mxu0
        %v3955 = vadd.f32 0.0, %v3954
        %v3956 = vpop.f32.mrb[0].mxu0
        %3957 = vmatprep.mubr.f32.mxu0 0.0
        %3958 = vmatmul.mubr.f32.gmra.mrb[0].mxu0 %v3792
        %v3959 = vpop.f32.mrb[0].mxu0
        %v3960 = vadd.f32 0.0, %v3959
        %v3961 = vpop.f32.mrb[0].mxu0
        %3962 = vmatprep.mubr.f32.mxu0 0.0
        %3963 = vmatmul.mubr.f32.gmra.mrb[0].mxu0 %v3795
        %v3964 = vpop.f32.mrb[0].mxu0
        %v3965 = vadd.f32 0.0, %v3964
        %v3966 = vpop.f32.mrb[0].mxu0
        %3967 = vmatprep.mubr.f32.mxu0 0.0
        %3968 = vmatmul.mubr.f32.gmra.mrb[0].mxu0 %v3798
        %v3969 = vpop.f32.mrb[0].mxu0
        %v3970 = vadd.f32 0.0, %v3969
        %v3971 = vpop.f32.mrb[0].mxu0
        %3972 = vmatprep.mubr.f32.mxu0 0.0
        %3973 = vmatmul.mubr.f32.gmra.mrb[0].mxu0 %v3801
        %v3974 = vpop.f32.mrb[0].mxu0
        %v3975 = vadd.f32 0.0, %v3974
        %v3976 = vpop.f32.mrb[0].mxu0
        %3977 = vmatprep.mubr.f32.mxu0 0.0
        %3978 = vmatmul.mubr.f32.gmra.mrb[0].mxu0 %v3804
        %v3979 = vpop.f32.mrb[0].mxu0
        %v3980 = vadd.f32 0.0, %v3979
        %v3981 = vpop.f32.mrb[0].mxu0
        %3982 = vmatprep.mubr.f32.mxu0 0.0
        %3983 = vmatmul.mubr.f32.gmra.mrb[0].mxu0 %v3807
        %v3984 = vpop.f32.mrb[0].mxu0
        %v3985 = vadd.f32 0.0, %v3984
        %v3986 = vpop.f32.mrb[0].mxu0
        %3987 = vmatprep.mubr.f32.mxu0 0.0
        %3988 = vmatmul.mubr.f32.gmra.mrb[0].mxu0 %v3810
        %v3989 = vpop.f32.mrb[0].mxu0
        %v3990 = vadd.f32 0.0, %v3989
        %v3991 = vpop.f32.mrb[0].mxu0
        %3992 = vmatprep.mubr.f32.mxu0 0.0
        %3993 = vmatmul.mubr.f32.gmra.mrb[0].mxu0 %v3813
        %v3994 = vpop.f32.mrb[0].mxu0
        %v3995 = vadd.f32 0.0, %v3994
        %v3996 = vpop.f32.mrb[0].mxu0
        %3997 = vmatprep.mubr.f32.mxu0 0.0
        %3998 = vmatmul.mubr.f32.gmra.mrb[0].mxu0 %v3816
        %v3999 = vpop.f32.mrb[0].mxu0
        %v4000 = vadd.f32 0.0, %v3999
        %v4001 = vpop.f32.mrb[0].mxu0
        %4002 = vmatprep.mubr.f32.mxu0 0.0
        %4003 = vmatmul.mubr.f32.gmra.mrb[0].mxu0 %v3819
        %v4004 = vpop.f32.mrb[0].mxu0
        %v4005 = vadd.f32 0.0, %v4004
        %v4006 = vpop.f32.mrb[0].mxu0
        %4007 = vmatprep.mubr.f32.mxu0 0.0
        %4008 = vmatmul.mubr.f32.gmra.mrb[0].mxu0 %v3822
        %v4009 = vpop.f32.mrb[0].mxu0
        %v4010 = vadd.f32 0.0, %v4009
        %v4011 = vpop.f32.mrb[0].mxu0
        %4012 = vmatprep.mubr.f32.mxu0 0.0
        %4013 = vmatmul.mubr.f32.gmra.mrb[0].mxu0 %v3825
        %v4014 = vpop.f32.mrb[0].mxu0
        %v4015 = vadd.f32 0.0, %v4014
        %v4016 = vpop.f32.mrb[0].mxu0
        %4017 = vmatprep.mubr.f32.mxu0 0.0
        %4018 = vmatmul.mubr.f32.gmra.mrb[0].mxu0 %v3828
        %v4019 = vpop.f32.mrb[0].mxu0
        %v4020 = vadd.f32 0.0, %v4019
        %v4021 = vpop.f32.mrb[0].mxu0
        %4022 = vmatprep.mubr.f32.mxu0 0.0
        %4023 = vmatmul.mubr.f32.gmra.mrb[0].mxu0 %v3831
        %v4024 = vpop.f32.mrb[0].mxu0
        %v4025 = vadd.f32 0.0, %v4024
        %v4026 = vpop.f32.mrb[0].mxu0
        %4027 = vmatprep.mubr.f32.mxu0 0.0
        %4028 = vmatmul.mubr.f32.gmra.mrb[0].mxu0 %v3834
        %v4029 = vpop.f32.mrb[0].mxu0
        %v4030 = vadd.f32 0.0, %v4029
        %v4031 = vpop.f32.mrb[0].mxu0
        %4032 = vmatprep.mubr.f32.mxu0 0.0
        %4033 = vmatmul.mubr.f32.gmra.mrb[0].mxu0 %v3837
        %v4034 = vpop.f32.mrb[0].mxu0
        %v4035 = vadd.f32 0.0, %v4034
        %v4036 = vpop.f32.mrb[0].mxu0
        %4037 = vmatprep.mubr.f32.mxu0 0.0
        %4038 = vmatmul.mubr.f32.gmra.mrb[0].mxu0 %v3840
        %v4039 = vpop.f32.mrb[0].mxu0
        %v4040 = vadd.f32 0.0, %v4039
        %v4041 = vpop.f32.mrb[0].mxu0
        %4042 = vmatprep.mubr.f32.mxu0 0.0
        %4043 = vmatmul.mubr.f32.gmra.mrb[0].mxu0 %v3843
        %v4044 = vpop.f32.mrb[0].mxu0
        %v4045 = vadd.f32 0.0, %v4044
        %v4046 = vpop.f32.mrb[0].mxu0
        %4047 = vmatprep.mubr.f32.mxu0 0.0
        %4048 = vmatmul.mubr.f32.gmra.mrb[0].mxu0 %v3846
        %v4049 = vpop.f32.mrb[0].mxu0
        %v4050 = vadd.f32 0.0, %v4049
        %v4051 = vpop.f32.mrb[0].mxu0
        %4052 = vmatprep.mubr.f32.mxu0 0.0
        %4053 = vmatmul.mubr.f32.gmra.mrb[0].mxu0 %v3849
        %v4054 = vpop.f32.mrb[0].mxu0
        %v4055 = vadd.f32 0.0, %v4054
        %v4056 = vpop.f32.mrb[0].mxu0
        %4057 = vmatprep.mubr.f32.mxu0 0.0
        %4058 = vmatmul.mubr.f32.gmra.mrb[0].mxu0 %v3852
        %v4059 = vpop.f32.mrb[0].mxu0
        %v4060 = vadd.f32 0.0, %v4059
        %v4061 = vpop.f32.mrb[0].mxu0
        %4062 = vmatprep.mubr.f32.mxu0 0.0
        %4063 = vmatmul.mubr.f32.gmra.mrb[0].mxu0 %v3855
        %v4064 = vpop.f32.mrb[0].mxu0
        %v4065 = vadd.f32 0.0, %v4064
        %v4066 = vpop.f32.mrb[0].mxu0
        %4067 = vmatprep.mubr.f32.mxu0 0.0
        %4068 = vmatmul.mubr.f32.gmra.mrb[0].mxu0 %v3858
        %v4069 = vpop.f32.mrb[0].mxu0
        %v4070 = vadd.f32 0.0, %v4069
        %v4071 = vpop.f32.mrb[0].mxu0
        %4072 = vmatprep.mubr.f32.mxu0 0.0
        %4073 = vmatmul.mubr.f32.gmra.mrb[0].mxu0 %v3861
        %v4074 = vpop.f32.mrb[0].mxu0
        %v4075 = vadd.f32 0.0, %v4074
        %v4076 = vpop.f32.mrb[0].mxu0
        %4077 = vmatprep.mubr.f32.mxu0 0.0
        %4078 = vmatmul.mubr.f32.gmra.mrb[0].mxu0 %v3864
        %v4079 = vpop.f32.mrb[0].mxu0
        %v4080 = vadd.f32 0.0, %v4079
        %v4081 = vpop.f32.mrb[0].mxu0
        %4082 = vmatprep.mubr.f32.mxu0 0.0
        %4083 = vmatmul.mubr.f32.gmra.mrb[0].mxu0 %v3867
        %v4084 = vpop.f32.mrb[0].mxu0
        %v4085 = vadd.f32 0.0, %v4084
        %v4086 = vpop.f32.mrb[0].mxu0
        %4087 = vmatprep.mubr.f32.mxu0 0.0
        %4088 = vmatmul.mubr.f32.gmra.mrb[0].mxu0 %v3870
        %v4089 = vpop.f32.mrb[0].mxu0
        %v4090 = vadd.f32 0.0, %v4089
        %v4091 = vpop.f32.mrb[0].mxu0
        %4092 = vmatprep.mubr.f32.mxu0 0.0
        %4093 = vmatmul.mubr.f32.gmra.mrb[0].mxu0 %v3873
        %v4094 = vpop.f32.mrb[0].mxu0
        %v4095 = vadd.f32 0.0, %v4094
        %v4096 = vpop.f32.mrb[0].mxu0
        %4097 = vmatprep.mubr.f32.mxu0 0.0
        %4098 = vmatmul.mubr.f32.gmra.mrb[0].mxu0 %v3876
        %v4099 = vpop.f32.mrb[0].mxu0
        %v4100 = vadd.f32 0.0, %v4099
        %v4101 = vpop.f32.mrb[0].mxu0
        %4102 = vdwg.mxu0
        %v4103 = vadd.f32 %v3713, %v3945
        %v4104 = vadd.f32 %v3714, %v3950
        %v4105 = vadd.f32 %v3715, %v3955
        %v4106 = vadd.f32 %v3716, %v3960
        %v4107 = vadd.f32 %v3717, %v3965
        %v4108 = vadd.f32 %v3718, %v3970
        %v4109 = vadd.f32 %v3719, %v3975
        %v4110 = vadd.f32 %v3720, %v3980
        %v4111 = vadd.f32 %v3721, %v3985
        %v4112 = vadd.f32 %v3722, %v3990
        %v4113 = vadd.f32 %v3723, %v3995
        %v4114 = vadd.f32 %v3724, %v4000
        %v4115 = vadd.f32 %v3725, %v4005
        %v4116 = vadd.f32 %v3726, %v4010
        %v4117 = vadd.f32 %v3727, %v4015
        %v4118 = vadd.f32 %v3728, %v4020
        %v4119 = vadd.f32 %v3729, %v4025
        %v4120 = vadd.f32 %v3730, %v4030
        %v4121 = vadd.f32 %v3731, %v4035
        %v4122 = vadd.f32 %v3732, %v4040
        %v4123 = vadd.f32 %v3733, %v4045
        %v4124 = vadd.f32 %v3734, %v4050
        %v4125 = vadd.f32 %v3735, %v4055
        %v4126 = vadd.f32 %v3736, %v4060
        %v4127 = vadd.f32 %v3737, %v4065
        %v4128 = vadd.f32 %v3738, %v4070
        %v4129 = vadd.f32 %v3739, %v4075
        %v4130 = vadd.f32 %v3740, %v4080
        %v4131 = vadd.f32 %v3741, %v4085
        %v4132 = vadd.f32 %v3742, %v4090
        %v4133 = vadd.f32 %v3743, %v4095
        %v4134 = vadd.f32 %v3744, %v4100
        %v4135 = vld [vmem:[#allocation2 + $0x20] sm:$0xff]
        %v4136 = vld [vmem:[#allocation2 + $0x28] sm:$0xff]
        %v4137 = vld [vmem:[#allocation2 + $0x30] sm:$0xff]
        %v4138 = vld [vmem:[#allocation2 + $0x38] sm:$0xff]
        %v4139 = vld [vmem:[#allocation2 + $0x40] sm:$0xff]
        %v4140 = vld [vmem:[#allocation2 + $0x48] sm:$0xff]
        %v4141 = vld [vmem:[#allocation2 + $0x50] sm:$0xff]
        %v4142 = vld [vmem:[#allocation2 + $0x58] sm:$0xff]
        %v4143 = vld [vmem:[#allocation2 + $0x60] sm:$0xff]
        %v4144 = vld [vmem:[#allocation2 + $0x68] sm:$0xff]
        %v4145 = vld [vmem:[#allocation2 + $0x70] sm:$0xff]
        %v4146 = vld [vmem:[#allocation2 + $0x78] sm:$0xff]
        %v4147 = vld [vmem:[#allocation2 + $0x80] sm:$0xff]
        %v4148 = vld [vmem:[#allocation2 + $0x88] sm:$0xff]
        %v4149 = vld [vmem:[#allocation2 + $0x90] sm:$0xff]
        %v4150 = vld [vmem:[#allocation2 + $0x98] sm:$0xff]
        %v4151 = vld [vmem:[#allocation2 + $0xa0] sm:$0xff]
        %v4152 = vld [vmem:[#allocation2 + $0xa8] sm:$0xff]
        %v4153 = vld [vmem:[#allocation2 + $0xb0] sm:$0xff]
        %v4154 = vld [vmem:[#allocation2 + $0xb8] sm:$0xff]
        %v4155 = vld [vmem:[#allocation2 + $0xc0] sm:$0xff]
        %v4156 = vld [vmem:[#allocation2 + $0xc8] sm:$0xff]
        %v4157 = vld [vmem:[#allocation2 + $0xd0] sm:$0xff]
        %v4158 = vld [vmem:[#allocation2 + $0xd8] sm:$0xff]
        %v4159 = vld [vmem:[#allocation2 + $0xe0] sm:$0xff]
        %v4160 = vld [vmem:[#allocation2 + $0xe8] sm:$0xff]
        %v4161 = vld [vmem:[#allocation2 + $0xf0] sm:$0xff]
        %v4162 = vld [vmem:[#allocation2 + $0xf8] sm:$0xff]
        %v4163 = vld [vmem:[#allocation2 + $0x100] sm:$0xff]
        %v4164 = vld [vmem:[#allocation2 + $0x108] sm:$0xff]
        %v4165 = vld [vmem:[#allocation2 + $0x110] sm:$0xff]
        %v4166 = vld [vmem:[#allocation2 + $0x118] sm:$0xff]
        %s4167 = scalar_lea.vmem [#allocation8], 224
        %v4168 = vld [vmem:[%s4167] sm:$0xff]
        %v4169 = vld [vmem:[%s4167 + $0x8] sm:$0xff]
        %v4170 = vld [vmem:[%s4167 + $0x10] sm:$0xff]
        %v4171 = vld [vmem:[%s4167 + $0x18] sm:$0xff]
        %v4173 = vsel %vm624, %v4135, 0
        %v4176 = vsel %vm624, %v4136, 0
        %v4179 = vsel %vm624, %v4137, 0
        %v4182 = vsel %vm624, %v4138, 0
        %v4185 = vsel %vm624, %v4139, 0
        %v4188 = vsel %vm624, %v4140, 0
        %v4191 = vsel %vm624, %v4141, 0
        %v4194 = vsel %vm624, %v4142, 0
        %v4197 = vsel %vm624, %v4143, 0
        %v4200 = vsel %vm624, %v4144, 0
        %v4203 = vsel %vm624, %v4145, 0
        %v4206 = vsel %vm624, %v4146, 0
        %v4209 = vsel %vm624, %v4147, 0
        %v4212 = vsel %vm624, %v4148, 0
        %v4215 = vsel %vm624, %v4149, 0
        %v4218 = vsel %vm624, %v4150, 0
        %v4221 = vsel %vm624, %v4151, 0
        %v4224 = vsel %vm624, %v4152, 0
        %v4227 = vsel %vm624, %v4153, 0
        %v4230 = vsel %vm624, %v4154, 0
        %v4233 = vsel %vm624, %v4155, 0
        %v4236 = vsel %vm624, %v4156, 0
        %v4239 = vsel %vm624, %v4157, 0
        %v4242 = vsel %vm624, %v4158, 0
        %v4245 = vsel %vm624, %v4159, 0
        %v4248 = vsel %vm624, %v4160, 0
        %v4251 = vsel %vm624, %v4161, 0
        %v4254 = vsel %vm624, %v4162, 0
        %v4257 = vsel %vm624, %v4163, 0
        %v4260 = vsel %vm624, %v4164, 0
        %v4263 = vsel %vm624, %v4165, 0
        %v4266 = vsel %vm624, %v4166, 0
        %4268 = vmatprep.subr.mxu0 0.0
        %4269 = vmatpush1.msra.mxu0 %v4168
        %4270 = vmatprep.subr.mxu0 0.0
        %4271 = vmatpush1.msra.mxu0 %v4169
        %4272 = vmatprep.subr.mxu0 0.0
        %4273 = vmatpush1.msra.mxu0 %v4170
        %4274 = vmatprep.subr.mxu0 0.0
        %4275 = vmatpush1.msra.mxu0 %v4171
        %4276 = vmatprep.subr.mxu0 0.0
        %4277 = vmatpush1.msra.mxu0 0.0
        %4278 = vmatprep.subr.mxu0 0.0
        %4279 = vmatpush1.msra.mxu0 0.0
        %4280 = vmatprep.subr.mxu0 0.0
        %4281 = vmatpush1.msra.mxu0 0.0
        %4282 = vmatprep.subr.mxu0 0.0
        %4283 = vmatpush1.msra.mxu0 0.0
        %4284 = vmatprep.subr.mxu0 0.0
        %4285 = vmatpush1.msra.mxu0 0.0
        %4286 = vmatprep.subr.mxu0 0.0
        %4287 = vmatpush1.msra.mxu0 0.0
        %4288 = vmatprep.subr.mxu0 0.0
        %4289 = vmatpush1.msra.mxu0 0.0
        %4290 = vmatprep.subr.mxu0 0.0
        %4291 = vmatpush1.msra.mxu0 0.0
        %4292 = vmatprep.subr.mxu0 0.0
        %4293 = vmatpush1.msra.mxu0 0.0
        %4294 = vmatprep.subr.mxu0 0.0
        %4295 = vmatpush1.msra.mxu0 0.0
        %4296 = vmatprep.subr.mxu0 0.0
        %4297 = vmatpush1.msra.mxu0 0.0
        %4298 = vmatprep.subr.mxu0 0.0
        %4299 = vmatpush1.msra.mxu0 0.0
        %4300 = vmatprep.subr.mxu0 0.0
        %4301 = vmatpush1.msra.mxu0 0.0
        %4302 = vmatprep.subr.mxu0 0.0
        %4303 = vmatpush1.msra.mxu0 0.0
        %4304 = vmatprep.subr.mxu0 0.0
        %4305 = vmatpush1.msra.mxu0 0.0
        %4306 = vmatprep.subr.mxu0 0.0
        %4307 = vmatpush1.msra.mxu0 0.0
        %4308 = vmatprep.subr.mxu0 0.0
        %4309 = vmatpush1.msra.mxu0 0.0
        %4310 = vmatprep.subr.mxu0 0.0
        %4311 = vmatpush1.msra.mxu0 0.0
        %4312 = vmatprep.subr.mxu0 0.0
        %4313 = vmatpush1.msra.mxu0 0.0
        %4314 = vmatprep.subr.mxu0 0.0
        %4315 = vmatpush1.msra.mxu0 0.0
        %4316 = vmatprep.subr.mxu0 0.0
        %4317 = vmatpush1.msra.mxu0 0.0
        %4318 = vmatprep.subr.mxu0 0.0
        %4319 = vmatpush1.msra.mxu0 0.0
        %4320 = vmatprep.subr.mxu0 0.0
        %4321 = vmatpush1.msra.mxu0 0.0
        %4322 = vmatprep.subr.mxu0 0.0
        %4323 = vmatpush1.msra.mxu0 0.0
        %4324 = vmatprep.subr.mxu0 0.0
        %4325 = vmatpush1.msra.mxu0 0.0
        %4326 = vmatprep.subr.mxu0 0.0
        %4327 = vmatpush1.msra.mxu0 0.0
        %4328 = vmatprep.subr.mxu0 0.0
        %4329 = vmatpush1.msra.mxu0 0.0
        %4330 = vmatprep.subr.mxu0 0.0
        %4331 = vmatpush1.msra.mxu0 0.0
        %4332 = vmatprep.mubr.f32.mxu0 0.0
        %4333 = vmatmul.mubr.f32.gmra.mrb[0].mxu0 %v4173
        %v4334 = vpop.f32.mrb[0].mxu0
        %v4335 = vadd.f32 0.0, %v4334
        %v4336 = vpop.f32.mrb[0].mxu0
        %4337 = vmatprep.mubr.f32.mxu0 0.0
        %4338 = vmatmul.mubr.f32.gmra.mrb[0].mxu0 %v4176
        %v4339 = vpop.f32.mrb[0].mxu0
        %v4340 = vadd.f32 0.0, %v4339
        %v4341 = vpop.f32.mrb[0].mxu0
        %4342 = vmatprep.mubr.f32.mxu0 0.0
        %4343 = vmatmul.mubr.f32.gmra.mrb[0].mxu0 %v4179
        %v4344 = vpop.f32.mrb[0].mxu0
        %v4345 = vadd.f32 0.0, %v4344
        %v4346 = vpop.f32.mrb[0].mxu0
        %4347 = vmatprep.mubr.f32.mxu0 0.0
        %4348 = vmatmul.mubr.f32.gmra.mrb[0].mxu0 %v4182
        %v4349 = vpop.f32.mrb[0].mxu0
        %v4350 = vadd.f32 0.0, %v4349
        %v4351 = vpop.f32.mrb[0].mxu0
        %4352 = vmatprep.mubr.f32.mxu0 0.0
        %4353 = vmatmul.mubr.f32.gmra.mrb[0].mxu0 %v4185
        %v4354 = vpop.f32.mrb[0].mxu0
        %v4355 = vadd.f32 0.0, %v4354
        %v4356 = vpop.f32.mrb[0].mxu0
        %4357 = vmatprep.mubr.f32.mxu0 0.0
        %4358 = vmatmul.mubr.f32.gmra.mrb[0].mxu0 %v4188
        %v4359 = vpop.f32.mrb[0].mxu0
        %v4360 = vadd.f32 0.0, %v4359
        %v4361 = vpop.f32.mrb[0].mxu0
        %4362 = vmatprep.mubr.f32.mxu0 0.0
        %4363 = vmatmul.mubr.f32.gmra.mrb[0].mxu0 %v4191
        %v4364 = vpop.f32.mrb[0].mxu0
        %v4365 = vadd.f32 0.0, %v4364
        %v4366 = vpop.f32.mrb[0].mxu0
        %4367 = vmatprep.mubr.f32.mxu0 0.0
        %4368 = vmatmul.mubr.f32.gmra.mrb[0].mxu0 %v4194
        %v4369 = vpop.f32.mrb[0].mxu0
        %v4370 = vadd.f32 0.0, %v4369
        %v4371 = vpop.f32.mrb[0].mxu0
        %4372 = vmatprep.mubr.f32.mxu0 0.0
        %4373 = vmatmul.mubr.f32.gmra.mrb[0].mxu0 %v4197
        %v4374 = vpop.f32.mrb[0].mxu0
        %v4375 = vadd.f32 0.0, %v4374
        %v4376 = vpop.f32.mrb[0].mxu0
        %4377 = vmatprep.mubr.f32.mxu0 0.0
        %4378 = vmatmul.mubr.f32.gmra.mrb[0].mxu0 %v4200
        %v4379 = vpop.f32.mrb[0].mxu0
        %v4380 = vadd.f32 0.0, %v4379
        %v4381 = vpop.f32.mrb[0].mxu0
        %4382 = vmatprep.mubr.f32.mxu0 0.0
        %4383 = vmatmul.mubr.f32.gmra.mrb[0].mxu0 %v4203
        %v4384 = vpop.f32.mrb[0].mxu0
        %v4385 = vadd.f32 0.0, %v4384
        %v4386 = vpop.f32.mrb[0].mxu0
        %4387 = vmatprep.mubr.f32.mxu0 0.0
        %4388 = vmatmul.mubr.f32.gmra.mrb[0].mxu0 %v4206
        %v4389 = vpop.f32.mrb[0].mxu0
        %v4390 = vadd.f32 0.0, %v4389
        %v4391 = vpop.f32.mrb[0].mxu0
        %4392 = vmatprep.mubr.f32.mxu0 0.0
        %4393 = vmatmul.mubr.f32.gmra.mrb[0].mxu0 %v4209
        %v4394 = vpop.f32.mrb[0].mxu0
        %v4395 = vadd.f32 0.0, %v4394
        %v4396 = vpop.f32.mrb[0].mxu0
        %4397 = vmatprep.mubr.f32.mxu0 0.0
        %4398 = vmatmul.mubr.f32.gmra.mrb[0].mxu0 %v4212
        %v4399 = vpop.f32.mrb[0].mxu0
        %v4400 = vadd.f32 0.0, %v4399
        %v4401 = vpop.f32.mrb[0].mxu0
        %4402 = vmatprep.mubr.f32.mxu0 0.0
        %4403 = vmatmul.mubr.f32.gmra.mrb[0].mxu0 %v4215
        %v4404 = vpop.f32.mrb[0].mxu0
        %v4405 = vadd.f32 0.0, %v4404
        %v4406 = vpop.f32.mrb[0].mxu0
        %4407 = vmatprep.mubr.f32.mxu0 0.0
        %4408 = vmatmul.mubr.f32.gmra.mrb[0].mxu0 %v4218
        %v4409 = vpop.f32.mrb[0].mxu0
        %v4410 = vadd.f32 0.0, %v4409
        %v4411 = vpop.f32.mrb[0].mxu0
        %4412 = vmatprep.mubr.f32.mxu0 0.0
        %4413 = vmatmul.mubr.f32.gmra.mrb[0].mxu0 %v4221
        %v4414 = vpop.f32.mrb[0].mxu0
        %v4415 = vadd.f32 0.0, %v4414
        %v4416 = vpop.f32.mrb[0].mxu0
        %4417 = vmatprep.mubr.f32.mxu0 0.0
        %4418 = vmatmul.mubr.f32.gmra.mrb[0].mxu0 %v4224
        %v4419 = vpop.f32.mrb[0].mxu0
        %v4420 = vadd.f32 0.0, %v4419
        %v4421 = vpop.f32.mrb[0].mxu0
        %4422 = vmatprep.mubr.f32.mxu0 0.0
        %4423 = vmatmul.mubr.f32.gmra.mrb[0].mxu0 %v4227
        %v4424 = vpop.f32.mrb[0].mxu0
        %v4425 = vadd.f32 0.0, %v4424
        %v4426 = vpop.f32.mrb[0].mxu0
        %4427 = vmatprep.mubr.f32.mxu0 0.0
        %4428 = vmatmul.mubr.f32.gmra.mrb[0].mxu0 %v4230
        %v4429 = vpop.f32.mrb[0].mxu0
        %v4430 = vadd.f32 0.0, %v4429
        %v4431 = vpop.f32.mrb[0].mxu0
        %4432 = vmatprep.mubr.f32.mxu0 0.0
        %4433 = vmatmul.mubr.f32.gmra.mrb[0].mxu0 %v4233
        %v4434 = vpop.f32.mrb[0].mxu0
        %v4435 = vadd.f32 0.0, %v4434
        %v4436 = vpop.f32.mrb[0].mxu0
        %4437 = vmatprep.mubr.f32.mxu0 0.0
        %4438 = vmatmul.mubr.f32.gmra.mrb[0].mxu0 %v4236
        %v4439 = vpop.f32.mrb[0].mxu0
        %v4440 = vadd.f32 0.0, %v4439
        %v4441 = vpop.f32.mrb[0].mxu0
        %4442 = vmatprep.mubr.f32.mxu0 0.0
        %4443 = vmatmul.mubr.f32.gmra.mrb[0].mxu0 %v4239
        %v4444 = vpop.f32.mrb[0].mxu0
        %v4445 = vadd.f32 0.0, %v4444
        %v4446 = vpop.f32.mrb[0].mxu0
        %4447 = vmatprep.mubr.f32.mxu0 0.0
        %4448 = vmatmul.mubr.f32.gmra.mrb[0].mxu0 %v4242
        %v4449 = vpop.f32.mrb[0].mxu0
        %v4450 = vadd.f32 0.0, %v4449
        %v4451 = vpop.f32.mrb[0].mxu0
        %4452 = vmatprep.mubr.f32.mxu0 0.0
        %4453 = vmatmul.mubr.f32.gmra.mrb[0].mxu0 %v4245
        %v4454 = vpop.f32.mrb[0].mxu0
        %v4455 = vadd.f32 0.0, %v4454
        %v4456 = vpop.f32.mrb[0].mxu0
        %4457 = vmatprep.mubr.f32.mxu0 0.0
        %4458 = vmatmul.mubr.f32.gmra.mrb[0].mxu0 %v4248
        %v4459 = vpop.f32.mrb[0].mxu0
        %v4460 = vadd.f32 0.0, %v4459
        %v4461 = vpop.f32.mrb[0].mxu0
        %4462 = vmatprep.mubr.f32.mxu0 0.0
        %4463 = vmatmul.mubr.f32.gmra.mrb[0].mxu0 %v4251
        %v4464 = vpop.f32.mrb[0].mxu0
        %v4465 = vadd.f32 0.0, %v4464
        %v4466 = vpop.f32.mrb[0].mxu0
        %4467 = vmatprep.mubr.f32.mxu0 0.0
        %4468 = vmatmul.mubr.f32.gmra.mrb[0].mxu0 %v4254
        %v4469 = vpop.f32.mrb[0].mxu0
        %v4470 = vadd.f32 0.0, %v4469
        %v4471 = vpop.f32.mrb[0].mxu0
        %4472 = vmatprep.mubr.f32.mxu0 0.0
        %4473 = vmatmul.mubr.f32.gmra.mrb[0].mxu0 %v4257
        %v4474 = vpop.f32.mrb[0].mxu0
        %v4475 = vadd.f32 0.0, %v4474
        %v4476 = vpop.f32.mrb[0].mxu0
        %4477 = vmatprep.mubr.f32.mxu0 0.0
        %4478 = vmatmul.mubr.f32.gmra.mrb[0].mxu0 %v4260
        %v4479 = vpop.f32.mrb[0].mxu0
        %v4480 = vadd.f32 0.0, %v4479
        %v4481 = vpop.f32.mrb[0].mxu0
        %4482 = vmatprep.mubr.f32.mxu0 0.0
        %4483 = vmatmul.mubr.f32.gmra.mrb[0].mxu0 %v4263
        %v4484 = vpop.f32.mrb[0].mxu0
        %v4485 = vadd.f32 0.0, %v4484
        %v4486 = vpop.f32.mrb[0].mxu0
        %4487 = vmatprep.mubr.f32.mxu0 0.0
        %4488 = vmatmul.mubr.f32.gmra.mrb[0].mxu0 %v4266
        %v4489 = vpop.f32.mrb[0].mxu0
        %v4490 = vadd.f32 0.0, %v4489
        %v4491 = vpop.f32.mrb[0].mxu0
        %4492 = vdwg.mxu0
        %v4493 = vadd.f32 %v4103, %v4335
        %v4494 = vadd.f32 %v4104, %v4340
        %v4495 = vadd.f32 %v4105, %v4345
        %v4496 = vadd.f32 %v4106, %v4350
        %v4497 = vadd.f32 %v4107, %v4355
        %v4498 = vadd.f32 %v4108, %v4360
        %v4499 = vadd.f32 %v4109, %v4365
        %v4500 = vadd.f32 %v4110, %v4370
        %v4501 = vadd.f32 %v4111, %v4375
        %v4502 = vadd.f32 %v4112, %v4380
        %v4503 = vadd.f32 %v4113, %v4385
        %v4504 = vadd.f32 %v4114, %v4390
        %v4505 = vadd.f32 %v4115, %v4395
        %v4506 = vadd.f32 %v4116, %v4400
        %v4507 = vadd.f32 %v4117, %v4405
        %v4508 = vadd.f32 %v4118, %v4410
        %v4509 = vadd.f32 %v4119, %v4415
        %v4510 = vadd.f32 %v4120, %v4420
        %v4511 = vadd.f32 %v4121, %v4425
        %v4512 = vadd.f32 %v4122, %v4430
        %v4513 = vadd.f32 %v4123, %v4435
        %v4514 = vadd.f32 %v4124, %v4440
        %v4515 = vadd.f32 %v4125, %v4445
        %v4516 = vadd.f32 %v4126, %v4450
        %v4517 = vadd.f32 %v4127, %v4455
        %v4518 = vadd.f32 %v4128, %v4460
        %v4519 = vadd.f32 %v4129, %v4465
        %v4520 = vadd.f32 %v4130, %v4470
        %v4521 = vadd.f32 %v4131, %v4475
        %v4522 = vadd.f32 %v4132, %v4480
        %v4523 = vadd.f32 %v4133, %v4485
        %v4524 = vadd.f32 %v4134, %v4490
        %v4525 = vld [vmem:[#allocation4 + $0x20] sm:$0xff]
        %v4526 = vld [vmem:[#allocation4 + $0x28] sm:$0xff]
        %v4527 = vld [vmem:[#allocation4 + $0x30] sm:$0xff]
        %v4528 = vld [vmem:[#allocation4 + $0x38] sm:$0xff]
        %v4529 = vld [vmem:[#allocation4 + $0x40] sm:$0xff]
        %v4530 = vld [vmem:[#allocation4 + $0x48] sm:$0xff]
        %v4531 = vld [vmem:[#allocation4 + $0x50] sm:$0xff]
        %v4532 = vld [vmem:[#allocation4 + $0x58] sm:$0xff]
        %v4533 = vld [vmem:[#allocation4 + $0x60] sm:$0xff]
        %v4534 = vld [vmem:[#allocation4 + $0x68] sm:$0xff]
        %v4535 = vld [vmem:[#allocation4 + $0x70] sm:$0xff]
        %v4536 = vld [vmem:[#allocation4 + $0x78] sm:$0xff]
        %v4537 = vld [vmem:[#allocation4 + $0x80] sm:$0xff]
        %v4538 = vld [vmem:[#allocation4 + $0x88] sm:$0xff]
        %v4539 = vld [vmem:[#allocation4 + $0x90] sm:$0xff]
        %v4540 = vld [vmem:[#allocation4 + $0x98] sm:$0xff]
        %v4541 = vld [vmem:[#allocation4 + $0xa0] sm:$0xff]
        %v4542 = vld [vmem:[#allocation4 + $0xa8] sm:$0xff]
        %v4543 = vld [vmem:[#allocation4 + $0xb0] sm:$0xff]
        %v4544 = vld [vmem:[#allocation4 + $0xb8] sm:$0xff]
        %v4545 = vld [vmem:[#allocation4 + $0xc0] sm:$0xff]
        %v4546 = vld [vmem:[#allocation4 + $0xc8] sm:$0xff]
        %v4547 = vld [vmem:[#allocation4 + $0xd0] sm:$0xff]
        %v4548 = vld [vmem:[#allocation4 + $0xd8] sm:$0xff]
        %v4549 = vld [vmem:[#allocation4 + $0xe0] sm:$0xff]
        %v4550 = vld [vmem:[#allocation4 + $0xe8] sm:$0xff]
        %v4551 = vld [vmem:[#allocation4 + $0xf0] sm:$0xff]
        %v4552 = vld [vmem:[#allocation4 + $0xf8] sm:$0xff]
        %v4553 = vld [vmem:[#allocation4 + $0x100] sm:$0xff]
        %v4554 = vld [vmem:[#allocation4 + $0x108] sm:$0xff]
        %v4555 = vld [vmem:[#allocation4 + $0x110] sm:$0xff]
        %v4556 = vld [vmem:[#allocation4 + $0x118] sm:$0xff]
        %s4557 = scalar_lea.vmem [#allocation8], 256
        %v4558 = vld [vmem:[%s4557] sm:$0xff]
        %v4559 = vld [vmem:[%s4557 + $0x8] sm:$0xff]
        %v4560 = vld [vmem:[%s4557 + $0x10] sm:$0xff]
        %v4561 = vld [vmem:[%s4557 + $0x18] sm:$0xff]
        %v4563 = vsel %vm624, %v4525, 0
        %v4566 = vsel %vm624, %v4526, 0
        %v4569 = vsel %vm624, %v4527, 0
        %v4572 = vsel %vm624, %v4528, 0
        %v4575 = vsel %vm624, %v4529, 0
        %v4578 = vsel %vm624, %v4530, 0
        %v4581 = vsel %vm624, %v4531, 0
        %v4584 = vsel %vm624, %v4532, 0
        %v4587 = vsel %vm624, %v4533, 0
        %v4590 = vsel %vm624, %v4534, 0
        %v4593 = vsel %vm624, %v4535, 0
        %v4596 = vsel %vm624, %v4536, 0
        %v4599 = vsel %vm624, %v4537, 0
        %v4602 = vsel %vm624, %v4538, 0
        %v4605 = vsel %vm624, %v4539, 0
        %v4608 = vsel %vm624, %v4540, 0
        %v4611 = vsel %vm624, %v4541, 0
        %v4614 = vsel %vm624, %v4542, 0
        %v4617 = vsel %vm624, %v4543, 0
        %v4620 = vsel %vm624, %v4544, 0
        %v4623 = vsel %vm624, %v4545, 0
        %v4626 = vsel %vm624, %v4546, 0
        %v4629 = vsel %vm624, %v4547, 0
        %v4632 = vsel %vm624, %v4548, 0
        %v4635 = vsel %vm624, %v4549, 0
        %v4638 = vsel %vm624, %v4550, 0
        %v4641 = vsel %vm624, %v4551, 0
        %v4644 = vsel %vm624, %v4552, 0
        %v4647 = vsel %vm624, %v4553, 0
        %v4650 = vsel %vm624, %v4554, 0
        %v4653 = vsel %vm624, %v4555, 0
        %v4656 = vsel %vm624, %v4556, 0
        %4658 = vmatprep.subr.mxu0 0.0
        %4659 = vmatpush1.msra.mxu0 %v4558
        %4660 = vmatprep.subr.mxu0 0.0
        %4661 = vmatpush1.msra.mxu0 %v4559
        %4662 = vmatprep.subr.mxu0 0.0
        %4663 = vmatpush1.msra.mxu0 %v4560
        %4664 = vmatprep.subr.mxu0 0.0
        %4665 = vmatpush1.msra.mxu0 %v4561
        %4666 = vmatprep.subr.mxu0 0.0
        %4667 = vmatpush1.msra.mxu0 0.0
        %4668 = vmatprep.subr.mxu0 0.0
        %4669 = vmatpush1.msra.mxu0 0.0
        %4670 = vmatprep.subr.mxu0 0.0
        %4671 = vmatpush1.msra.mxu0 0.0
        %4672 = vmatprep.subr.mxu0 0.0
        %4673 = vmatpush1.msra.mxu0 0.0
        %4674 = vmatprep.subr.mxu0 0.0
        %4675 = vmatpush1.msra.mxu0 0.0
        %4676 = vmatprep.subr.mxu0 0.0
        %4677 = vmatpush1.msra.mxu0 0.0
        %4678 = vmatprep.subr.mxu0 0.0
        %4679 = vmatpush1.msra.mxu0 0.0
        %4680 = vmatprep.subr.mxu0 0.0
        %4681 = vmatpush1.msra.mxu0 0.0
        %4682 = vmatprep.subr.mxu0 0.0
        %4683 = vmatpush1.msra.mxu0 0.0
        %4684 = vmatprep.subr.mxu0 0.0
        %4685 = vmatpush1.msra.mxu0 0.0
        %4686 = vmatprep.subr.mxu0 0.0
        %4687 = vmatpush1.msra.mxu0 0.0
        %4688 = vmatprep.subr.mxu0 0.0
        %4689 = vmatpush1.msra.mxu0 0.0
        %4690 = vmatprep.subr.mxu0 0.0
        %4691 = vmatpush1.msra.mxu0 0.0
        %4692 = vmatprep.subr.mxu0 0.0
        %4693 = vmatpush1.msra.mxu0 0.0
        %4694 = vmatprep.subr.mxu0 0.0
        %4695 = vmatpush1.msra.mxu0 0.0
        %4696 = vmatprep.subr.mxu0 0.0
        %4697 = vmatpush1.msra.mxu0 0.0
        %4698 = vmatprep.subr.mxu0 0.0
        %4699 = vmatpush1.msra.mxu0 0.0
        %4700 = vmatprep.subr.mxu0 0.0
        %4701 = vmatpush1.msra.mxu0 0.0
        %4702 = vmatprep.subr.mxu0 0.0
        %4703 = vmatpush1.msra.mxu0 0.0
        %4704 = vmatprep.subr.mxu0 0.0
        %4705 = vmatpush1.msra.mxu0 0.0
        %4706 = vmatprep.subr.mxu0 0.0
        %4707 = vmatpush1.msra.mxu0 0.0
        %4708 = vmatprep.subr.mxu0 0.0
        %4709 = vmatpush1.msra.mxu0 0.0
        %4710 = vmatprep.subr.mxu0 0.0
        %4711 = vmatpush1.msra.mxu0 0.0
        %4712 = vmatprep.subr.mxu0 0.0
        %4713 = vmatpush1.msra.mxu0 0.0
        %4714 = vmatprep.subr.mxu0 0.0
        %4715 = vmatpush1.msra.mxu0 0.0
        %4716 = vmatprep.subr.mxu0 0.0
        %4717 = vmatpush1.msra.mxu0 0.0
        %4718 = vmatprep.subr.mxu0 0.0
        %4719 = vmatpush1.msra.mxu0 0.0
        %4720 = vmatprep.subr.mxu0 0.0
        %4721 = vmatpush1.msra.mxu0 0.0
        %4722 = vmatprep.mubr.f32.mxu0 0.0
        %4723 = vmatmul.mubr.f32.gmra.mrb[0].mxu0 %v4563
        %v4724 = vpop.f32.mrb[0].mxu0
        %v4725 = vadd.f32 0.0, %v4724
        %v4726 = vpop.f32.mrb[0].mxu0
        %4727 = vmatprep.mubr.f32.mxu0 0.0
        %4728 = vmatmul.mubr.f32.gmra.mrb[0].mxu0 %v4566
        %v4729 = vpop.f32.mrb[0].mxu0
        %v4730 = vadd.f32 0.0, %v4729
        %v4731 = vpop.f32.mrb[0].mxu0
        %4732 = vmatprep.mubr.f32.mxu0 0.0
        %4733 = vmatmul.mubr.f32.gmra.mrb[0].mxu0 %v4569
        %v4734 = vpop.f32.mrb[0].mxu0
        %v4735 = vadd.f32 0.0, %v4734
        %v4736 = vpop.f32.mrb[0].mxu0
        %4737 = vmatprep.mubr.f32.mxu0 0.0
        %4738 = vmatmul.mubr.f32.gmra.mrb[0].mxu0 %v4572
        %v4739 = vpop.f32.mrb[0].mxu0
        %v4740 = vadd.f32 0.0, %v4739
        %v4741 = vpop.f32.mrb[0].mxu0
        %4742 = vmatprep.mubr.f32.mxu0 0.0
        %4743 = vmatmul.mubr.f32.gmra.mrb[0].mxu0 %v4575
        %v4744 = vpop.f32.mrb[0].mxu0
        %v4745 = vadd.f32 0.0, %v4744
        %v4746 = vpop.f32.mrb[0].mxu0
        %4747 = vmatprep.mubr.f32.mxu0 0.0
        %4748 = vmatmul.mubr.f32.gmra.mrb[0].mxu0 %v4578
        %v4749 = vpop.f32.mrb[0].mxu0
        %v4750 = vadd.f32 0.0, %v4749
        %v4751 = vpop.f32.mrb[0].mxu0
        %4752 = vmatprep.mubr.f32.mxu0 0.0
        %4753 = vmatmul.mubr.f32.gmra.mrb[0].mxu0 %v4581
        %v4754 = vpop.f32.mrb[0].mxu0
        %v4755 = vadd.f32 0.0, %v4754
        %v4756 = vpop.f32.mrb[0].mxu0
        %4757 = vmatprep.mubr.f32.mxu0 0.0
        %4758 = vmatmul.mubr.f32.gmra.mrb[0].mxu0 %v4584
        %v4759 = vpop.f32.mrb[0].mxu0
        %v4760 = vadd.f32 0.0, %v4759
        %v4761 = vpop.f32.mrb[0].mxu0
        %4762 = vmatprep.mubr.f32.mxu0 0.0
        %4763 = vmatmul.mubr.f32.gmra.mrb[0].mxu0 %v4587
        %v4764 = vpop.f32.mrb[0].mxu0
        %v4765 = vadd.f32 0.0, %v4764
        %v4766 = vpop.f32.mrb[0].mxu0
        %4767 = vmatprep.mubr.f32.mxu0 0.0
        %4768 = vmatmul.mubr.f32.gmra.mrb[0].mxu0 %v4590
        %v4769 = vpop.f32.mrb[0].mxu0
        %v4770 = vadd.f32 0.0, %v4769
        %v4771 = vpop.f32.mrb[0].mxu0
        %4772 = vmatprep.mubr.f32.mxu0 0.0
        %4773 = vmatmul.mubr.f32.gmra.mrb[0].mxu0 %v4593
        %v4774 = vpop.f32.mrb[0].mxu0
        %v4775 = vadd.f32 0.0, %v4774
        %v4776 = vpop.f32.mrb[0].mxu0
        %4777 = vmatprep.mubr.f32.mxu0 0.0
        %4778 = vmatmul.mubr.f32.gmra.mrb[0].mxu0 %v4596
        %v4779 = vpop.f32.mrb[0].mxu0
        %v4780 = vadd.f32 0.0, %v4779
        %v4781 = vpop.f32.mrb[0].mxu0
        %4782 = vmatprep.mubr.f32.mxu0 0.0
        %4783 = vmatmul.mubr.f32.gmra.mrb[0].mxu0 %v4599
        %v4784 = vpop.f32.mrb[0].mxu0
        %v4785 = vadd.f32 0.0, %v4784
        %v4786 = vpop.f32.mrb[0].mxu0
        %4787 = vmatprep.mubr.f32.mxu0 0.0
        %4788 = vmatmul.mubr.f32.gmra.mrb[0].mxu0 %v4602
        %v4789 = vpop.f32.mrb[0].mxu0
        %v4790 = vadd.f32 0.0, %v4789
        %v4791 = vpop.f32.mrb[0].mxu0
        %4792 = vmatprep.mubr.f32.mxu0 0.0
        %4793 = vmatmul.mubr.f32.gmra.mrb[0].mxu0 %v4605
        %v4794 = vpop.f32.mrb[0].mxu0
        %v4795 = vadd.f32 0.0, %v4794
        %v4796 = vpop.f32.mrb[0].mxu0
        %4797 = vmatprep.mubr.f32.mxu0 0.0
        %4798 = vmatmul.mubr.f32.gmra.mrb[0].mxu0 %v4608
        %v4799 = vpop.f32.mrb[0].mxu0
        %v4800 = vadd.f32 0.0, %v4799
        %v4801 = vpop.f32.mrb[0].mxu0
        %4802 = vmatprep.mubr.f32.mxu0 0.0
        %4803 = vmatmul.mubr.f32.gmra.mrb[0].mxu0 %v4611
        %v4804 = vpop.f32.mrb[0].mxu0
        %v4805 = vadd.f32 0.0, %v4804
        %v4806 = vpop.f32.mrb[0].mxu0
        %4807 = vmatprep.mubr.f32.mxu0 0.0
        %4808 = vmatmul.mubr.f32.gmra.mrb[0].mxu0 %v4614
        %v4809 = vpop.f32.mrb[0].mxu0
        %v4810 = vadd.f32 0.0, %v4809
        %v4811 = vpop.f32.mrb[0].mxu0
        %4812 = vmatprep.mubr.f32.mxu0 0.0
        %4813 = vmatmul.mubr.f32.gmra.mrb[0].mxu0 %v4617
        %v4814 = vpop.f32.mrb[0].mxu0
        %v4815 = vadd.f32 0.0, %v4814
        %v4816 = vpop.f32.mrb[0].mxu0
        %4817 = vmatprep.mubr.f32.mxu0 0.0
        %4818 = vmatmul.mubr.f32.gmra.mrb[0].mxu0 %v4620
        %v4819 = vpop.f32.mrb[0].mxu0
        %v4820 = vadd.f32 0.0, %v4819
        %v4821 = vpop.f32.mrb[0].mxu0
        %4822 = vmatprep.mubr.f32.mxu0 0.0
        %4823 = vmatmul.mubr.f32.gmra.mrb[0].mxu0 %v4623
        %v4824 = vpop.f32.mrb[0].mxu0
        %v4825 = vadd.f32 0.0, %v4824
        %v4826 = vpop.f32.mrb[0].mxu0
        %4827 = vmatprep.mubr.f32.mxu0 0.0
        %4828 = vmatmul.mubr.f32.gmra.mrb[0].mxu0 %v4626
        %v4829 = vpop.f32.mrb[0].mxu0
        %v4830 = vadd.f32 0.0, %v4829
        %v4831 = vpop.f32.mrb[0].mxu0
        %4832 = vmatprep.mubr.f32.mxu0 0.0
        %4833 = vmatmul.mubr.f32.gmra.mrb[0].mxu0 %v4629
        %v4834 = vpop.f32.mrb[0].mxu0
        %v4835 = vadd.f32 0.0, %v4834
        %v4836 = vpop.f32.mrb[0].mxu0
        %4837 = vmatprep.mubr.f32.mxu0 0.0
        %4838 = vmatmul.mubr.f32.gmra.mrb[0].mxu0 %v4632
        %v4839 = vpop.f32.mrb[0].mxu0
        %v4840 = vadd.f32 0.0, %v4839
        %v4841 = vpop.f32.mrb[0].mxu0
        %4842 = vmatprep.mubr.f32.mxu0 0.0
        %4843 = vmatmul.mubr.f32.gmra.mrb[0].mxu0 %v4635
        %v4844 = vpop.f32.mrb[0].mxu0
        %v4845 = vadd.f32 0.0, %v4844
        %v4846 = vpop.f32.mrb[0].mxu0
        %4847 = vmatprep.mubr.f32.mxu0 0.0
        %4848 = vmatmul.mubr.f32.gmra.mrb[0].mxu0 %v4638
        %v4849 = vpop.f32.mrb[0].mxu0
        %v4850 = vadd.f32 0.0, %v4849
        %v4851 = vpop.f32.mrb[0].mxu0
        %4852 = vmatprep.mubr.f32.mxu0 0.0
        %4853 = vmatmul.mubr.f32.gmra.mrb[0].mxu0 %v4641
        %v4854 = vpop.f32.mrb[0].mxu0
        %v4855 = vadd.f32 0.0, %v4854
        %v4856 = vpop.f32.mrb[0].mxu0
        %4857 = vmatprep.mubr.f32.mxu0 0.0
        %4858 = vmatmul.mubr.f32.gmra.mrb[0].mxu0 %v4644
        %v4859 = vpop.f32.mrb[0].mxu0
        %v4860 = vadd.f32 0.0, %v4859
        %v4861 = vpop.f32.mrb[0].mxu0
        %4862 = vmatprep.mubr.f32.mxu0 0.0
        %4863 = vmatmul.mubr.f32.gmra.mrb[0].mxu0 %v4647
        %v4864 = vpop.f32.mrb[0].mxu0
        %v4865 = vadd.f32 0.0, %v4864
        %v4866 = vpop.f32.mrb[0].mxu0
        %4867 = vmatprep.mubr.f32.mxu0 0.0
        %4868 = vmatmul.mubr.f32.gmra.mrb[0].mxu0 %v4650
        %v4869 = vpop.f32.mrb[0].mxu0
        %v4870 = vadd.f32 0.0, %v4869
        %v4871 = vpop.f32.mrb[0].mxu0
        %4872 = vmatprep.mubr.f32.mxu0 0.0
        %4873 = vmatmul.mubr.f32.gmra.mrb[0].mxu0 %v4653
        %v4874 = vpop.f32.mrb[0].mxu0
        %v4875 = vadd.f32 0.0, %v4874
        %v4876 = vpop.f32.mrb[0].mxu0
        %4877 = vmatprep.mubr.f32.mxu0 0.0
        %4878 = vmatmul.mubr.f32.gmra.mrb[0].mxu0 %v4656
        %v4879 = vpop.f32.mrb[0].mxu0
        %v4880 = vadd.f32 0.0, %v4879
        %v4881 = vpop.f32.mrb[0].mxu0
        %4882 = vdwg.mxu0
        %v4883 = vadd.f32 %v4493, %v4725
        %v4884 = vadd.f32 %v4494, %v4730
        %v4885 = vadd.f32 %v4495, %v4735
        %v4886 = vadd.f32 %v4496, %v4740
        %v4887 = vadd.f32 %v4497, %v4745
        %v4888 = vadd.f32 %v4498, %v4750
        %v4889 = vadd.f32 %v4499, %v4755
        %v4890 = vadd.f32 %v4500, %v4760
        %v4891 = vadd.f32 %v4501, %v4765
        %v4892 = vadd.f32 %v4502, %v4770
        %v4893 = vadd.f32 %v4503, %v4775
        %v4894 = vadd.f32 %v4504, %v4780
        %v4895 = vadd.f32 %v4505, %v4785
        %v4896 = vadd.f32 %v4506, %v4790
        %v4897 = vadd.f32 %v4507, %v4795
        %v4898 = vadd.f32 %v4508, %v4800
        %v4899 = vadd.f32 %v4509, %v4805
        %v4900 = vadd.f32 %v4510, %v4810
        %v4901 = vadd.f32 %v4511, %v4815
        %v4902 = vadd.f32 %v4512, %v4820
        %v4903 = vadd.f32 %v4513, %v4825
        %v4904 = vadd.f32 %v4514, %v4830
        %v4905 = vadd.f32 %v4515, %v4835
        %v4906 = vadd.f32 %v4516, %v4840
        %v4907 = vadd.f32 %v4517, %v4845
        %v4908 = vadd.f32 %v4518, %v4850
        %v4909 = vadd.f32 %v4519, %v4855
        %v4910 = vadd.f32 %v4520, %v4860
        %v4911 = vadd.f32 %v4521, %v4865
        %v4912 = vadd.f32 %v4522, %v4870
        %v4913 = vadd.f32 %v4523, %v4875
        %v4914 = vadd.f32 %v4524, %v4880
        %v4915 = vld [vmem:[%s4] sm:$0x1]
        %v4917 = vlaneseq
        %v4918 = vshrl.u32 %v4917, 7
        %v4919 = vsub.s32 0, %v4918
        %v4920 = vrot.slane %v4915, %v4919
        %v4922 = vadd.f32 %v4883, %v4920
        %v4923 = vadd.f32 %v4884, %v4920
        %v4924 = vadd.f32 %v4885, %v4920
        %v4925 = vadd.f32 %v4886, %v4920
        %v4926 = vadd.f32 %v4887, %v4920
        %v4927 = vadd.f32 %v4888, %v4920
        %v4928 = vadd.f32 %v4889, %v4920
        %v4929 = vadd.f32 %v4890, %v4920
        %v4930 = vadd.f32 %v4891, %v4920
        %v4931 = vadd.f32 %v4892, %v4920
        %v4932 = vadd.f32 %v4893, %v4920
        %v4933 = vadd.f32 %v4894, %v4920
        %v4934 = vadd.f32 %v4895, %v4920
        %v4935 = vadd.f32 %v4896, %v4920
        %v4936 = vadd.f32 %v4897, %v4920
        %v4937 = vadd.f32 %v4898, %v4920
        %v4938 = vadd.f32 %v4899, %v4920
        %v4939 = vadd.f32 %v4900, %v4920
        %v4940 = vadd.f32 %v4901, %v4920
        %v4941 = vadd.f32 %v4902, %v4920
        %v4942 = vadd.f32 %v4903, %v4920
        %v4943 = vadd.f32 %v4904, %v4920
        %v4944 = vadd.f32 %v4905, %v4920
        %v4945 = vadd.f32 %v4906, %v4920
        %v4946 = vadd.f32 %v4907, %v4920
        %v4947 = vadd.f32 %v4908, %v4920
        %v4948 = vadd.f32 %v4909, %v4920
        %v4949 = vadd.f32 %v4910, %v4920
        %v4950 = vadd.f32 %v4911, %v4920
        %v4951 = vadd.f32 %v4912, %v4920
        %v4952 = vadd.f32 %v4913, %v4920
        %v4953 = vadd.f32 %v4914, %v4920
        %v4954 = vmax.f32 %v4922, 0.0
        %v4955 = vmax.f32 %v4923, 0.0
        %v4956 = vmax.f32 %v4924, 0.0
        %v4957 = vmax.f32 %v4925, 0.0
        %v4958 = vmax.f32 %v4926, 0.0
        %v4959 = vmax.f32 %v4927, 0.0
        %v4960 = vmax.f32 %v4928, 0.0
        %v4961 = vmax.f32 %v4929, 0.0
        %v4962 = vmax.f32 %v4930, 0.0
        %v4963 = vmax.f32 %v4931, 0.0
        %v4964 = vmax.f32 %v4932, 0.0
        %v4965 = vmax.f32 %v4933, 0.0
        %v4966 = vmax.f32 %v4934, 0.0
        %v4967 = vmax.f32 %v4935, 0.0
        %v4968 = vmax.f32 %v4936, 0.0
        %v4969 = vmax.f32 %v4937, 0.0
        %v4970 = vmax.f32 %v4938, 0.0
        %v4971 = vmax.f32 %v4939, 0.0
        %v4972 = vmax.f32 %v4940, 0.0
        %v4973 = vmax.f32 %v4941, 0.0
        %v4974 = vmax.f32 %v4942, 0.0
        %v4975 = vmax.f32 %v4943, 0.0
        %v4976 = vmax.f32 %v4944, 0.0
        %v4977 = vmax.f32 %v4945, 0.0
        %v4978 = vmax.f32 %v4946, 0.0
        %v4979 = vmax.f32 %v4947, 0.0
        %v4980 = vmax.f32 %v4948, 0.0
        %v4981 = vmax.f32 %v4949, 0.0
        %v4982 = vmax.f32 %v4950, 0.0
        %v4983 = vmax.f32 %v4951, 0.0
        %v4984 = vmax.f32 %v4952, 0.0
        %v4985 = vmax.f32 %v4953, 0.0
        %v4986 = vld [vmem:[%s5] sm:$0xff]
        %v4987 = vld [vmem:[%s5 + $0x8] sm:$0xff]
        %v4988 = vld [vmem:[%s5 + $0x10] sm:$0xff]
        %v4989 = vld [vmem:[%s5 + $0x18] sm:$0xff]
        %v4990 = vld [vmem:[%s6] sm:$0x1]
        %v4992 = vlaneseq
        %v4993 = vshrl.u32 %v4992, 7
        %v4994 = vsub.s32 0, %v4993
        %v4995 = vrot.slane %v4990, %v4994
        %v4998 = vsel %vm624, %v4954, 0
        %v5001 = vsel %vm624, %v4955, 0
        %v5004 = vsel %vm624, %v4956, 0
        %v5007 = vsel %vm624, %v4957, 0
        %v5010 = vsel %vm624, %v4958, 0
        %v5013 = vsel %vm624, %v4959, 0
        %v5016 = vsel %vm624, %v4960, 0
        %v5019 = vsel %vm624, %v4961, 0
        %v5022 = vsel %vm624, %v4962, 0
        %v5025 = vsel %vm624, %v4963, 0
        %v5028 = vsel %vm624, %v4964, 0
        %v5031 = vsel %vm624, %v4965, 0
        %v5034 = vsel %vm624, %v4966, 0
        %v5037 = vsel %vm624, %v4967, 0
        %v5040 = vsel %vm624, %v4968, 0
        %v5043 = vsel %vm624, %v4969, 0
        %v5046 = vsel %vm624, %v4970, 0
        %v5049 = vsel %vm624, %v4971, 0
        %v5052 = vsel %vm624, %v4972, 0
        %v5055 = vsel %vm624, %v4973, 0
        %v5058 = vsel %vm624, %v4974, 0
        %v5061 = vsel %vm624, %v4975, 0
        %v5064 = vsel %vm624, %v4976, 0
        %v5067 = vsel %vm624, %v4977, 0
        %v5070 = vsel %vm624, %v4978, 0
        %v5073 = vsel %vm624, %v4979, 0
        %v5076 = vsel %vm624, %v4980, 0
        %v5079 = vsel %vm624, %v4981, 0
        %v5082 = vsel %vm624, %v4982, 0
        %v5085 = vsel %vm624, %v4983, 0
        %v5088 = vsel %vm624, %v4984, 0
        %v5091 = vsel %vm624, %v4985, 0
        %5093 = vmatprep.subr.mxu0 0.0
        %5094 = vmatpush1.msra.mxu0 %v4986
        %5095 = vmatprep.subr.mxu0 0.0
        %5096 = vmatpush1.msra.mxu0 %v4987
        %5097 = vmatprep.subr.mxu0 0.0
        %5098 = vmatpush1.msra.mxu0 %v4988
        %5099 = vmatprep.subr.mxu0 0.0
        %5100 = vmatpush1.msra.mxu0 %v4989
        %5101 = vmatprep.subr.mxu0 0.0
        %5102 = vmatpush1.msra.mxu0 0.0
        %5103 = vmatprep.subr.mxu0 0.0
        %5104 = vmatpush1.msra.mxu0 0.0
        %5105 = vmatprep.subr.mxu0 0.0
        %5106 = vmatpush1.msra.mxu0 0.0
        %5107 = vmatprep.subr.mxu0 0.0
        %5108 = vmatpush1.msra.mxu0 0.0
        %5109 = vmatprep.subr.mxu0 0.0
        %5110 = vmatpush1.msra.mxu0 0.0
        %5111 = vmatprep.subr.mxu0 0.0
        %5112 = vmatpush1.msra.mxu0 0.0
        %5113 = vmatprep.subr.mxu0 0.0
        %5114 = vmatpush1.msra.mxu0 0.0
        %5115 = vmatprep.subr.mxu0 0.0
        %5116 = vmatpush1.msra.mxu0 0.0
        %5117 = vmatprep.subr.mxu0 0.0
        %5118 = vmatpush1.msra.mxu0 0.0
        %5119 = vmatprep.subr.mxu0 0.0
        %5120 = vmatpush1.msra.mxu0 0.0
        %5121 = vmatprep.subr.mxu0 0.0
        %5122 = vmatpush1.msra.mxu0 0.0
        %5123 = vmatprep.subr.mxu0 0.0
        %5124 = vmatpush1.msra.mxu0 0.0
        %5125 = vmatprep.subr.mxu0 0.0
        %5126 = vmatpush1.msra.mxu0 0.0
        %5127 = vmatprep.subr.mxu0 0.0
        %5128 = vmatpush1.msra.mxu0 0.0
        %5129 = vmatprep.subr.mxu0 0.0
        %5130 = vmatpush1.msra.mxu0 0.0
        %5131 = vmatprep.subr.mxu0 0.0
        %5132 = vmatpush1.msra.mxu0 0.0
        %5133 = vmatprep.subr.mxu0 0.0
        %5134 = vmatpush1.msra.mxu0 0.0
        %5135 = vmatprep.subr.mxu0 0.0
        %5136 = vmatpush1.msra.mxu0 0.0
        %5137 = vmatprep.subr.mxu0 0.0
        %5138 = vmatpush1.msra.mxu0 0.0
        %5139 = vmatprep.subr.mxu0 0.0
        %5140 = vmatpush1.msra.mxu0 0.0
        %5141 = vmatprep.subr.mxu0 0.0
        %5142 = vmatpush1.msra.mxu0 0.0
        %5143 = vmatprep.subr.mxu0 0.0
        %5144 = vmatpush1.msra.mxu0 0.0
        %5145 = vmatprep.subr.mxu0 0.0
        %5146 = vmatpush1.msra.mxu0 0.0
        %5147 = vmatprep.subr.mxu0 0.0
        %5148 = vmatpush1.msra.mxu0 0.0
        %5149 = vmatprep.subr.mxu0 0.0
        %5150 = vmatpush1.msra.mxu0 0.0
        %5151 = vmatprep.subr.mxu0 0.0
        %5152 = vmatpush1.msra.mxu0 0.0
        %5153 = vmatprep.subr.mxu0 0.0
        %5154 = vmatpush1.msra.mxu0 0.0
        %5155 = vmatprep.subr.mxu0 0.0
        %5156 = vmatpush1.msra.mxu0 0.0
        %5157 = vmatprep.mubr.f32.mxu0 0.0
        %5158 = vmatmul.mubr.f32.gmra.mrb[0].mxu0 %v4998
        %v5159 = vpop.f32.mrb[0].mxu0
        %v5160 = vadd.f32 %v4995, %v5159
        %v5161 = vpop.f32.mrb[0].mxu0
        %5162 = vmatprep.mubr.f32.mxu0 0.0
        %5163 = vmatmul.mubr.f32.gmra.mrb[0].mxu0 %v5001
        %v5164 = vpop.f32.mrb[0].mxu0
        %v5165 = vadd.f32 %v4995, %v5164
        %v5166 = vpop.f32.mrb[0].mxu0
        %5167 = vmatprep.mubr.f32.mxu0 0.0
        %5168 = vmatmul.mubr.f32.gmra.mrb[0].mxu0 %v5004
        %v5169 = vpop.f32.mrb[0].mxu0
        %v5170 = vadd.f32 %v4995, %v5169
        %v5171 = vpop.f32.mrb[0].mxu0
        %5172 = vmatprep.mubr.f32.mxu0 0.0
        %5173 = vmatmul.mubr.f32.gmra.mrb[0].mxu0 %v5007
        %v5174 = vpop.f32.mrb[0].mxu0
        %v5175 = vadd.f32 %v4995, %v5174
        %v5176 = vpop.f32.mrb[0].mxu0
        %5177 = vmatprep.mubr.f32.mxu0 0.0
        %5178 = vmatmul.mubr.f32.gmra.mrb[0].mxu0 %v5010
        %v5179 = vpop.f32.mrb[0].mxu0
        %v5180 = vadd.f32 %v4995, %v5179
        %v5181 = vpop.f32.mrb[0].mxu0
        %5182 = vmatprep.mubr.f32.mxu0 0.0
        %5183 = vmatmul.mubr.f32.gmra.mrb[0].mxu0 %v5013
        %v5184 = vpop.f32.mrb[0].mxu0
        %v5185 = vadd.f32 %v4995, %v5184
        %v5186 = vpop.f32.mrb[0].mxu0
        %5187 = vmatprep.mubr.f32.mxu0 0.0
        %5188 = vmatmul.mubr.f32.gmra.mrb[0].mxu0 %v5016
        %v5189 = vpop.f32.mrb[0].mxu0
        %v5190 = vadd.f32 %v4995, %v5189
        %v5191 = vpop.f32.mrb[0].mxu0
        %5192 = vmatprep.mubr.f32.mxu0 0.0
        %5193 = vmatmul.mubr.f32.gmra.mrb[0].mxu0 %v5019
        %v5194 = vpop.f32.mrb[0].mxu0
        %v5195 = vadd.f32 %v4995, %v5194
        %v5196 = vpop.f32.mrb[0].mxu0
        %5197 = vmatprep.mubr.f32.mxu0 0.0
        %5198 = vmatmul.mubr.f32.gmra.mrb[0].mxu0 %v5022
        %v5199 = vpop.f32.mrb[0].mxu0
        %v5200 = vadd.f32 %v4995, %v5199
        %v5201 = vpop.f32.mrb[0].mxu0
        %5202 = vmatprep.mubr.f32.mxu0 0.0
        %5203 = vmatmul.mubr.f32.gmra.mrb[0].mxu0 %v5025
        %v5204 = vpop.f32.mrb[0].mxu0
        %v5205 = vadd.f32 %v4995, %v5204
        %v5206 = vpop.f32.mrb[0].mxu0
        %5207 = vmatprep.mubr.f32.mxu0 0.0
        %5208 = vmatmul.mubr.f32.gmra.mrb[0].mxu0 %v5028
        %v5209 = vpop.f32.mrb[0].mxu0
        %v5210 = vadd.f32 %v4995, %v5209
        %v5211 = vpop.f32.mrb[0].mxu0
        %5212 = vmatprep.mubr.f32.mxu0 0.0
        %5213 = vmatmul.mubr.f32.gmra.mrb[0].mxu0 %v5031
        %v5214 = vpop.f32.mrb[0].mxu0
        %v5215 = vadd.f32 %v4995, %v5214
        %v5216 = vpop.f32.mrb[0].mxu0
        %5217 = vmatprep.mubr.f32.mxu0 0.0
        %5218 = vmatmul.mubr.f32.gmra.mrb[0].mxu0 %v5034
        %v5219 = vpop.f32.mrb[0].mxu0
        %v5220 = vadd.f32 %v4995, %v5219
        %v5221 = vpop.f32.mrb[0].mxu0
        %5222 = vmatprep.mubr.f32.mxu0 0.0
        %5223 = vmatmul.mubr.f32.gmra.mrb[0].mxu0 %v5037
        %v5224 = vpop.f32.mrb[0].mxu0
        %v5225 = vadd.f32 %v4995, %v5224
        %v5226 = vpop.f32.mrb[0].mxu0
        %5227 = vmatprep.mubr.f32.mxu0 0.0
        %5228 = vmatmul.mubr.f32.gmra.mrb[0].mxu0 %v5040
        %v5229 = vpop.f32.mrb[0].mxu0
        %v5230 = vadd.f32 %v4995, %v5229
        %v5231 = vpop.f32.mrb[0].mxu0
        %5232 = vmatprep.mubr.f32.mxu0 0.0
        %5233 = vmatmul.mubr.f32.gmra.mrb[0].mxu0 %v5043
        %v5234 = vpop.f32.mrb[0].mxu0
        %v5235 = vadd.f32 %v4995, %v5234
        %v5236 = vpop.f32.mrb[0].mxu0
        %5237 = vmatprep.mubr.f32.mxu0 0.0
        %5238 = vmatmul.mubr.f32.gmra.mrb[0].mxu0 %v5046
        %v5239 = vpop.f32.mrb[0].mxu0
        %v5240 = vadd.f32 %v4995, %v5239
        %v5241 = vpop.f32.mrb[0].mxu0
        %5242 = vmatprep.mubr.f32.mxu0 0.0
        %5243 = vmatmul.mubr.f32.gmra.mrb[0].mxu0 %v5049
        %v5244 = vpop.f32.mrb[0].mxu0
        %v5245 = vadd.f32 %v4995, %v5244
        %v5246 = vpop.f32.mrb[0].mxu0
        %5247 = vmatprep.mubr.f32.mxu0 0.0
        %5248 = vmatmul.mubr.f32.gmra.mrb[0].mxu0 %v5052
        %v5249 = vpop.f32.mrb[0].mxu0
        %v5250 = vadd.f32 %v4995, %v5249
        %v5251 = vpop.f32.mrb[0].mxu0
        %5252 = vmatprep.mubr.f32.mxu0 0.0
        %5253 = vmatmul.mubr.f32.gmra.mrb[0].mxu0 %v5055
        %v5254 = vpop.f32.mrb[0].mxu0
        %v5255 = vadd.f32 %v4995, %v5254
        %v5256 = vpop.f32.mrb[0].mxu0
        %5257 = vmatprep.mubr.f32.mxu0 0.0
        %5258 = vmatmul.mubr.f32.gmra.mrb[0].mxu0 %v5058
        %v5259 = vpop.f32.mrb[0].mxu0
        %v5260 = vadd.f32 %v4995, %v5259
        %v5261 = vpop.f32.mrb[0].mxu0
        %5262 = vmatprep.mubr.f32.mxu0 0.0
        %5263 = vmatmul.mubr.f32.gmra.mrb[0].mxu0 %v5061
        %v5264 = vpop.f32.mrb[0].mxu0
        %v5265 = vadd.f32 %v4995, %v5264
        %v5266 = vpop.f32.mrb[0].mxu0
        %5267 = vmatprep.mubr.f32.mxu0 0.0
        %5268 = vmatmul.mubr.f32.gmra.mrb[0].mxu0 %v5064
        %v5269 = vpop.f32.mrb[0].mxu0
        %v5270 = vadd.f32 %v4995, %v5269
        %v5271 = vpop.f32.mrb[0].mxu0
        %5272 = vmatprep.mubr.f32.mxu0 0.0
        %5273 = vmatmul.mubr.f32.gmra.mrb[0].mxu0 %v5067
        %v5274 = vpop.f32.mrb[0].mxu0
        %v5275 = vadd.f32 %v4995, %v5274
        %v5276 = vpop.f32.mrb[0].mxu0
        %5277 = vmatprep.mubr.f32.mxu0 0.0
        %5278 = vmatmul.mubr.f32.gmra.mrb[0].mxu0 %v5070
        %v5279 = vpop.f32.mrb[0].mxu0
        %v5280 = vadd.f32 %v4995, %v5279
        %v5281 = vpop.f32.mrb[0].mxu0
        %5282 = vmatprep.mubr.f32.mxu0 0.0
        %5283 = vmatmul.mubr.f32.gmra.mrb[0].mxu0 %v5073
        %v5284 = vpop.f32.mrb[0].mxu0
        %v5285 = vadd.f32 %v4995, %v5284
        %v5286 = vpop.f32.mrb[0].mxu0
        %5287 = vmatprep.mubr.f32.mxu0 0.0
        %5288 = vmatmul.mubr.f32.gmra.mrb[0].mxu0 %v5076
        %v5289 = vpop.f32.mrb[0].mxu0
        %v5290 = vadd.f32 %v4995, %v5289
        %v5291 = vpop.f32.mrb[0].mxu0
        %5292 = vmatprep.mubr.f32.mxu0 0.0
        %5293 = vmatmul.mubr.f32.gmra.mrb[0].mxu0 %v5079
        %v5294 = vpop.f32.mrb[0].mxu0
        %v5295 = vadd.f32 %v4995, %v5294
        %v5296 = vpop.f32.mrb[0].mxu0
        %5297 = vmatprep.mubr.f32.mxu0 0.0
        %5298 = vmatmul.mubr.f32.gmra.mrb[0].mxu0 %v5082
        %v5299 = vpop.f32.mrb[0].mxu0
        %v5300 = vadd.f32 %v4995, %v5299
        %v5301 = vpop.f32.mrb[0].mxu0
        %5302 = vmatprep.mubr.f32.mxu0 0.0
        %5303 = vmatmul.mubr.f32.gmra.mrb[0].mxu0 %v5085
        %v5304 = vpop.f32.mrb[0].mxu0
        %v5305 = vadd.f32 %v4995, %v5304
        %v5306 = vpop.f32.mrb[0].mxu0
        %5307 = vmatprep.mubr.f32.mxu0 0.0
        %5308 = vmatmul.mubr.f32.gmra.mrb[0].mxu0 %v5088
        %v5309 = vpop.f32.mrb[0].mxu0
        %v5310 = vadd.f32 %v4995, %v5309
        %v5311 = vpop.f32.mrb[0].mxu0
        %5312 = vmatprep.mubr.f32.mxu0 0.0
        %5313 = vmatmul.mubr.f32.gmra.mrb[0].mxu0 %v5091
        %v5314 = vpop.f32.mrb[0].mxu0
        %v5315 = vadd.f32 %v4995, %v5314
        %v5316 = vpop.f32.mrb[0].mxu0
        %5317 = vdwg.mxu0
        %v5318 = vld [vmem:[%s277] sm:$0xff]
        %v5319 = vld [vmem:[%s277 + $0x8] sm:$0xff]
        %v5320 = vld [vmem:[%s277 + $0x10] sm:$0xff]
        %v5321 = vld [vmem:[%s277 + $0x18] sm:$0xff]
        %v5322 = vld [vmem:[%s277 + $0x20] sm:$0xff]
        %v5323 = vld [vmem:[%s277 + $0x28] sm:$0xff]
        %v5324 = vld [vmem:[%s277 + $0x30] sm:$0xff]
        %v5325 = vld [vmem:[%s277 + $0x38] sm:$0xff]
        %v5326 = vld [vmem:[%s277 + $0x40] sm:$0xff]
        %v5327 = vld [vmem:[%s277 + $0x48] sm:$0xff]
        %v5328 = vld [vmem:[%s277 + $0x50] sm:$0xff]
        %v5329 = vld [vmem:[%s277 + $0x58] sm:$0xff]
        %v5330 = vld [vmem:[%s277 + $0x60] sm:$0xff]
        %v5331 = vld [vmem:[%s277 + $0x68] sm:$0xff]
        %v5332 = vld [vmem:[%s277 + $0x70] sm:$0xff]
        %v5333 = vld [vmem:[%s277 + $0x78] sm:$0xff]
        %v5334 = vld [vmem:[%s277 + $0x80] sm:$0xff]
        %v5335 = vld [vmem:[%s277 + $0x88] sm:$0xff]
        %v5336 = vld [vmem:[%s277 + $0x90] sm:$0xff]
        %v5337 = vld [vmem:[%s277 + $0x98] sm:$0xff]
        %v5338 = vld [vmem:[%s277 + $0xa0] sm:$0xff]
        %v5339 = vld [vmem:[%s277 + $0xa8] sm:$0xff]
        %v5340 = vld [vmem:[%s277 + $0xb0] sm:$0xff]
        %v5341 = vld [vmem:[%s277 + $0xb8] sm:$0xff]
        %v5342 = vld [vmem:[%s277 + $0xc0] sm:$0xff]
        %v5343 = vld [vmem:[%s277 + $0xc8] sm:$0xff]
        %v5344 = vld [vmem:[%s277 + $0xd0] sm:$0xff]
        %v5345 = vld [vmem:[%s277 + $0xd8] sm:$0xff]
        %v5346 = vld [vmem:[%s277 + $0xe0] sm:$0xff]
        %v5347 = vld [vmem:[%s277 + $0xe8] sm:$0xff]
        %v5348 = vld [vmem:[%s277 + $0xf0] sm:$0xff]
        %v5349 = vld [vmem:[%s277 + $0xf8] sm:$0xff]
        %v5350 = vadd.f32 %v5160, %v5318
        %v5351 = vadd.f32 %v5165, %v5319
        %v5352 = vadd.f32 %v5170, %v5320
        %v5353 = vadd.f32 %v5175, %v5321
        %v5354 = vadd.f32 %v5180, %v5322
        %v5355 = vadd.f32 %v5185, %v5323
        %v5356 = vadd.f32 %v5190, %v5324
        %v5357 = vadd.f32 %v5195, %v5325
        %v5358 = vadd.f32 %v5200, %v5326
        %v5359 = vadd.f32 %v5205, %v5327
        %v5360 = vadd.f32 %v5210, %v5328
        %v5361 = vadd.f32 %v5215, %v5329
        %v5362 = vadd.f32 %v5220, %v5330
        %v5363 = vadd.f32 %v5225, %v5331
        %v5364 = vadd.f32 %v5230, %v5332
        %v5365 = vadd.f32 %v5235, %v5333
        %v5366 = vadd.f32 %v5240, %v5334
        %v5367 = vadd.f32 %v5245, %v5335
        %v5368 = vadd.f32 %v5250, %v5336
        %v5369 = vadd.f32 %v5255, %v5337
        %v5370 = vadd.f32 %v5260, %v5338
        %v5371 = vadd.f32 %v5265, %v5339
        %v5372 = vadd.f32 %v5270, %v5340
        %v5373 = vadd.f32 %v5275, %v5341
        %v5374 = vadd.f32 %v5280, %v5342
        %v5375 = vadd.f32 %v5285, %v5343
        %v5376 = vadd.f32 %v5290, %v5344
        %v5377 = vadd.f32 %v5295, %v5345
        %v5378 = vadd.f32 %v5300, %v5346
        %v5379 = vadd.f32 %v5305, %v5347
        %v5380 = vadd.f32 %v5310, %v5348
        %v5381 = vadd.f32 %v5315, %v5349
        %v5382 = vmax.f32 %v5350, 0.0
        %v5383 = vmax.f32 %v5351, 0.0
        %v5384 = vmax.f32 %v5352, 0.0
        %v5385 = vmax.f32 %v5353, 0.0
        %v5386 = vmax.f32 %v5354, 0.0
        %v5387 = vmax.f32 %v5355, 0.0
        %v5388 = vmax.f32 %v5356, 0.0
        %v5389 = vmax.f32 %v5357, 0.0
        %v5390 = vmax.f32 %v5358, 0.0
        %v5391 = vmax.f32 %v5359, 0.0
        %v5392 = vmax.f32 %v5360, 0.0
        %v5393 = vmax.f32 %v5361, 0.0
        %v5394 = vmax.f32 %v5362, 0.0
        %v5395 = vmax.f32 %v5363, 0.0
        %v5396 = vmax.f32 %v5364, 0.0
        %v5397 = vmax.f32 %v5365, 0.0
        %v5398 = vmax.f32 %v5366, 0.0
        %v5399 = vmax.f32 %v5367, 0.0
        %v5400 = vmax.f32 %v5368, 0.0
        %v5401 = vmax.f32 %v5369, 0.0
        %v5402 = vmax.f32 %v5370, 0.0
        %v5403 = vmax.f32 %v5371, 0.0
        %v5404 = vmax.f32 %v5372, 0.0
        %v5405 = vmax.f32 %v5373, 0.0
        %v5406 = vmax.f32 %v5374, 0.0
        %v5407 = vmax.f32 %v5375, 0.0
        %v5408 = vmax.f32 %v5376, 0.0
        %v5409 = vmax.f32 %v5377, 0.0
        %v5410 = vmax.f32 %v5378, 0.0
        %v5411 = vmax.f32 %v5379, 0.0
        %v5412 = vmax.f32 %v5380, 0.0
        %v5413 = vmax.f32 %v5381, 0.0
        %5414 = vst [vmem:[%s311] sm:$0xff] %v5382
        %5415 = vst [vmem:[%s311 + $0x8] sm:$0xff] %v5383
        %5416 = vst [vmem:[%s311 + $0x10] sm:$0xff] %v5384
        %5417 = vst [vmem:[%s311 + $0x18] sm:$0xff] %v5385
        %5418 = vst [vmem:[%s311 + $0x20] sm:$0xff] %v5386
        %5419 = vst [vmem:[%s311 + $0x28] sm:$0xff] %v5387
        %5420 = vst [vmem:[%s311 + $0x30] sm:$0xff] %v5388
        %5421 = vst [vmem:[%s311 + $0x38] sm:$0xff] %v5389
        %5422 = vst [vmem:[%s311 + $0x40] sm:$0xff] %v5390
        %5423 = vst [vmem:[%s311 + $0x48] sm:$0xff] %v5391
        %5424 = vst [vmem:[%s311 + $0x50] sm:$0xff] %v5392
        %5425 = vst [vmem:[%s311 + $0x58] sm:$0xff] %v5393
        %5426 = vst [vmem:[%s311 + $0x60] sm:$0xff] %v5394
        %5427 = vst [vmem:[%s311 + $0x68] sm:$0xff] %v5395
        %5428 = vst [vmem:[%s311 + $0x70] sm:$0xff] %v5396
        %5429 = vst [vmem:[%s311 + $0x78] sm:$0xff] %v5397
        %5430 = vst [vmem:[%s311 + $0x80] sm:$0xff] %v5398
        %5431 = vst [vmem:[%s311 + $0x88] sm:$0xff] %v5399
        %5432 = vst [vmem:[%s311 + $0x90] sm:$0xff] %v5400
        %5433 = vst [vmem:[%s311 + $0x98] sm:$0xff] %v5401
        %5434 = vst [vmem:[%s311 + $0xa0] sm:$0xff] %v5402
        %5435 = vst [vmem:[%s311 + $0xa8] sm:$0xff] %v5403
        %5436 = vst [vmem:[%s311 + $0xb0] sm:$0xff] %v5404
        %5437 = vst [vmem:[%s311 + $0xb8] sm:$0xff] %v5405
        %5438 = vst [vmem:[%s311 + $0xc0] sm:$0xff] %v5406
        %5439 = vst [vmem:[%s311 + $0xc8] sm:$0xff] %v5407
        %5440 = vst [vmem:[%s311 + $0xd0] sm:$0xff] %v5408
        %5441 = vst [vmem:[%s311 + $0xd8] sm:$0xff] %v5409
        %5442 = vst [vmem:[%s311 + $0xe0] sm:$0xff] %v5410
        %5443 = vst [vmem:[%s311 + $0xe8] sm:$0xff] %v5411
        %5444 = vst [vmem:[%s311 + $0xf0] sm:$0xff] %v5412
        %5445 = vst [vmem:[%s311 + $0xf8] sm:$0xff] %v5413
        %s5446 = sand.u32 %s185, 1
        %s5447 = scalar_lea.sflag [#allocation7], %s5446
        %s5448 = sand.u32 %s185, 1
        %s5449 = smul.addr %s5448, 256
        %s5450 = scalar_lea.vmem [#allocation10], %s5449
        // Predicated region
        $region57: #{tpu_custom_call.1} parent=47 // pred_check
          %p5451 = pneg %p195
        $region58: #{tpu_custom_call.1} parent=47 // pred_check_branch
          %5453 = sbr.rel (%p5451) target = $region60
        $region59: #{tpu_custom_call.1} parent=47 // pred_region
          %s5455 = ssub.s32 4096, 4096
          %5456 = vsyncadd %s5447, %s5455
          %s5457 = smul.addr %s25, 32
          %s5458 = smul.addr %s5457, 128
          %s5459 = scalar_lea.hbm %s7, %s5458
          %s5460 = sshll.u32 %s5450, 4
          %s5461 = int_to_ptr.vmem [resolvable:$true] %s5460
          %5466 = dma.vmem_to_hbm [thread:$0]  %s5461, 4096, %s5459, %s5447, 128, 128, 8
        $region60: #{tpu_custom_call.1} parent=47 // pred_fallthru
          _
      $region48: #{tpu_custom_call.1} parent=5 // pred_fallthru
        _
      %p5467 = scmp.le.s32.totalorder 2, %s20
      // Predicated region
      $region61: #{tpu_custom_call.1} parent=5 // pred_check
        %p5468 = pneg %p5467
      $region62: #{tpu_custom_call.1} parent=5 // pred_check_branch
        %5470 = sbr.rel (%p5468) target = $region64
      $region63: #{tpu_custom_call.1} parent=5 // pred_region
        %s5471 = ssub.s32 %s20, 2
        // Predicated region
        $region65: #{tpu_custom_call.1} parent=63 // pred_check
          %p5472 = pneg %p201
        $region66: #{tpu_custom_call.1} parent=63 // pred_check_branch
          %5474 = sbr.rel (%p5472) target = $region68
        $region67: #{tpu_custom_call.1} parent=63 // pred_region
          %s5475 = sand.u32 %s186, 1
          %s5476 = scalar_lea.sflag [#allocation7], %s5475
          %s5477 = sand.u32 %s186, 1
          %s5478 = smul.addr %s5477, 256
          %s5479 = scalar_lea.vmem [#allocation10], %s5478
          %5480 = dma.done %s5476, 4096
        $region68: #{tpu_custom_call.1} parent=63 // pred_fallthru
          _
      $region64: #{tpu_custom_call.1} parent=5 // pred_fallthru
        _
    $region6: #{tpu_custom_call.1} parent=1 // loop_footer
      %s24 = sadd.s32 1, %s20
    $region7: #{tpu_custom_call.1} parent=1 // loop_footer_branch
      %19 = sbr.rel target = $region3
    $region8: #{tpu_custom_call.1} parent=1 // loop_exit
      _
    %5481 = vsyncpa [#allocation6], 1
    %s5482 = scalar_lea.sflag [#allocation6], 1
    %5483 = vsyncpa %s5482, 1
    %5484 = vsyncpa [#allocation9], 1
    %5485 = vsyncpa [#allocation7], 1
    %s5486 = scalar_lea.sflag [#allocation7], 1
    %5487 = vsyncpa %s5486, 1

</llo_original>
